<compile_context>
chip_gen: v7x
topology: tpu7x:2x2x1
jax: 0.10.0
libtpu: 0.0.40
codegen_flags: <defaults>
</compile_context>

<pallas_src>
import jax
import jax.numpy as jnp
from jax import lax
from jax.experimental import pallas as pl
from jax.experimental.pallas import tpu as pltpu


_LANE = 128
_BT_MAX = 128          # batch-tile rows per grid step (MXU M dimension)


def _round_up(n, m):
    return (n + m - 1) // m * m


def _pick_unroll(T, cap=8):
    """Largest divisor of T that is <= cap (safe bounded unroll)."""
    u = max(1, min(T, cap))
    while T % u:
        u -= 1
    return u


# ----------------------------------------------------------------------------
# Fused kernel (one batch tile per grid step)
# ----------------------------------------------------------------------------
def make_autoencoder_kernel(T_enc, T_dec, Bt, H, unroll_enc, unroll_dec):
    """Fused encoder-LSTM -> decoder-LSTM -> FC -> tanh kernel.

    Per-grid-step inputs (VMEM tiles):
      x_ref   [T_enc*Bt, F]  bf16   encoder inputs, time-major within the tile
      tch_ref [T_dec*Bt, F]  bf16   decoder (teacher) inputs
      wih_*   [F, 4H] bf16, whh_* [H, 4H] bf16, b_* [1, 4H] f32
              (PyTorch gate order i,f,g,o; g columns pre-scaled by 2)
      fcw     [H, Fp] bf16 (zero lane-padded), fcb [1, Fp] f32
    Output:
      out_ref [T_dec*Bt, Fp] f32
    Scratch:
      xg_ref  [T_enc*Bt, 4H] bf16   encoder gate pre-activations
      tg_ref  [T_dec*Bt, 4H] bf16   decoder gate pre-activations
    """

    def kernel(x_ref, tch_ref,
               wih_e_ref, whh_e_ref, b_e_ref,
               wih_d_ref, whh_d_ref, b_d_ref,
               fcw_ref, fcb_ref,
               out_ref,
               xg_ref, tg_ref):
        # --- Hoisted input projections: one big MXU matmul per LSTM ---------
        # Compute in f32, store bf16 (they feed a sigmoid after an f32 add).
        xg_ref[...] = (jnp.dot(x_ref[...], wih_e_ref[...],
                               preferred_element_type=jnp.float32)
                       + b_e_ref[...]).astype(jnp.bfloat16)
        tg_ref[...] = (jnp.dot(tch_ref[...], wih_d_ref[...],
                               preferred_element_type=jnp.float32)
                       + b_d_ref[...]).astype(jnp.bfloat16)

        # Hoist weight loads out of the time loops.
        whh_e = whh_e_ref[...]
        whh_d = whh_d_ref[...]
        fcw = fcw_ref[...]
        fcb = fcb_ref[...]

        def cell(pre, whh, h, c):
            gates = pre.astype(jnp.float32) + jnp.dot(
                h.astype(whh.dtype), whh,
                preferred_element_type=jnp.float32)
            # Single EUP sigmoid over the full [Bt, 4H] tile; the g-gate
            # columns were pre-scaled by 2 so tanh(g) = 2*sigmoid(2g) - 1.
            s = jax.nn.sigmoid(gates)
            i = s[:, 0 * H:1 * H]
            f = s[:, 1 * H:2 * H]
            g = 2.0 * s[:, 2 * H:3 * H] - 1.0
            o = s[:, 3 * H:4 * H]
            c_new = f * c + i * g
            h_new = o * jnp.tanh(c_new)
            return h_new, c_new

        zeros = jnp.zeros((Bt, H), jnp.float32)

        # Encoder: no hidden-sequence emission, only the final (h, c).
        def enc_step(t, hc):
            r0 = pl.multiple_of(t * Bt, Bt)
            return cell(xg_ref[pl.ds(r0, Bt), :], whh_e, *hc)

        hT, cT = lax.fori_loop(0, T_enc, enc_step, (zeros, zeros),
                               unroll=unroll_enc)

        # Decoder seeded with encoder final state. FC + tanh fused per step:
        # the decoder hidden sequence never hits a scratch buffer, and the
        # per-step FC matmul is off the recurrent dependency chain.
        def dec_step(t, hc):
            r0 = pl.multiple_of(t * Bt, Bt)
            h_new, c_new = cell(tg_ref[pl.ds(r0, Bt), :], whh_d, *hc)
            out_ref[pl.ds(r0, Bt), :] = jnp.tanh(
                jnp.dot(h_new.astype(fcw.dtype), fcw,
                        preferred_element_type=jnp.float32) + fcb)
            return h_new, c_new

        lax.fori_loop(0, T_dec, dec_step, (hT, cT), unroll=unroll_dec)

    return kernel


# ----------------------------------------------------------------------------
# Model wrapper
# ----------------------------------------------------------------------------
class AutoencoderPallas:
    """Pallas port of Autoencoder (LSTM encoder/decoder reconstruction path)."""

    def __init__(self, hidden_dim, feature_dim, num_coins, key):
        self.H = hidden_dim
        self.F = feature_dim
        self.Fp = _round_up(feature_dim, _LANE)
        del num_coins  # only used by the Predictor branch (not ported)

        ke, kd, kf1, kf2 = jax.random.split(key, 4)
        self.enc_wih, self.enc_whh, self.enc_b = self._init_lstm(
            ke, feature_dim, hidden_dim)
        self.dec_wih, self.dec_whh, self.dec_b = self._init_lstm(
            kd, feature_dim, hidden_dim)

        bound = 1.0 / (hidden_dim ** 0.5)
        fc_w = jax.random.uniform(kf1, (hidden_dim, feature_dim),
                                  jnp.float32, -bound, bound)
        fc_b = jax.random.uniform(kf2, (feature_dim,), jnp.float32,
                                  -bound, bound)
        # Lane-pad the FC output to 128 so the kernel's output stores are
        # unmasked; padded lanes are sliced off in __call__.
        self.fc_w = (jnp.zeros((hidden_dim, self.Fp), jnp.bfloat16)
                     .at[:, :feature_dim].set(fc_w.astype(jnp.bfloat16)))
        self.fc_b = (jnp.zeros((1, self.Fp), jnp.float32)
                     .at[:, :feature_dim].set(fc_b))
        # TODO(synk): use_predictor=True (Predictor MLP + BatchNorm1d running
        # stats), return_hidden=True (.cpu() copies) and the GRU variant
        # (args.use_lstm=False) are not ported; only the default decoder
        # reconstruction path is implemented.

    @staticmethod
    def _init_lstm(key, F, H):
        k1, k2, k3, k4 = jax.random.split(key, 4)

        def xavier(k, fi, fo, shape):
            lim = (6.0 / (fi + fo)) ** 0.5
            return jax.random.uniform(k, shape, jnp.float32, -lim, lim)

        # Stored pre-transposed vs PyTorch: [F, 4H] and [H, 4H].
        w_ih = xavier(k1, F, 4 * H, (F, 4 * H))
        w_hh = xavier(k2, H, 4 * H, (H, 4 * H))
        bound = 1.0 / (H ** 0.5)
        b = (jax.random.uniform(k3, (1, 4 * H), jnp.float32, -bound, bound)
             + jax.random.uniform(k4, (1, 4 * H), jnp.float32, -bound, bound))

        # Pre-scale the g-gate columns by 2: the kernel then needs only one
        # sigmoid per step (tanh(x) == 2*sigmoid(2x) - 1). Exact in bf16
        # (power-of-two scaling).
        def scale_g(a):
            return a.at[:, 2 * H:3 * H].multiply(2.0)

        return (scale_g(w_ih).astype(jnp.bfloat16),
                scale_g(w_hh).astype(jnp.bfloat16),
                scale_g(b))

    def __call__(self, x, teacher_input):
        B, T_enc, F = x.shape
        T_dec = teacher_input.shape[1]
        H, Fp = self.H, self.Fp

        # Batch tile: multiple of 16 rows (bf16 sublane packing) up to 128.
        Bt = min(_BT_MAX, _round_up(B, 16))
        Bp = _round_up(B, Bt)
        n_tiles = Bp // Bt

        def to_tiles(a, T):
            # Cast to bf16 BEFORE transpose/pad so wrapper-side HLO traffic
            # is halved.
            a = a.astype(jnp.bfloat16)
            a = jnp.transpose(a, (1, 0, 2))                      # [T, B, F]
            a = jnp.pad(a, ((0, 0), (0, Bp - B), (0, 0)))        # [T, Bp, F]
            a = a.reshape(T, n_tiles, Bt, F).transpose(1, 0, 2, 3)
            return a.reshape(n_tiles, T * Bt, F)                 # per-tile rows

        x_t = to_tiles(x, T_enc)
        tch_t = to_tiles(teacher_input, T_dec)

        kernel = make_autoencoder_kernel(
            T_enc, T_dec, Bt, H,
            _pick_unroll(T_enc), _pick_unroll(T_dec))

        # VMEM budget: double-buffered I/O tiles + weights + gate scratch.
        tile_in = (T_enc + T_dec) * Bt * F * 2
        tile_out = T_dec * Bt * Fp * 4
        w_bytes = (2 * (F + H) * 4 * H + H * Fp) * 2 + (2 * 4 * H + Fp) * 4
        scratch_bytes = (T_enc + T_dec) * Bt * 4 * H * 2
        need = 2 * (tile_in + tile_out + w_bytes) + scratch_bytes
        vmem_limit = int(min(64 << 20, max(2 * need, 16 << 20)))

        out_tiled = pl.pallas_call(
            kernel,
            grid=(n_tiles,),
            out_shape=jax.ShapeDtypeStruct((n_tiles, T_dec * Bt, Fp),
                                           jnp.float32),
            in_specs=[
                pl.BlockSpec((None, T_enc * Bt, F), lambda b: (b, 0, 0)),
                pl.BlockSpec((None, T_dec * Bt, F), lambda b: (b, 0, 0)),
                pl.BlockSpec((F, 4 * H), lambda b: (0, 0)),
                pl.BlockSpec((H, 4 * H), lambda b: (0, 0)),
                pl.BlockSpec((1, 4 * H), lambda b: (0, 0)),
                pl.BlockSpec((F, 4 * H), lambda b: (0, 0)),
                pl.BlockSpec((H, 4 * H), lambda b: (0, 0)),
                pl.BlockSpec((1, 4 * H), lambda b: (0, 0)),
                pl.BlockSpec((H, Fp), lambda b: (0, 0)),
                pl.BlockSpec((1, Fp), lambda b: (0, 0)),
            ],
            out_specs=pl.BlockSpec((None, T_dec * Bt, Fp),
                                   lambda b: (b, 0, 0)),
            scratch_shapes=[
                pltpu.VMEM((T_enc * Bt, 4 * H), jnp.bfloat16),  # enc gate pre-acts
                pltpu.VMEM((T_dec * Bt, 4 * H), jnp.bfloat16),  # dec gate pre-acts
            ],
            compiler_params=pltpu.CompilerParams(
                dimension_semantics=("parallel",),
                vmem_limit_bytes=vmem_limit),
        )(x_t, tch_t,
          self.enc_wih, self.enc_whh, self.enc_b,
          self.dec_wih, self.dec_whh, self.dec_b,
          self.fc_w, self.fc_b)

        out = out_tiled.reshape(n_tiles, T_dec, Bt, Fp).transpose(1, 0, 2, 3)
        out = out.reshape(T_dec, Bp, Fp)[:, :B, :self.F]
        return jnp.transpose(out, (1, 0, 2))                    # [B, T_dec, F]


# ----------------------------------------------------------------------------
# Main
# ----------------------------------------------------------------------------
if __name__ == "__main__":
    B, T, F, H = 2, 8, 16, 32
    num_coins = 4  # unused on the decoder reconstruction path

    key = jax.random.PRNGKey(0)
    k_model, k_in, k_teach = jax.random.split(key, 3)

    model = AutoencoderPallas(hidden_dim=H, feature_dim=F,
                              num_coins=num_coins, key=k_model)

    x = jax.random.normal(k_in, (B, T, F), jnp.float32)
    teacher = jax.random.normal(k_teach, (B, T, F), jnp.float32)

    out = model(x, teacher)
    jax.block_until_ready(out)
    assert out.shape == (B, T, F), out.shape
    print("KERNEL_OK")
</pallas_src>

<mosaic_0001>
module attributes {stable_mosaic.version = 11 : i64} {
  func.func @kernel(%arg0: i32, %arg1: memref<1x128x16xbf16, #tpu.memory_space<vmem>>, %arg2: memref<1x128x16xbf16, #tpu.memory_space<vmem>>, %arg3: memref<16x128xbf16, #tpu.memory_space<vmem>>, %arg4: memref<32x128xbf16, #tpu.memory_space<vmem>>, %arg5: memref<1x128xf32, #tpu.memory_space<vmem>>, %arg6: memref<16x128xbf16, #tpu.memory_space<vmem>>, %arg7: memref<32x128xbf16, #tpu.memory_space<vmem>>, %arg8: memref<1x128xf32, #tpu.memory_space<vmem>>, %arg9: memref<32x128xbf16, #tpu.memory_space<vmem>>, %arg10: memref<1x128xf32, #tpu.memory_space<vmem>>, %arg11: memref<1x128x128xf32, #tpu.memory_space<vmem>>, %arg12: memref<128x128xbf16, #tpu.memory_space<vmem>>, %arg13: memref<128x128xbf16, #tpu.memory_space<vmem>>) attributes {dimension_semantics = [#tpu.dimension_semantics<parallel>], iteration_bounds = array<i64: 1>, scalar_prefetch = 0 : i64, scratch_operands = 2 : i64, tpu.core_type = #tpu.core_type<tc>, window_params = [{transform_indices = @transform_0, window_bounds = array<i64: 1, 128, 16>}, {transform_indices = @transform_1, window_bounds = array<i64: 1, 128, 16>}, {pipeline_mode = #tpu.pipeline_mode<synchronous>, transform_indices = @transform_2, window_bounds = array<i64: 16, 128>}, {pipeline_mode = #tpu.pipeline_mode<synchronous>, transform_indices = @transform_3, window_bounds = array<i64: 32, 128>}, {pipeline_mode = #tpu.pipeline_mode<synchronous>, transform_indices = @transform_4, window_bounds = array<i64: 1, 128>}, {pipeline_mode = #tpu.pipeline_mode<synchronous>, transform_indices = @transform_5, window_bounds = array<i64: 16, 128>}, {pipeline_mode = #tpu.pipeline_mode<synchronous>, transform_indices = @transform_6, window_bounds = array<i64: 32, 128>}, {pipeline_mode = #tpu.pipeline_mode<synchronous>, transform_indices = @transform_7, window_bounds = array<i64: 1, 128>}, {pipeline_mode = #tpu.pipeline_mode<synchronous>, transform_indices = @transform_8, window_bounds = array<i64: 32, 128>}, {pipeline_mode = #tpu.pipeline_mode<synchronous>, transform_indices = @transform_9, window_bounds = array<i64: 1, 128>}, {transform_indices = @transform_10, window_bounds = array<i64: 1, 128, 128>}]} {
    %c0 = arith.constant 0 : index
    %c0_0 = arith.constant 0 : index
    %c0_1 = arith.constant 0 : index
    %0 = vector.load %arg1[%c0, %c0_0, %c0_1] : memref<1x128x16xbf16, #tpu.memory_space<vmem>>, vector<1x128x16xbf16>
    %1 = vector.shape_cast %0 : vector<1x128x16xbf16> to vector<128x16xbf16>
    %c0_2 = arith.constant 0 : index
    %c0_3 = arith.constant 0 : index
    %2 = vector.load %arg3[%c0_2, %c0_3] : memref<16x128xbf16, #tpu.memory_space<vmem>>, vector<16x128xbf16>
    %cst = arith.constant dense<0.000000e+00> : vector<128x128xf32>
    %3 = tpu.matmul %1, %2, %cst {dimension_numbers = #tpu.dot_dimension_numbers<[1], [0], [0], [1], [0, 0, 1, 1], [], []>} : vector<128x16xbf16>, vector<16x128xbf16>, vector<128x128xf32> -> vector<128x128xf32>
    %c0_4 = arith.constant 0 : index
    %c0_5 = arith.constant 0 : index
    %4 = vector.load %arg5[%c0_4, %c0_5] : memref<1x128xf32, #tpu.memory_space<vmem>>, vector<1x128xf32>
    %5 = vector.broadcast %4 : vector<1x128xf32> to vector<128x128xf32>
    %6 = arith.addf %3, %5 : vector<128x128xf32>
    %7 = arith.truncf %6 : vector<128x128xf32> to vector<128x128xbf16>
    %c0_6 = arith.constant 0 : index
    %c0_7 = arith.constant 0 : index
    %8 = vector.load %arg12[%c0_6, %c0_7] : memref<128x128xbf16, #tpu.memory_space<vmem>>, vector<128x128xbf16>
    tpu.vector_store %arg12[%c0_6, %c0_7], %7 {strides = array<i32>} : memref<128x128xbf16, #tpu.memory_space<vmem>>, vector<128x128xbf16>,
    %c0_8 = arith.constant 0 : index
    %c0_9 = arith.constant 0 : index
    %c0_10 = arith.constant 0 : index
    %9 = vector.load %arg2[%c0_8, %c0_9, %c0_10] : memref<1x128x16xbf16, #tpu.memory_space<vmem>>, vector<1x128x16xbf16>
    %10 = vector.shape_cast %9 : vector<1x128x16xbf16> to vector<128x16xbf16>
    %c0_11 = arith.constant 0 : index
    %c0_12 = arith.constant 0 : index
    %11 = vector.load %arg6[%c0_11, %c0_12] : memref<16x128xbf16, #tpu.memory_space<vmem>>, vector<16x128xbf16>
    %cst_13 = arith.constant dense<0.000000e+00> : vector<128x128xf32>
    %12 = tpu.matmul %10, %11, %cst_13 {dimension_numbers = #tpu.dot_dimension_numbers<[1], [0], [0], [1], [0, 0, 1, 1], [], []>} : vector<128x16xbf16>, vector<16x128xbf16>, vector<128x128xf32> -> vector<128x128xf32>
    %c0_14 = arith.constant 0 : index
    %c0_15 = arith.constant 0 : index
    %13 = vector.load %arg8[%c0_14, %c0_15] : memref<1x128xf32, #tpu.memory_space<vmem>>, vector<1x128xf32>
    %14 = vector.broadcast %13 : vector<1x128xf32> to vector<128x128xf32>
    %15 = arith.addf %12, %14 : vector<128x128xf32>
    %16 = arith.truncf %15 : vector<128x128xf32> to vector<128x128xbf16>
    %c0_16 = arith.constant 0 : index
    %c0_17 = arith.constant 0 : index
    %17 = vector.load %arg13[%c0_16, %c0_17] : memref<128x128xbf16, #tpu.memory_space<vmem>>, vector<128x128xbf16>
    tpu.vector_store %arg13[%c0_16, %c0_17], %16 {strides = array<i32>} : memref<128x128xbf16, #tpu.memory_space<vmem>>, vector<128x128xbf16>,
    %c0_18 = arith.constant 0 : index
    %c0_19 = arith.constant 0 : index
    %18 = vector.load %arg4[%c0_18, %c0_19] : memref<32x128xbf16, #tpu.memory_space<vmem>>, vector<32x128xbf16>
    %c0_20 = arith.constant 0 : index
    %c0_21 = arith.constant 0 : index
    %19 = vector.load %arg7[%c0_20, %c0_21] : memref<32x128xbf16, #tpu.memory_space<vmem>>, vector<32x128xbf16>
    %c0_22 = arith.constant 0 : index
    %c0_23 = arith.constant 0 : index
    %20 = vector.load %arg9[%c0_22, %c0_23] : memref<32x128xbf16, #tpu.memory_space<vmem>>, vector<32x128xbf16>
    %c0_24 = arith.constant 0 : index
    %c0_25 = arith.constant 0 : index
    %21 = vector.load %arg10[%c0_24, %c0_25] : memref<1x128xf32, #tpu.memory_space<vmem>>, vector<1x128xf32>
    %cst_26 = arith.constant 0.000000e+00 : f32
    %22 = vector.broadcast %cst_26 : f32 to vector<16x32xf32>
    %c0_i32 = arith.constant 0 : i32
    %c16_i32 = arith.constant 16 : i32
    %23 = arith.muli %c0_i32, %c16_i32 : i32
    %24 = tpu.assume_multiple %23, 16 : i32
    %25 = arith.index_cast %24 : i32 to index
    %c0_27 = arith.constant 0 : index
    %26 = vector.load %arg12[%25, %c0_27] : memref<128x128xbf16, #tpu.memory_space<vmem>>, vector<16x128xbf16>
    %27 = arith.extf %26 : vector<16x128xbf16> to vector<16x128xf32>
    %28 = arith.truncf %22 : vector<16x32xf32> to vector<16x32xbf16>
    %cst_28 = arith.constant dense<0.000000e+00> : vector<16x128xf32>
    %29 = tpu.matmul %28, %18, %cst_28 {dimension_numbers = #tpu.dot_dimension_numbers<[1], [0], [0], [1], [0, 0, 1, 1], [], []>} : vector<16x32xbf16>, vector<32x128xbf16>, vector<16x128xf32> -> vector<16x128xf32>
    %30 = arith.addf %27, %29 : vector<16x128xf32>
    %31 = arith.negf %30 : vector<16x128xf32>
    %32 = math.exp %31 : vector<16x128xf32>
    %cst_29 = arith.constant 1.000000e+00 : f32
    %33 = vector.broadcast %cst_29 : f32 to vector<16x128xf32>
    %34 = arith.addf %33, %32 : vector<16x128xf32>
    %35 = arith.divf %33, %34 : vector<16x128xf32>
    %36 = vector.extract_strided_slice %35 {offsets = [0, 0], sizes = [16, 32], strides = [1, 1]} : vector<16x128xf32> to vector<16x32xf32>
    %37 = vector.extract_strided_slice %35 {offsets = [0, 32], sizes = [16, 32], strides = [1, 1]} : vector<16x128xf32> to vector<16x32xf32>
    %38 = vector.extract_strided_slice %35 {offsets = [0, 64], sizes = [16, 32], strides = [1, 1]} : vector<16x128xf32> to vector<16x32xf32>
    %cst_30 = arith.constant 2.000000e+00 : f32
    %39 = vector.broadcast %cst_30 : f32 to vector<16x32xf32>
    %40 = arith.mulf %39, %38 : vector<16x32xf32>
    %cst_31 = arith.constant 1.000000e+00 : f32
    %41 = vector.broadcast %cst_31 : f32 to vector<16x32xf32>
    %42 = arith.subf %40, %41 : vector<16x32xf32>
    %43 = vector.extract_strided_slice %35 {offsets = [0, 96], sizes = [16, 32], strides = [1, 1]} : vector<16x128xf32> to vector<16x32xf32>
    %44 = arith.mulf %37, %22 : vector<16x32xf32>
    %45 = arith.mulf %36, %42 : vector<16x32xf32>
    %46 = arith.addf %44, %45 : vector<16x32xf32>
    %47 = math.tanh %46 : vector<16x32xf32>
    %48 = arith.mulf %43, %47 : vector<16x32xf32>
    %c1_i32 = arith.constant 1 : i32
    %c16_i32_32 = arith.constant 16 : i32
    %49 = arith.muli %c1_i32, %c16_i32_32 : i32
    %50 = tpu.assume_multiple %49, 16 : i32
    %51 = arith.index_cast %50 : i32 to index
    %c0_33 = arith.constant 0 : index
    %52 = vector.load %arg12[%51, %c0_33] : memref<128x128xbf16, #tpu.memory_space<vmem>>, vector<16x128xbf16>
    %53 = arith.extf %52 : vector<16x128xbf16> to vector<16x128xf32>
    %54 = arith.truncf %48 : vector<16x32xf32> to vector<16x32xbf16>
    %cst_34 = arith.constant dense<0.000000e+00> : vector<16x128xf32>
    %55 = tpu.matmul %54, %18, %cst_34 {dimension_numbers = #tpu.dot_dimension_numbers<[1], [0], [0], [1], [0, 0, 1, 1], [], []>} : vector<16x32xbf16>, vector<32x128xbf16>, vector<16x128xf32> -> vector<16x128xf32>
    %56 = arith.addf %53, %55 : vector<16x128xf32>
    %57 = arith.negf %56 : vector<16x128xf32>
    %58 = math.exp %57 : vector<16x128xf32>
    %cst_35 = arith.constant 1.000000e+00 : f32
    %59 = vector.broadcast %cst_35 : f32 to vector<16x128xf32>
    %60 = arith.addf %59, %58 : vector<16x128xf32>
    %61 = arith.divf %59, %60 : vector<16x128xf32>
    %62 = vector.extract_strided_slice %61 {offsets = [0, 0], sizes = [16, 32], strides = [1, 1]} : vector<16x128xf32> to vector<16x32xf32>
    %63 = vector.extract_strided_slice %61 {offsets = [0, 32], sizes = [16, 32], strides = [1, 1]} : vector<16x128xf32> to vector<16x32xf32>
    %64 = vector.extract_strided_slice %61 {offsets = [0, 64], sizes = [16, 32], strides = [1, 1]} : vector<16x128xf32> to vector<16x32xf32>
    %cst_36 = arith.constant 2.000000e+00 : f32
    %65 = vector.broadcast %cst_36 : f32 to vector<16x32xf32>
    %66 = arith.mulf %65, %64 : vector<16x32xf32>
    %cst_37 = arith.constant 1.000000e+00 : f32
    %67 = vector.broadcast %cst_37 : f32 to vector<16x32xf32>
    %68 = arith.subf %66, %67 : vector<16x32xf32>
    %69 = vector.extract_strided_slice %61 {offsets = [0, 96], sizes = [16, 32], strides = [1, 1]} : vector<16x128xf32> to vector<16x32xf32>
    %70 = arith.mulf %63, %46 : vector<16x32xf32>
    %71 = arith.mulf %62, %68 : vector<16x32xf32>
    %72 = arith.addf %70, %71 : vector<16x32xf32>
    %73 = math.tanh %72 : vector<16x32xf32>
    %74 = arith.mulf %69, %73 : vector<16x32xf32>
    %c2_i32 = arith.constant 2 : i32
    %c16_i32_38 = arith.constant 16 : i32
    %75 = arith.muli %c2_i32, %c16_i32_38 : i32
    %76 = tpu.assume_multiple %75, 16 : i32
    %77 = arith.index_cast %76 : i32 to index
    %c0_39 = arith.constant 0 : index
    %78 = vector.load %arg12[%77, %c0_39] : memref<128x128xbf16, #tpu.memory_space<vmem>>, vector<16x128xbf16>
    %79 = arith.extf %78 : vector<16x128xbf16> to vector<16x128xf32>
    %80 = arith.truncf %74 : vector<16x32xf32> to vector<16x32xbf16>
    %cst_40 = arith.constant dense<0.000000e+00> : vector<16x128xf32>
    %81 = tpu.matmul %80, %18, %cst_40 {dimension_numbers = #tpu.dot_dimension_numbers<[1], [0], [0], [1], [0, 0, 1, 1], [], []>} : vector<16x32xbf16>, vector<32x128xbf16>, vector<16x128xf32> -> vector<16x128xf32>
    %82 = arith.addf %79, %81 : vector<16x128xf32>
    %83 = arith.negf %82 : vector<16x128xf32>
    %84 = math.exp %83 : vector<16x128xf32>
    %cst_41 = arith.constant 1.000000e+00 : f32
    %85 = vector.broadcast %cst_41 : f32 to vector<16x128xf32>
    %86 = arith.addf %85, %84 : vector<16x128xf32>
    %87 = arith.divf %85, %86 : vector<16x128xf32>
    %88 = vector.extract_strided_slice %87 {offsets = [0, 0], sizes = [16, 32], strides = [1, 1]} : vector<16x128xf32> to vector<16x32xf32>
    %89 = vector.extract_strided_slice %87 {offsets = [0, 32], sizes = [16, 32], strides = [1, 1]} : vector<16x128xf32> to vector<16x32xf32>
    %90 = vector.extract_strided_slice %87 {offsets = [0, 64], sizes = [16, 32], strides = [1, 1]} : vector<16x128xf32> to vector<16x32xf32>
    %cst_42 = arith.constant 2.000000e+00 : f32
    %91 = vector.broadcast %cst_42 : f32 to vector<16x32xf32>
    %92 = arith.mulf %91, %90 : vector<16x32xf32>
    %cst_43 = arith.constant 1.000000e+00 : f32
    %93 = vector.broadcast %cst_43 : f32 to vector<16x32xf32>
    %94 = arith.subf %92, %93 : vector<16x32xf32>
    %95 = vector.extract_strided_slice %87 {offsets = [0, 96], sizes = [16, 32], strides = [1, 1]} : vector<16x128xf32> to vector<16x32xf32>
    %96 = arith.mulf %89, %72 : vector<16x32xf32>
    %97 = arith.mulf %88, %94 : vector<16x32xf32>
    %98 = arith.addf %96, %97 : vector<16x32xf32>
    %99 = math.tanh %98 : vector<16x32xf32>
    %100 = arith.mulf %95, %99 : vector<16x32xf32>
    %c3_i32 = arith.constant 3 : i32
    %c16_i32_44 = arith.constant 16 : i32
    %101 = arith.muli %c3_i32, %c16_i32_44 : i32
    %102 = tpu.assume_multiple %101, 16 : i32
    %103 = arith.index_cast %102 : i32 to index
    %c0_45 = arith.constant 0 : index
    %104 = vector.load %arg12[%103, %c0_45] : memref<128x128xbf16, #tpu.memory_space<vmem>>, vector<16x128xbf16>
    %105 = arith.extf %104 : vector<16x128xbf16> to vector<16x128xf32>
    %106 = arith.truncf %100 : vector<16x32xf32> to vector<16x32xbf16>
    %cst_46 = arith.constant dense<0.000000e+00> : vector<16x128xf32>
    %107 = tpu.matmul %106, %18, %cst_46 {dimension_numbers = #tpu.dot_dimension_numbers<[1], [0], [0], [1], [0, 0, 1, 1], [], []>} : vector<16x32xbf16>, vector<32x128xbf16>, vector<16x128xf32> -> vector<16x128xf32>
    %108 = arith.addf %105, %107 : vector<16x128xf32>
    %109 = arith.negf %108 : vector<16x128xf32>
    %110 = math.exp %109 : vector<16x128xf32>
    %cst_47 = arith.constant 1.000000e+00 : f32
    %111 = vector.broadcast %cst_47 : f32 to vector<16x128xf32>
    %112 = arith.addf %111, %110 : vector<16x128xf32>
    %113 = arith.divf %111, %112 : vector<16x128xf32>
    %114 = vector.extract_strided_slice %113 {offsets = [0, 0], sizes = [16, 32], strides = [1, 1]} : vector<16x128xf32> to vector<16x32xf32>
    %115 = vector.extract_strided_slice %113 {offsets = [0, 32], sizes = [16, 32], strides = [1, 1]} : vector<16x128xf32> to vector<16x32xf32>
    %116 = vector.extract_strided_slice %113 {offsets = [0, 64], sizes = [16, 32], strides = [1, 1]} : vector<16x128xf32> to vector<16x32xf32>
    %cst_48 = arith.constant 2.000000e+00 : f32
    %117 = vector.broadcast %cst_48 : f32 to vector<16x32xf32>
    %118 = arith.mulf %117, %116 : vector<16x32xf32>
    %cst_49 = arith.constant 1.000000e+00 : f32
    %119 = vector.broadcast %cst_49 : f32 to vector<16x32xf32>
    %120 = arith.subf %118, %119 : vector<16x32xf32>
    %121 = vector.extract_strided_slice %113 {offsets = [0, 96], sizes = [16, 32], strides = [1, 1]} : vector<16x128xf32> to vector<16x32xf32>
    %122 = arith.mulf %115, %98 : vector<16x32xf32>
    %123 = arith.mulf %114, %120 : vector<16x32xf32>
    %124 = arith.addf %122, %123 : vector<16x32xf32>
    %125 = math.tanh %124 : vector<16x32xf32>
    %126 = arith.mulf %121, %125 : vector<16x32xf32>
    %c4_i32 = arith.constant 4 : i32
    %c16_i32_50 = arith.constant 16 : i32
    %127 = arith.muli %c4_i32, %c16_i32_50 : i32
    %128 = tpu.assume_multiple %127, 16 : i32
    %129 = arith.index_cast %128 : i32 to index
    %c0_51 = arith.constant 0 : index
    %130 = vector.load %arg12[%129, %c0_51] : memref<128x128xbf16, #tpu.memory_space<vmem>>, vector<16x128xbf16>
    %131 = arith.extf %130 : vector<16x128xbf16> to vector<16x128xf32>
    %132 = arith.truncf %126 : vector<16x32xf32> to vector<16x32xbf16>
    %cst_52 = arith.constant dense<0.000000e+00> : vector<16x128xf32>
    %133 = tpu.matmul %132, %18, %cst_52 {dimension_numbers = #tpu.dot_dimension_numbers<[1], [0], [0], [1], [0, 0, 1, 1], [], []>} : vector<16x32xbf16>, vector<32x128xbf16>, vector<16x128xf32> -> vector<16x128xf32>
    %134 = arith.addf %131, %133 : vector<16x128xf32>
    %135 = arith.negf %134 : vector<16x128xf32>
    %136 = math.exp %135 : vector<16x128xf32>
    %cst_53 = arith.constant 1.000000e+00 : f32
    %137 = vector.broadcast %cst_53 : f32 to vector<16x128xf32>
    %138 = arith.addf %137, %136 : vector<16x128xf32>
    %139 = arith.divf %137, %138 : vector<16x128xf32>
    %140 = vector.extract_strided_slice %139 {offsets = [0, 0], sizes = [16, 32], strides = [1, 1]} : vector<16x128xf32> to vector<16x32xf32>
    %141 = vector.extract_strided_slice %139 {offsets = [0, 32], sizes = [16, 32], strides = [1, 1]} : vector<16x128xf32> to vector<16x32xf32>
    %142 = vector.extract_strided_slice %139 {offsets = [0, 64], sizes = [16, 32], strides = [1, 1]} : vector<16x128xf32> to vector<16x32xf32>
    %cst_54 = arith.constant 2.000000e+00 : f32
    %143 = vector.broadcast %cst_54 : f32 to vector<16x32xf32>
    %144 = arith.mulf %143, %142 : vector<16x32xf32>
    %cst_55 = arith.constant 1.000000e+00 : f32
    %145 = vector.broadcast %cst_55 : f32 to vector<16x32xf32>
    %146 = arith.subf %144, %145 : vector<16x32xf32>
    %147 = vector.extract_strided_slice %139 {offsets = [0, 96], sizes = [16, 32], strides = [1, 1]} : vector<16x128xf32> to vector<16x32xf32>
    %148 = arith.mulf %141, %124 : vector<16x32xf32>
    %149 = arith.mulf %140, %146 : vector<16x32xf32>
    %150 = arith.addf %148, %149 : vector<16x32xf32>
    %151 = math.tanh %150 : vector<16x32xf32>
    %152 = arith.mulf %147, %151 : vector<16x32xf32>
    %c5_i32 = arith.constant 5 : i32
    %c16_i32_56 = arith.constant 16 : i32
    %153 = arith.muli %c5_i32, %c16_i32_56 : i32
    %154 = tpu.assume_multiple %153, 16 : i32
    %155 = arith.index_cast %154 : i32 to index
    %c0_57 = arith.constant 0 : index
    %156 = vector.load %arg12[%155, %c0_57] : memref<128x128xbf16, #tpu.memory_space<vmem>>, vector<16x128xbf16>
    %157 = arith.extf %156 : vector<16x128xbf16> to vector<16x128xf32>
    %158 = arith.truncf %152 : vector<16x32xf32> to vector<16x32xbf16>
    %cst_58 = arith.constant dense<0.000000e+00> : vector<16x128xf32>
    %159 = tpu.matmul %158, %18, %cst_58 {dimension_numbers = #tpu.dot_dimension_numbers<[1], [0], [0], [1], [0, 0, 1, 1], [], []>} : vector<16x32xbf16>, vector<32x128xbf16>, vector<16x128xf32> -> vector<16x128xf32>
    %160 = arith.addf %157, %159 : vector<16x128xf32>
    %161 = arith.negf %160 : vector<16x128xf32>
    %162 = math.exp %161 : vector<16x128xf32>
    %cst_59 = arith.constant 1.000000e+00 : f32
    %163 = vector.broadcast %cst_59 : f32 to vector<16x128xf32>
    %164 = arith.addf %163, %162 : vector<16x128xf32>
    %165 = arith.divf %163, %164 : vector<16x128xf32>
    %166 = vector.extract_strided_slice %165 {offsets = [0, 0], sizes = [16, 32], strides = [1, 1]} : vector<16x128xf32> to vector<16x32xf32>
    %167 = vector.extract_strided_slice %165 {offsets = [0, 32], sizes = [16, 32], strides = [1, 1]} : vector<16x128xf32> to vector<16x32xf32>
    %168 = vector.extract_strided_slice %165 {offsets = [0, 64], sizes = [16, 32], strides = [1, 1]} : vector<16x128xf32> to vector<16x32xf32>
    %cst_60 = arith.constant 2.000000e+00 : f32
    %169 = vector.broadcast %cst_60 : f32 to vector<16x32xf32>
    %170 = arith.mulf %169, %168 : vector<16x32xf32>
    %cst_61 = arith.constant 1.000000e+00 : f32
    %171 = vector.broadcast %cst_61 : f32 to vector<16x32xf32>
    %172 = arith.subf %170, %171 : vector<16x32xf32>
    %173 = vector.extract_strided_slice %165 {offsets = [0, 96], sizes = [16, 32], strides = [1, 1]} : vector<16x128xf32> to vector<16x32xf32>
    %174 = arith.mulf %167, %150 : vector<16x32xf32>
    %175 = arith.mulf %166, %172 : vector<16x32xf32>
    %176 = arith.addf %174, %175 : vector<16x32xf32>
    %177 = math.tanh %176 : vector<16x32xf32>
    %178 = arith.mulf %173, %177 : vector<16x32xf32>
    %c6_i32 = arith.constant 6 : i32
    %c16_i32_62 = arith.constant 16 : i32
    %179 = arith.muli %c6_i32, %c16_i32_62 : i32
    %180 = tpu.assume_multiple %179, 16 : i32
    %181 = arith.index_cast %180 : i32 to index
    %c0_63 = arith.constant 0 : index
    %182 = vector.load %arg12[%181, %c0_63] : memref<128x128xbf16, #tpu.memory_space<vmem>>, vector<16x128xbf16>
    %183 = arith.extf %182 : vector<16x128xbf16> to vector<16x128xf32>
    %184 = arith.truncf %178 : vector<16x32xf32> to vector<16x32xbf16>
    %cst_64 = arith.constant dense<0.000000e+00> : vector<16x128xf32>
    %185 = tpu.matmul %184, %18, %cst_64 {dimension_numbers = #tpu.dot_dimension_numbers<[1], [0], [0], [1], [0, 0, 1, 1], [], []>} : vector<16x32xbf16>, vector<32x128xbf16>, vector<16x128xf32> -> vector<16x128xf32>
    %186 = arith.addf %183, %185 : vector<16x128xf32>
    %187 = arith.negf %186 : vector<16x128xf32>
    %188 = math.exp %187 : vector<16x128xf32>
    %cst_65 = arith.constant 1.000000e+00 : f32
    %189 = vector.broadcast %cst_65 : f32 to vector<16x128xf32>
    %190 = arith.addf %189, %188 : vector<16x128xf32>
    %191 = arith.divf %189, %190 : vector<16x128xf32>
    %192 = vector.extract_strided_slice %191 {offsets = [0, 0], sizes = [16, 32], strides = [1, 1]} : vector<16x128xf32> to vector<16x32xf32>
    %193 = vector.extract_strided_slice %191 {offsets = [0, 32], sizes = [16, 32], strides = [1, 1]} : vector<16x128xf32> to vector<16x32xf32>
    %194 = vector.extract_strided_slice %191 {offsets = [0, 64], sizes = [16, 32], strides = [1, 1]} : vector<16x128xf32> to vector<16x32xf32>
    %cst_66 = arith.constant 2.000000e+00 : f32
    %195 = vector.broadcast %cst_66 : f32 to vector<16x32xf32>
    %196 = arith.mulf %195, %194 : vector<16x32xf32>
    %cst_67 = arith.constant 1.000000e+00 : f32
    %197 = vector.broadcast %cst_67 : f32 to vector<16x32xf32>
    %198 = arith.subf %196, %197 : vector<16x32xf32>
    %199 = vector.extract_strided_slice %191 {offsets = [0, 96], sizes = [16, 32], strides = [1, 1]} : vector<16x128xf32> to vector<16x32xf32>
    %200 = arith.mulf %193, %176 : vector<16x32xf32>
    %201 = arith.mulf %192, %198 : vector<16x32xf32>
    %202 = arith.addf %200, %201 : vector<16x32xf32>
    %203 = math.tanh %202 : vector<16x32xf32>
    %204 = arith.mulf %199, %203 : vector<16x32xf32>
    %c7_i32 = arith.constant 7 : i32
    %c16_i32_68 = arith.constant 16 : i32
    %205 = arith.muli %c7_i32, %c16_i32_68 : i32
    %206 = tpu.assume_multiple %205, 16 : i32
    %207 = arith.index_cast %206 : i32 to index
    %c0_69 = arith.constant 0 : index
    %208 = vector.load %arg12[%207, %c0_69] : memref<128x128xbf16, #tpu.memory_space<vmem>>, vector<16x128xbf16>
    %209 = arith.extf %208 : vector<16x128xbf16> to vector<16x128xf32>
    %210 = arith.truncf %204 : vector<16x32xf32> to vector<16x32xbf16>
    %cst_70 = arith.constant dense<0.000000e+00> : vector<16x128xf32>
    %211 = tpu.matmul %210, %18, %cst_70 {dimension_numbers = #tpu.dot_dimension_numbers<[1], [0], [0], [1], [0, 0, 1, 1], [], []>} : vector<16x32xbf16>, vector<32x128xbf16>, vector<16x128xf32> -> vector<16x128xf32>
    %212 = arith.addf %209, %211 : vector<16x128xf32>
    %213 = arith.negf %212 : vector<16x128xf32>
    %214 = math.exp %213 : vector<16x128xf32>
    %cst_71 = arith.constant 1.000000e+00 : f32
    %215 = vector.broadcast %cst_71 : f32 to vector<16x128xf32>
    %216 = arith.addf %215, %214 : vector<16x128xf32>
    %217 = arith.divf %215, %216 : vector<16x128xf32>
    %218 = vector.extract_strided_slice %217 {offsets = [0, 0], sizes = [16, 32], strides = [1, 1]} : vector<16x128xf32> to vector<16x32xf32>
    %219 = vector.extract_strided_slice %217 {offsets = [0, 32], sizes = [16, 32], strides = [1, 1]} : vector<16x128xf32> to vector<16x32xf32>
    %220 = vector.extract_strided_slice %217 {offsets = [0, 64], sizes = [16, 32], strides = [1, 1]} : vector<16x128xf32> to vector<16x32xf32>
    %cst_72 = arith.constant 2.000000e+00 : f32
    %221 = vector.broadcast %cst_72 : f32 to vector<16x32xf32>
    %222 = arith.mulf %221, %220 : vector<16x32xf32>
    %cst_73 = arith.constant 1.000000e+00 : f32
    %223 = vector.broadcast %cst_73 : f32 to vector<16x32xf32>
    %224 = arith.subf %222, %223 : vector<16x32xf32>
    %225 = vector.extract_strided_slice %217 {offsets = [0, 96], sizes = [16, 32], strides = [1, 1]} : vector<16x128xf32> to vector<16x32xf32>
    %226 = arith.mulf %219, %202 : vector<16x32xf32>
    %227 = arith.mulf %218, %224 : vector<16x32xf32>
    %228 = arith.addf %226, %227 : vector<16x32xf32>
    %229 = math.tanh %228 : vector<16x32xf32>
    %230 = arith.mulf %225, %229 : vector<16x32xf32>
    %c8_i32 = arith.constant 8 : i32
    %c0_i32_74 = arith.constant 0 : i32
    %c16_i32_75 = arith.constant 16 : i32
    %231 = arith.muli %c0_i32_74, %c16_i32_75 : i32
    %232 = tpu.assume_multiple %231, 16 : i32
    %233 = arith.index_cast %232 : i32 to index
    %c0_76 = arith.constant 0 : index
    %234 = vector.load %arg13[%233, %c0_76] : memref<128x128xbf16, #tpu.memory_space<vmem>>, vector<16x128xbf16>
    %235 = arith.extf %234 : vector<16x128xbf16> to vector<16x128xf32>
    %236 = arith.truncf %230 : vector<16x32xf32> to vector<16x32xbf16>
    %cst_77 = arith.constant dense<0.000000e+00> : vector<16x128xf32>
    %237 = tpu.matmul %236, %19, %cst_77 {dimension_numbers = #tpu.dot_dimension_numbers<[1], [0], [0], [1], [0, 0, 1, 1], [], []>} : vector<16x32xbf16>, vector<32x128xbf16>, vector<16x128xf32> -> vector<16x128xf32>
    %238 = arith.addf %235, %237 : vector<16x128xf32>
    %239 = arith.negf %238 : vector<16x128xf32>
    %240 = math.exp %239 : vector<16x128xf32>
    %cst_78 = arith.constant 1.000000e+00 : f32
    %241 = vector.broadcast %cst_78 : f32 to vector<16x128xf32>
    %242 = arith.addf %241, %240 : vector<16x128xf32>
    %243 = arith.divf %241, %242 : vector<16x128xf32>
    %244 = vector.extract_strided_slice %243 {offsets = [0, 0], sizes = [16, 32], strides = [1, 1]} : vector<16x128xf32> to vector<16x32xf32>
    %245 = vector.extract_strided_slice %243 {offsets = [0, 32], sizes = [16, 32], strides = [1, 1]} : vector<16x128xf32> to vector<16x32xf32>
    %246 = vector.extract_strided_slice %243 {offsets = [0, 64], sizes = [16, 32], strides = [1, 1]} : vector<16x128xf32> to vector<16x32xf32>
    %cst_79 = arith.constant 2.000000e+00 : f32
    %247 = vector.broadcast %cst_79 : f32 to vector<16x32xf32>
    %248 = arith.mulf %247, %246 : vector<16x32xf32>
    %cst_80 = arith.constant 1.000000e+00 : f32
    %249 = vector.broadcast %cst_80 : f32 to vector<16x32xf32>
    %250 = arith.subf %248, %249 : vector<16x32xf32>
    %251 = vector.extract_strided_slice %243 {offsets = [0, 96], sizes = [16, 32], strides = [1, 1]} : vector<16x128xf32> to vector<16x32xf32>
    %252 = arith.mulf %245, %228 : vector<16x32xf32>
    %253 = arith.mulf %244, %250 : vector<16x32xf32>
    %254 = arith.addf %252, %253 : vector<16x32xf32>
    %255 = math.tanh %254 : vector<16x32xf32>
    %256 = arith.mulf %251, %255 : vector<16x32xf32>
    %257 = arith.truncf %256 : vector<16x32xf32> to vector<16x32xbf16>
    %cst_81 = arith.constant dense<0.000000e+00> : vector<16x128xf32>
    %258 = tpu.matmul %257, %20, %cst_81 {dimension_numbers = #tpu.dot_dimension_numbers<[1], [0], [0], [1], [0, 0, 1, 1], [], []>} : vector<16x32xbf16>, vector<32x128xbf16>, vector<16x128xf32> -> vector<16x128xf32>
    %259 = vector.broadcast %21 : vector<1x128xf32> to vector<16x128xf32>
    %260 = arith.addf %258, %259 : vector<16x128xf32>
    %261 = math.tanh %260 : vector<16x128xf32>
    %c0_82 = arith.constant 0 : index
    %262 = arith.index_cast %232 : i32 to index
    %c0_83 = arith.constant 0 : index
    %263 = vector.load %arg11[%c0_82, %262, %c0_83] : memref<1x128x128xf32, #tpu.memory_space<vmem>>, vector<1x16x128xf32>
    %264 = vector.shape_cast %263 : vector<1x16x128xf32> to vector<16x128xf32>
    %265 = vector.shape_cast %261 : vector<16x128xf32> to vector<1x16x128xf32>
    tpu.vector_store %arg11[%c0_82, %262, %c0_83], %265 {strides = array<i32>} : memref<1x128x128xf32, #tpu.memory_space<vmem>>, vector<1x16x128xf32>,
    %c1_i32_84 = arith.constant 1 : i32
    %c16_i32_85 = arith.constant 16 : i32
    %266 = arith.muli %c1_i32_84, %c16_i32_85 : i32
    %267 = tpu.assume_multiple %266, 16 : i32
    %268 = arith.index_cast %267 : i32 to index
    %c0_86 = arith.constant 0 : index
    %269 = vector.load %arg13[%268, %c0_86] : memref<128x128xbf16, #tpu.memory_space<vmem>>, vector<16x128xbf16>
    %270 = arith.extf %269 : vector<16x128xbf16> to vector<16x128xf32>
    %271 = arith.truncf %256 : vector<16x32xf32> to vector<16x32xbf16>
    %cst_87 = arith.constant dense<0.000000e+00> : vector<16x128xf32>
    %272 = tpu.matmul %271, %19, %cst_87 {dimension_numbers = #tpu.dot_dimension_numbers<[1], [0], [0], [1], [0, 0, 1, 1], [], []>} : vector<16x32xbf16>, vector<32x128xbf16>, vector<16x128xf32> -> vector<16x128xf32>
    %273 = arith.addf %270, %272 : vector<16x128xf32>
    %274 = arith.negf %273 : vector<16x128xf32>
    %275 = math.exp %274 : vector<16x128xf32>
    %cst_88 = arith.constant 1.000000e+00 : f32
    %276 = vector.broadcast %cst_88 : f32 to vector<16x128xf32>
    %277 = arith.addf %276, %275 : vector<16x128xf32>
    %278 = arith.divf %276, %277 : vector<16x128xf32>
    %279 = vector.extract_strided_slice %278 {offsets = [0, 0], sizes = [16, 32], strides = [1, 1]} : vector<16x128xf32> to vector<16x32xf32>
    %280 = vector.extract_strided_slice %278 {offsets = [0, 32], sizes = [16, 32], strides = [1, 1]} : vector<16x128xf32> to vector<16x32xf32>
    %281 = vector.extract_strided_slice %278 {offsets = [0, 64], sizes = [16, 32], strides = [1, 1]} : vector<16x128xf32> to vector<16x32xf32>
    %cst_89 = arith.constant 2.000000e+00 : f32
    %282 = vector.broadcast %cst_89 : f32 to vector<16x32xf32>
    %283 = arith.mulf %282, %281 : vector<16x32xf32>
    %cst_90 = arith.constant 1.000000e+00 : f32
    %284 = vector.broadcast %cst_90 : f32 to vector<16x32xf32>
    %285 = arith.subf %283, %284 : vector<16x32xf32>
    %286 = vector.extract_strided_slice %278 {offsets = [0, 96], sizes = [16, 32], strides = [1, 1]} : vector<16x128xf32> to vector<16x32xf32>
    %287 = arith.mulf %280, %254 : vector<16x32xf32>
    %288 = arith.mulf %279, %285 : vector<16x32xf32>
    %289 = arith.addf %287, %288 : vector<16x32xf32>
    %290 = math.tanh %289 : vector<16x32xf32>
    %291 = arith.mulf %286, %290 : vector<16x32xf32>
    %292 = arith.truncf %291 : vector<16x32xf32> to vector<16x32xbf16>
    %cst_91 = arith.constant dense<0.000000e+00> : vector<16x128xf32>
    %293 = tpu.matmul %292, %20, %cst_91 {dimension_numbers = #tpu.dot_dimension_numbers<[1], [0], [0], [1], [0, 0, 1, 1], [], []>} : vector<16x32xbf16>, vector<32x128xbf16>, vector<16x128xf32> -> vector<16x128xf32>
    %294 = vector.broadcast %21 : vector<1x128xf32> to vector<16x128xf32>
    %295 = arith.addf %293, %294 : vector<16x128xf32>
    %296 = math.tanh %295 : vector<16x128xf32>
    %c0_92 = arith.constant 0 : index
    %297 = arith.index_cast %267 : i32 to index
    %c0_93 = arith.constant 0 : index
    %298 = vector.load %arg11[%c0_92, %297, %c0_93] : memref<1x128x128xf32, #tpu.memory_space<vmem>>, vector<1x16x128xf32>
    %299 = vector.shape_cast %298 : vector<1x16x128xf32> to vector<16x128xf32>
    %300 = vector.shape_cast %296 : vector<16x128xf32> to vector<1x16x128xf32>
    tpu.vector_store %arg11[%c0_92, %297, %c0_93], %300 {strides = array<i32>} : memref<1x128x128xf32, #tpu.memory_space<vmem>>, vector<1x16x128xf32>,
    %c2_i32_94 = arith.constant 2 : i32
    %c16_i32_95 = arith.constant 16 : i32
    %301 = arith.muli %c2_i32_94, %c16_i32_95 : i32
    %302 = tpu.assume_multiple %301, 16 : i32
    %303 = arith.index_cast %302 : i32 to index
    %c0_96 = arith.constant 0 : index
    %304 = vector.load %arg13[%303, %c0_96] : memref<128x128xbf16, #tpu.memory_space<vmem>>, vector<16x128xbf16>
    %305 = arith.extf %304 : vector<16x128xbf16> to vector<16x128xf32>
    %306 = arith.truncf %291 : vector<16x32xf32> to vector<16x32xbf16>
    %cst_97 = arith.constant dense<0.000000e+00> : vector<16x128xf32>
    %307 = tpu.matmul %306, %19, %cst_97 {dimension_numbers = #tpu.dot_dimension_numbers<[1], [0], [0], [1], [0, 0, 1, 1], [], []>} : vector<16x32xbf16>, vector<32x128xbf16>, vector<16x128xf32> -> vector<16x128xf32>
    %308 = arith.addf %305, %307 : vector<16x128xf32>
    %309 = arith.negf %308 : vector<16x128xf32>
    %310 = math.exp %309 : vector<16x128xf32>
    %cst_98 = arith.constant 1.000000e+00 : f32
    %311 = vector.broadcast %cst_98 : f32 to vector<16x128xf32>
    %312 = arith.addf %311, %310 : vector<16x128xf32>
    %313 = arith.divf %311, %312 : vector<16x128xf32>
    %314 = vector.extract_strided_slice %313 {offsets = [0, 0], sizes = [16, 32], strides = [1, 1]} : vector<16x128xf32> to vector<16x32xf32>
    %315 = vector.extract_strided_slice %313 {offsets = [0, 32], sizes = [16, 32], strides = [1, 1]} : vector<16x128xf32> to vector<16x32xf32>
    %316 = vector.extract_strided_slice %313 {offsets = [0, 64], sizes = [16, 32], strides = [1, 1]} : vector<16x128xf32> to vector<16x32xf32>
    %cst_99 = arith.constant 2.000000e+00 : f32
    %317 = vector.broadcast %cst_99 : f32 to vector<16x32xf32>
    %318 = arith.mulf %317, %316 : vector<16x32xf32>
    %cst_100 = arith.constant 1.000000e+00 : f32
    %319 = vector.broadcast %cst_100 : f32 to vector<16x32xf32>
    %320 = arith.subf %318, %319 : vector<16x32xf32>
    %321 = vector.extract_strided_slice %313 {offsets = [0, 96], sizes = [16, 32], strides = [1, 1]} : vector<16x128xf32> to vector<16x32xf32>
    %322 = arith.mulf %315, %289 : vector<16x32xf32>
    %323 = arith.mulf %314, %320 : vector<16x32xf32>
    %324 = arith.addf %322, %323 : vector<16x32xf32>
    %325 = math.tanh %324 : vector<16x32xf32>
    %326 = arith.mulf %321, %325 : vector<16x32xf32>
    %327 = arith.truncf %326 : vector<16x32xf32> to vector<16x32xbf16>
    %cst_101 = arith.constant dense<0.000000e+00> : vector<16x128xf32>
    %328 = tpu.matmul %327, %20, %cst_101 {dimension_numbers = #tpu.dot_dimension_numbers<[1], [0], [0], [1], [0, 0, 1, 1], [], []>} : vector<16x32xbf16>, vector<32x128xbf16>, vector<16x128xf32> -> vector<16x128xf32>
    %329 = vector.broadcast %21 : vector<1x128xf32> to vector<16x128xf32>
    %330 = arith.addf %328, %329 : vector<16x128xf32>
    %331 = math.tanh %330 : vector<16x128xf32>
    %c0_102 = arith.constant 0 : index
    %332 = arith.index_cast %302 : i32 to index
    %c0_103 = arith.constant 0 : index
    %333 = vector.load %arg11[%c0_102, %332, %c0_103] : memref<1x128x128xf32, #tpu.memory_space<vmem>>, vector<1x16x128xf32>
    %334 = vector.shape_cast %333 : vector<1x16x128xf32> to vector<16x128xf32>
    %335 = vector.shape_cast %331 : vector<16x128xf32> to vector<1x16x128xf32>
    tpu.vector_store %arg11[%c0_102, %332, %c0_103], %335 {strides = array<i32>} : memref<1x128x128xf32, #tpu.memory_space<vmem>>, vector<1x16x128xf32>,
    %c3_i32_104 = arith.constant 3 : i32
    %c16_i32_105 = arith.constant 16 : i32
    %336 = arith.muli %c3_i32_104, %c16_i32_105 : i32
    %337 = tpu.assume_multiple %336, 16 : i32
    %338 = arith.index_cast %337 : i32 to index
    %c0_106 = arith.constant 0 : index
    %339 = vector.load %arg13[%338, %c0_106] : memref<128x128xbf16, #tpu.memory_space<vmem>>, vector<16x128xbf16>
    %340 = arith.extf %339 : vector<16x128xbf16> to vector<16x128xf32>
    %341 = arith.truncf %326 : vector<16x32xf32> to vector<16x32xbf16>
    %cst_107 = arith.constant dense<0.000000e+00> : vector<16x128xf32>
    %342 = tpu.matmul %341, %19, %cst_107 {dimension_numbers = #tpu.dot_dimension_numbers<[1], [0], [0], [1], [0, 0, 1, 1], [], []>} : vector<16x32xbf16>, vector<32x128xbf16>, vector<16x128xf32> -> vector<16x128xf32>
    %343 = arith.addf %340, %342 : vector<16x128xf32>
    %344 = arith.negf %343 : vector<16x128xf32>
    %345 = math.exp %344 : vector<16x128xf32>
    %cst_108 = arith.constant 1.000000e+00 : f32
    %346 = vector.broadcast %cst_108 : f32 to vector<16x128xf32>
    %347 = arith.addf %346, %345 : vector<16x128xf32>
    %348 = arith.divf %346, %347 : vector<16x128xf32>
    %349 = vector.extract_strided_slice %348 {offsets = [0, 0], sizes = [16, 32], strides = [1, 1]} : vector<16x128xf32> to vector<16x32xf32>
    %350 = vector.extract_strided_slice %348 {offsets = [0, 32], sizes = [16, 32], strides = [1, 1]} : vector<16x128xf32> to vector<16x32xf32>
    %351 = vector.extract_strided_slice %348 {offsets = [0, 64], sizes = [16, 32], strides = [1, 1]} : vector<16x128xf32> to vector<16x32xf32>
    %cst_109 = arith.constant 2.000000e+00 : f32
    %352 = vector.broadcast %cst_109 : f32 to vector<16x32xf32>
    %353 = arith.mulf %352, %351 : vector<16x32xf32>
    %cst_110 = arith.constant 1.000000e+00 : f32
    %354 = vector.broadcast %cst_110 : f32 to vector<16x32xf32>
    %355 = arith.subf %353, %354 : vector<16x32xf32>
    %356 = vector.extract_strided_slice %348 {offsets = [0, 96], sizes = [16, 32], strides = [1, 1]} : vector<16x128xf32> to vector<16x32xf32>
    %357 = arith.mulf %350, %324 : vector<16x32xf32>
    %358 = arith.mulf %349, %355 : vector<16x32xf32>
    %359 = arith.addf %357, %358 : vector<16x32xf32>
    %360 = math.tanh %359 : vector<16x32xf32>
    %361 = arith.mulf %356, %360 : vector<16x32xf32>
    %362 = arith.truncf %361 : vector<16x32xf32> to vector<16x32xbf16>
    %cst_111 = arith.constant dense<0.000000e+00> : vector<16x128xf32>
    %363 = tpu.matmul %362, %20, %cst_111 {dimension_numbers = #tpu.dot_dimension_numbers<[1], [0], [0], [1], [0, 0, 1, 1], [], []>} : vector<16x32xbf16>, vector<32x128xbf16>, vector<16x128xf32> -> vector<16x128xf32>
    %364 = vector.broadcast %21 : vector<1x128xf32> to vector<16x128xf32>
    %365 = arith.addf %363, %364 : vector<16x128xf32>
    %366 = math.tanh %365 : vector<16x128xf32>
    %c0_112 = arith.constant 0 : index
    %367 = arith.index_cast %337 : i32 to index
    %c0_113 = arith.constant 0 : index
    %368 = vector.load %arg11[%c0_112, %367, %c0_113] : memref<1x128x128xf32, #tpu.memory_space<vmem>>, vector<1x16x128xf32>
    %369 = vector.shape_cast %368 : vector<1x16x128xf32> to vector<16x128xf32>
    %370 = vector.shape_cast %366 : vector<16x128xf32> to vector<1x16x128xf32>
    tpu.vector_store %arg11[%c0_112, %367, %c0_113], %370 {strides = array<i32>} : memref<1x128x128xf32, #tpu.memory_space<vmem>>, vector<1x16x128xf32>,
    %c4_i32_114 = arith.constant 4 : i32
    %c16_i32_115 = arith.constant 16 : i32
    %371 = arith.muli %c4_i32_114, %c16_i32_115 : i32
    %372 = tpu.assume_multiple %371, 16 : i32
    %373 = arith.index_cast %372 : i32 to index
    %c0_116 = arith.constant 0 : index
    %374 = vector.load %arg13[%373, %c0_116] : memref<128x128xbf16, #tpu.memory_space<vmem>>, vector<16x128xbf16>
    %375 = arith.extf %374 : vector<16x128xbf16> to vector<16x128xf32>
    %376 = arith.truncf %361 : vector<16x32xf32> to vector<16x32xbf16>
    %cst_117 = arith.constant dense<0.000000e+00> : vector<16x128xf32>
    %377 = tpu.matmul %376, %19, %cst_117 {dimension_numbers = #tpu.dot_dimension_numbers<[1], [0], [0], [1], [0, 0, 1, 1], [], []>} : vector<16x32xbf16>, vector<32x128xbf16>, vector<16x128xf32> -> vector<16x128xf32>
    %378 = arith.addf %375, %377 : vector<16x128xf32>
    %379 = arith.negf %378 : vector<16x128xf32>
    %380 = math.exp %379 : vector<16x128xf32>
    %cst_118 = arith.constant 1.000000e+00 : f32
    %381 = vector.broadcast %cst_118 : f32 to vector<16x128xf32>
    %382 = arith.addf %381, %380 : vector<16x128xf32>
    %383 = arith.divf %381, %382 : vector<16x128xf32>
    %384 = vector.extract_strided_slice %383 {offsets = [0, 0], sizes = [16, 32], strides = [1, 1]} : vector<16x128xf32> to vector<16x32xf32>
    %385 = vector.extract_strided_slice %383 {offsets = [0, 32], sizes = [16, 32], strides = [1, 1]} : vector<16x128xf32> to vector<16x32xf32>
    %386 = vector.extract_strided_slice %383 {offsets = [0, 64], sizes = [16, 32], strides = [1, 1]} : vector<16x128xf32> to vector<16x32xf32>
    %cst_119 = arith.constant 2.000000e+00 : f32
    %387 = vector.broadcast %cst_119 : f32 to vector<16x32xf32>
    %388 = arith.mulf %387, %386 : vector<16x32xf32>
    %cst_120 = arith.constant 1.000000e+00 : f32
    %389 = vector.broadcast %cst_120 : f32 to vector<16x32xf32>
    %390 = arith.subf %388, %389 : vector<16x32xf32>
    %391 = vector.extract_strided_slice %383 {offsets = [0, 96], sizes = [16, 32], strides = [1, 1]} : vector<16x128xf32> to vector<16x32xf32>
    %392 = arith.mulf %385, %359 : vector<16x32xf32>
    %393 = arith.mulf %384, %390 : vector<16x32xf32>
    %394 = arith.addf %392, %393 : vector<16x32xf32>
    %395 = math.tanh %394 : vector<16x32xf32>
    %396 = arith.mulf %391, %395 : vector<16x32xf32>
    %397 = arith.truncf %396 : vector<16x32xf32> to vector<16x32xbf16>
    %cst_121 = arith.constant dense<0.000000e+00> : vector<16x128xf32>
    %398 = tpu.matmul %397, %20, %cst_121 {dimension_numbers = #tpu.dot_dimension_numbers<[1], [0], [0], [1], [0, 0, 1, 1], [], []>} : vector<16x32xbf16>, vector<32x128xbf16>, vector<16x128xf32> -> vector<16x128xf32>
    %399 = vector.broadcast %21 : vector<1x128xf32> to vector<16x128xf32>
    %400 = arith.addf %398, %399 : vector<16x128xf32>
    %401 = math.tanh %400 : vector<16x128xf32>
    %c0_122 = arith.constant 0 : index
    %402 = arith.index_cast %372 : i32 to index
    %c0_123 = arith.constant 0 : index
    %403 = vector.load %arg11[%c0_122, %402, %c0_123] : memref<1x128x128xf32, #tpu.memory_space<vmem>>, vector<1x16x128xf32>
    %404 = vector.shape_cast %403 : vector<1x16x128xf32> to vector<16x128xf32>
    %405 = vector.shape_cast %401 : vector<16x128xf32> to vector<1x16x128xf32>
    tpu.vector_store %arg11[%c0_122, %402, %c0_123], %405 {strides = array<i32>} : memref<1x128x128xf32, #tpu.memory_space<vmem>>, vector<1x16x128xf32>,
    %c5_i32_124 = arith.constant 5 : i32
    %c16_i32_125 = arith.constant 16 : i32
    %406 = arith.muli %c5_i32_124, %c16_i32_125 : i32
    %407 = tpu.assume_multiple %406, 16 : i32
    %408 = arith.index_cast %407 : i32 to index
    %c0_126 = arith.constant 0 : index
    %409 = vector.load %arg13[%408, %c0_126] : memref<128x128xbf16, #tpu.memory_space<vmem>>, vector<16x128xbf16>
    %410 = arith.extf %409 : vector<16x128xbf16> to vector<16x128xf32>
    %411 = arith.truncf %396 : vector<16x32xf32> to vector<16x32xbf16>
    %cst_127 = arith.constant dense<0.000000e+00> : vector<16x128xf32>
    %412 = tpu.matmul %411, %19, %cst_127 {dimension_numbers = #tpu.dot_dimension_numbers<[1], [0], [0], [1], [0, 0, 1, 1], [], []>} : vector<16x32xbf16>, vector<32x128xbf16>, vector<16x128xf32> -> vector<16x128xf32>
    %413 = arith.addf %410, %412 : vector<16x128xf32>
    %414 = arith.negf %413 : vector<16x128xf32>
    %415 = math.exp %414 : vector<16x128xf32>
    %cst_128 = arith.constant 1.000000e+00 : f32
    %416 = vector.broadcast %cst_128 : f32 to vector<16x128xf32>
    %417 = arith.addf %416, %415 : vector<16x128xf32>
    %418 = arith.divf %416, %417 : vector<16x128xf32>
    %419 = vector.extract_strided_slice %418 {offsets = [0, 0], sizes = [16, 32], strides = [1, 1]} : vector<16x128xf32> to vector<16x32xf32>
    %420 = vector.extract_strided_slice %418 {offsets = [0, 32], sizes = [16, 32], strides = [1, 1]} : vector<16x128xf32> to vector<16x32xf32>
    %421 = vector.extract_strided_slice %418 {offsets = [0, 64], sizes = [16, 32], strides = [1, 1]} : vector<16x128xf32> to vector<16x32xf32>
    %cst_129 = arith.constant 2.000000e+00 : f32
    %422 = vector.broadcast %cst_129 : f32 to vector<16x32xf32>
    %423 = arith.mulf %422, %421 : vector<16x32xf32>
    %cst_130 = arith.constant 1.000000e+00 : f32
    %424 = vector.broadcast %cst_130 : f32 to vector<16x32xf32>
    %425 = arith.subf %423, %424 : vector<16x32xf32>
    %426 = vector.extract_strided_slice %418 {offsets = [0, 96], sizes = [16, 32], strides = [1, 1]} : vector<16x128xf32> to vector<16x32xf32>
    %427 = arith.mulf %420, %394 : vector<16x32xf32>
    %428 = arith.mulf %419, %425 : vector<16x32xf32>
    %429 = arith.addf %427, %428 : vector<16x32xf32>
    %430 = math.tanh %429 : vector<16x32xf32>
    %431 = arith.mulf %426, %430 : vector<16x32xf32>
    %432 = arith.truncf %431 : vector<16x32xf32> to vector<16x32xbf16>
    %cst_131 = arith.constant dense<0.000000e+00> : vector<16x128xf32>
    %433 = tpu.matmul %432, %20, %cst_131 {dimension_numbers = #tpu.dot_dimension_numbers<[1], [0], [0], [1], [0, 0, 1, 1], [], []>} : vector<16x32xbf16>, vector<32x128xbf16>, vector<16x128xf32> -> vector<16x128xf32>
    %434 = vector.broadcast %21 : vector<1x128xf32> to vector<16x128xf32>
    %435 = arith.addf %433, %434 : vector<16x128xf32>
    %436 = math.tanh %435 : vector<16x128xf32>
    %c0_132 = arith.constant 0 : index
    %437 = arith.index_cast %407 : i32 to index
    %c0_133 = arith.constant 0 : index
    %438 = vector.load %arg11[%c0_132, %437, %c0_133] : memref<1x128x128xf32, #tpu.memory_space<vmem>>, vector<1x16x128xf32>
    %439 = vector.shape_cast %438 : vector<1x16x128xf32> to vector<16x128xf32>
    %440 = vector.shape_cast %436 : vector<16x128xf32> to vector<1x16x128xf32>
    tpu.vector_store %arg11[%c0_132, %437, %c0_133], %440 {strides = array<i32>} : memref<1x128x128xf32, #tpu.memory_space<vmem>>, vector<1x16x128xf32>,
    %c6_i32_134 = arith.constant 6 : i32
    %c16_i32_135 = arith.constant 16 : i32
    %441 = arith.muli %c6_i32_134, %c16_i32_135 : i32
    %442 = tpu.assume_multiple %441, 16 : i32
    %443 = arith.index_cast %442 : i32 to index
    %c0_136 = arith.constant 0 : index
    %444 = vector.load %arg13[%443, %c0_136] : memref<128x128xbf16, #tpu.memory_space<vmem>>, vector<16x128xbf16>
    %445 = arith.extf %444 : vector<16x128xbf16> to vector<16x128xf32>
    %446 = arith.truncf %431 : vector<16x32xf32> to vector<16x32xbf16>
    %cst_137 = arith.constant dense<0.000000e+00> : vector<16x128xf32>
    %447 = tpu.matmul %446, %19, %cst_137 {dimension_numbers = #tpu.dot_dimension_numbers<[1], [0], [0], [1], [0, 0, 1, 1], [], []>} : vector<16x32xbf16>, vector<32x128xbf16>, vector<16x128xf32> -> vector<16x128xf32>
    %448 = arith.addf %445, %447 : vector<16x128xf32>
    %449 = arith.negf %448 : vector<16x128xf32>
    %450 = math.exp %449 : vector<16x128xf32>
    %cst_138 = arith.constant 1.000000e+00 : f32
    %451 = vector.broadcast %cst_138 : f32 to vector<16x128xf32>
    %452 = arith.addf %451, %450 : vector<16x128xf32>
    %453 = arith.divf %451, %452 : vector<16x128xf32>
    %454 = vector.extract_strided_slice %453 {offsets = [0, 0], sizes = [16, 32], strides = [1, 1]} : vector<16x128xf32> to vector<16x32xf32>
    %455 = vector.extract_strided_slice %453 {offsets = [0, 32], sizes = [16, 32], strides = [1, 1]} : vector<16x128xf32> to vector<16x32xf32>
    %456 = vector.extract_strided_slice %453 {offsets = [0, 64], sizes = [16, 32], strides = [1, 1]} : vector<16x128xf32> to vector<16x32xf32>
    %cst_139 = arith.constant 2.000000e+00 : f32
    %457 = vector.broadcast %cst_139 : f32 to vector<16x32xf32>
    %458 = arith.mulf %457, %456 : vector<16x32xf32>
    %cst_140 = arith.constant 1.000000e+00 : f32
    %459 = vector.broadcast %cst_140 : f32 to vector<16x32xf32>
    %460 = arith.subf %458, %459 : vector<16x32xf32>
    %461 = vector.extract_strided_slice %453 {offsets = [0, 96], sizes = [16, 32], strides = [1, 1]} : vector<16x128xf32> to vector<16x32xf32>
    %462 = arith.mulf %455, %429 : vector<16x32xf32>
    %463 = arith.mulf %454, %460 : vector<16x32xf32>
    %464 = arith.addf %462, %463 : vector<16x32xf32>
    %465 = math.tanh %464 : vector<16x32xf32>
    %466 = arith.mulf %461, %465 : vector<16x32xf32>
    %467 = arith.truncf %466 : vector<16x32xf32> to vector<16x32xbf16>
    %cst_141 = arith.constant dense<0.000000e+00> : vector<16x128xf32>
    %468 = tpu.matmul %467, %20, %cst_141 {dimension_numbers = #tpu.dot_dimension_numbers<[1], [0], [0], [1], [0, 0, 1, 1], [], []>} : vector<16x32xbf16>, vector<32x128xbf16>, vector<16x128xf32> -> vector<16x128xf32>
    %469 = vector.broadcast %21 : vector<1x128xf32> to vector<16x128xf32>
    %470 = arith.addf %468, %469 : vector<16x128xf32>
    %471 = math.tanh %470 : vector<16x128xf32>
    %c0_142 = arith.constant 0 : index
    %472 = arith.index_cast %442 : i32 to index
    %c0_143 = arith.constant 0 : index
    %473 = vector.load %arg11[%c0_142, %472, %c0_143] : memref<1x128x128xf32, #tpu.memory_space<vmem>>, vector<1x16x128xf32>
    %474 = vector.shape_cast %473 : vector<1x16x128xf32> to vector<16x128xf32>
    %475 = vector.shape_cast %471 : vector<16x128xf32> to vector<1x16x128xf32>
    tpu.vector_store %arg11[%c0_142, %472, %c0_143], %475 {strides = array<i32>} : memref<1x128x128xf32, #tpu.memory_space<vmem>>, vector<1x16x128xf32>,
    %c7_i32_144 = arith.constant 7 : i32
    %c16_i32_145 = arith.constant 16 : i32
    %476 = arith.muli %c7_i32_144, %c16_i32_145 : i32
    %477 = tpu.assume_multiple %476, 16 : i32
    %478 = arith.index_cast %477 : i32 to index
    %c0_146 = arith.constant 0 : index
    %479 = vector.load %arg13[%478, %c0_146] : memref<128x128xbf16, #tpu.memory_space<vmem>>, vector<16x128xbf16>
    %480 = arith.extf %479 : vector<16x128xbf16> to vector<16x128xf32>
    %481 = arith.truncf %466 : vector<16x32xf32> to vector<16x32xbf16>
    %cst_147 = arith.constant dense<0.000000e+00> : vector<16x128xf32>
    %482 = tpu.matmul %481, %19, %cst_147 {dimension_numbers = #tpu.dot_dimension_numbers<[1], [0], [0], [1], [0, 0, 1, 1], [], []>} : vector<16x32xbf16>, vector<32x128xbf16>, vector<16x128xf32> -> vector<16x128xf32>
    %483 = arith.addf %480, %482 : vector<16x128xf32>
    %484 = arith.negf %483 : vector<16x128xf32>
    %485 = math.exp %484 : vector<16x128xf32>
    %cst_148 = arith.constant 1.000000e+00 : f32
    %486 = vector.broadcast %cst_148 : f32 to vector<16x128xf32>
    %487 = arith.addf %486, %485 : vector<16x128xf32>
    %488 = arith.divf %486, %487 : vector<16x128xf32>
    %489 = vector.extract_strided_slice %488 {offsets = [0, 0], sizes = [16, 32], strides = [1, 1]} : vector<16x128xf32> to vector<16x32xf32>
    %490 = vector.extract_strided_slice %488 {offsets = [0, 32], sizes = [16, 32], strides = [1, 1]} : vector<16x128xf32> to vector<16x32xf32>
    %491 = vector.extract_strided_slice %488 {offsets = [0, 64], sizes = [16, 32], strides = [1, 1]} : vector<16x128xf32> to vector<16x32xf32>
    %cst_149 = arith.constant 2.000000e+00 : f32
    %492 = vector.broadcast %cst_149 : f32 to vector<16x32xf32>
    %493 = arith.mulf %492, %491 : vector<16x32xf32>
    %cst_150 = arith.constant 1.000000e+00 : f32
    %494 = vector.broadcast %cst_150 : f32 to vector<16x32xf32>
    %495 = arith.subf %493, %494 : vector<16x32xf32>
    %496 = vector.extract_strided_slice %488 {offsets = [0, 96], sizes = [16, 32], strides = [1, 1]} : vector<16x128xf32> to vector<16x32xf32>
    %497 = arith.mulf %490, %464 : vector<16x32xf32>
    %498 = arith.mulf %489, %495 : vector<16x32xf32>
    %499 = arith.addf %497, %498 : vector<16x32xf32>
    %500 = math.tanh %499 : vector<16x32xf32>
    %501 = arith.mulf %496, %500 : vector<16x32xf32>
    %502 = arith.truncf %501 : vector<16x32xf32> to vector<16x32xbf16>
    %cst_151 = arith.constant dense<0.000000e+00> : vector<16x128xf32>
    %503 = tpu.matmul %502, %20, %cst_151 {dimension_numbers = #tpu.dot_dimension_numbers<[1], [0], [0], [1], [0, 0, 1, 1], [], []>} : vector<16x32xbf16>, vector<32x128xbf16>, vector<16x128xf32> -> vector<16x128xf32>
    %504 = vector.broadcast %21 : vector<1x128xf32> to vector<16x128xf32>
    %505 = arith.addf %503, %504 : vector<16x128xf32>
    %506 = math.tanh %505 : vector<16x128xf32>
    %c0_152 = arith.constant 0 : index
    %507 = arith.index_cast %477 : i32 to index
    %c0_153 = arith.constant 0 : index
    %508 = vector.load %arg11[%c0_152, %507, %c0_153] : memref<1x128x128xf32, #tpu.memory_space<vmem>>, vector<1x16x128xf32>
    %509 = vector.shape_cast %508 : vector<1x16x128xf32> to vector<16x128xf32>
    %510 = vector.shape_cast %506 : vector<16x128xf32> to vector<1x16x128xf32>
    tpu.vector_store %arg11[%c0_152, %507, %c0_153], %510 {strides = array<i32>} : memref<1x128x128xf32, #tpu.memory_space<vmem>>, vector<1x16x128xf32>,
    %c8_i32_154 = arith.constant 8 : i32
    return
  }
  func.func @transform_0(%arg0: i32) -> (i32, i32, i32) {
    %c0_i32 = arith.constant 0 : i32
    %c0_i32_0 = arith.constant 0 : i32
    %c0_i32_1 = arith.constant 0 : i32
    return %arg0, %c0_i32, %c0_i32_0 : i32, i32, i32
  }
  func.func @transform_1(%arg0: i32) -> (i32, i32, i32) {
    %c0_i32 = arith.constant 0 : i32
    %c0_i32_0 = arith.constant 0 : i32
    %c0_i32_1 = arith.constant 0 : i32
    return %arg0, %c0_i32, %c0_i32_0 : i32, i32, i32
  }
  func.func @transform_2(%arg0: i32) -> (i32, i32) {
    %c0_i32 = arith.constant 0 : i32
    %c0_i32_0 = arith.constant 0 : i32
    %c0_i32_1 = arith.constant 0 : i32
    return %c0_i32, %c0_i32_0 : i32, i32
  }
  func.func @transform_3(%arg0: i32) -> (i32, i32) {
    %c0_i32 = arith.constant 0 : i32
    %c0_i32_0 = arith.constant 0 : i32
    %c0_i32_1 = arith.constant 0 : i32
    return %c0_i32, %c0_i32_0 : i32, i32
  }
  func.func @transform_4(%arg0: i32) -> (i32, i32) {
    %c0_i32 = arith.constant 0 : i32
    %c0_i32_0 = arith.constant 0 : i32
    %c0_i32_1 = arith.constant 0 : i32
    return %c0_i32, %c0_i32_0 : i32, i32
  }
  func.func @transform_5(%arg0: i32) -> (i32, i32) {
    %c0_i32 = arith.constant 0 : i32
    %c0_i32_0 = arith.constant 0 : i32
    %c0_i32_1 = arith.constant 0 : i32
    return %c0_i32, %c0_i32_0 : i32, i32
  }
  func.func @transform_6(%arg0: i32) -> (i32, i32) {
    %c0_i32 = arith.constant 0 : i32
    %c0_i32_0 = arith.constant 0 : i32
    %c0_i32_1 = arith.constant 0 : i32
    return %c0_i32, %c0_i32_0 : i32, i32
  }
  func.func @transform_7(%arg0: i32) -> (i32, i32) {
    %c0_i32 = arith.constant 0 : i32
    %c0_i32_0 = arith.constant 0 : i32
    %c0_i32_1 = arith.constant 0 : i32
    return %c0_i32, %c0_i32_0 : i32, i32
  }
  func.func @transform_8(%arg0: i32) -> (i32, i32) {
    %c0_i32 = arith.constant 0 : i32
    %c0_i32_0 = arith.constant 0 : i32
    %c0_i32_1 = arith.constant 0 : i32
    return %c0_i32, %c0_i32_0 : i32, i32
  }
  func.func @transform_9(%arg0: i32) -> (i32, i32) {
    %c0_i32 = arith.constant 0 : i32
    %c0_i32_0 = arith.constant 0 : i32
    %c0_i32_1 = arith.constant 0 : i32
    return %c0_i32, %c0_i32_0 : i32, i32
  }
  func.func @transform_10(%arg0: i32) -> (i32, i32, i32) {
    %c0_i32 = arith.constant 0 : i32
    %c0_i32_0 = arith.constant 0 : i32
    %c0_i32_1 = arith.constant 0 : i32
    return %arg0, %c0_i32, %c0_i32_0 : i32, i32, i32
  }
}

</mosaic_0001>

<llo_original>
// kernel: tpu_custom_call.1
$region0: #{tpu_custom_call.1}
  #allocation0 [shape = 'u32[]', space=smem, size = 0x4, offset = 0x4, fixed_abs, tag = 'smem constant byte address 0x4 - core index']
  #allocation1 [shape = 'u32[144,128]{1,0:T(1,128)}', space=vmem, size = 0x12000, scoped, tag = 'internal scratch']
  #allocation2 [shape = 'bf16[128,128]{1,0:T(16,128)(2,1)}', space=vmem, size = 0x8000, scoped, tag = 'scratch operand']
  #allocation3 [shape = 'bf16[128,128]{1,0:T(16,128)(2,1)}', space=vmem, size = 0x8000, scoped, tag = 'scratch operand']
  %s0 = inlined_call_operand.vmem [shape: bf16[1,128,16], index: 0, kind: input, shape index: {}]
  %s1 = inlined_call_operand.vmem [shape: bf16[1,128,16], index: 1, kind: input, shape index: {}]
  %s2 = inlined_call_operand.vmem [shape: bf16[16,128], index: 2, kind: input, shape index: {}]
  %s3 = inlined_call_operand.vmem [shape: bf16[32,128], index: 3, kind: input, shape index: {}]
  %s4 = inlined_call_operand.vmem [shape: f32[1,128], index: 4, kind: input, shape index: {}]
  %s5 = inlined_call_operand.vmem [shape: bf16[16,128], index: 5, kind: input, shape index: {}]
  %s6 = inlined_call_operand.vmem [shape: bf16[32,128], index: 6, kind: input, shape index: {}]
  %s7 = inlined_call_operand.vmem [shape: f32[1,128], index: 7, kind: input, shape index: {}]
  %s8 = inlined_call_operand.vmem [shape: bf16[32,128], index: 8, kind: input, shape index: {}]
  %s9 = inlined_call_operand.vmem [shape: f32[1,128], index: 9, kind: input, shape index: {}]
  %s10 = inlined_call_operand.hbm [shape: f32[1,128,128], index: 10, kind: output, shape index: {}]
  %s11 = sld [smem:[#allocation0]]
  $region50: #{tpu_custom_call.1} parent=0
    _
  %s13 = ssub.s32 1, %s11
  %s14 = scalar_select 0, %s13, %s11
  $region1: #{tpu_custom_call.1} parent=0
    #allocation4 [shape = 'u8[65536]{0}', space=vmem, size = 0x10000, scoped, tag = 'output window, operand 0, single buffered']
    #allocation5 [shape = 's32[1]{0}', space=sflag, size = 0x4, scoped, tag = 'scoped memory for tpu_custom_call.1']
    %15 = vsyncpa [#allocation5], 0
    // Predicated region
    $region2: #{tpu_custom_call.1} parent=1 // pred_check
      _
    $region3: #{tpu_custom_call.1} parent=1 // pred_check_branch
      %17 = sbr.rel (0) target = $region5
    $region4: #{tpu_custom_call.1} parent=1 // pred_region
      _
    $region5: #{tpu_custom_call.1} parent=1 // pred_fallthru
      _
    // Predicated region
    $region6: #{tpu_custom_call.1} parent=1 // pred_check
      _
    $region7: #{tpu_custom_call.1} parent=1 // pred_check_branch
      %19 = sbr.rel (0) target = $region9
    $region8: #{tpu_custom_call.1} parent=1 // pred_region
      _
    $region9: #{tpu_custom_call.1} parent=1 // pred_fallthru
      _
    // Predicated region
    $region10: #{tpu_custom_call.1} parent=1 // pred_check
      _
    $region11: #{tpu_custom_call.1} parent=1 // pred_check_branch
      %21 = sbr.rel (0) target = $region13
    $region12: #{tpu_custom_call.1} parent=1 // pred_region
      _
    $region13: #{tpu_custom_call.1} parent=1 // pred_fallthru
      _
    // Predicated region
    $region14: #{tpu_custom_call.1} parent=1 // pred_check
      _
    $region15: #{tpu_custom_call.1} parent=1 // pred_check_branch
      %23 = sbr.rel (0) target = $region17
    $region16: #{tpu_custom_call.1} parent=1 // pred_region
      _
    $region17: #{tpu_custom_call.1} parent=1 // pred_fallthru
      _
    // Predicated region
    $region18: #{tpu_custom_call.1} parent=1 // pred_check
      _
    $region19: #{tpu_custom_call.1} parent=1 // pred_check_branch
      %25 = sbr.rel (0) target = $region21
    $region20: #{tpu_custom_call.1} parent=1 // pred_region
      _
    $region21: #{tpu_custom_call.1} parent=1 // pred_fallthru
      _
    // Predicated region
    $region22: #{tpu_custom_call.1} parent=1 // pred_check
      _
    $region23: #{tpu_custom_call.1} parent=1 // pred_check_branch
      %27 = sbr.rel (0) target = $region25
    $region24: #{tpu_custom_call.1} parent=1 // pred_region
      _
    $region25: #{tpu_custom_call.1} parent=1 // pred_fallthru
      _
    // Predicated region
    $region26: #{tpu_custom_call.1} parent=1 // pred_check
      _
    $region27: #{tpu_custom_call.1} parent=1 // pred_check_branch
      %29 = sbr.rel (0) target = $region29
    $region28: #{tpu_custom_call.1} parent=1 // pred_region
      _
    $region29: #{tpu_custom_call.1} parent=1 // pred_fallthru
      _
    // Predicated region
    $region30: #{tpu_custom_call.1} parent=1 // pred_check
      _
    $region31: #{tpu_custom_call.1} parent=1 // pred_check_branch
      %31 = sbr.rel (0) target = $region33
    $region32: #{tpu_custom_call.1} parent=1 // pred_region
      _
    $region33: #{tpu_custom_call.1} parent=1 // pred_fallthru
      _
    // Predicated region
    $region34: #{tpu_custom_call.1} parent=1 // pred_check
      _
    $region35: #{tpu_custom_call.1} parent=1 // pred_check_branch
      %33 = sbr.rel (0) target = $region37
    $region36: #{tpu_custom_call.1} parent=1 // pred_region
      _
    $region37: #{tpu_custom_call.1} parent=1 // pred_fallthru
      _
    // Predicated region
    $region38: #{tpu_custom_call.1} parent=1 // pred_check
      _
    $region39: #{tpu_custom_call.1} parent=1 // pred_check_branch
      %35 = sbr.rel (0) target = $region41
    $region40: #{tpu_custom_call.1} parent=1 // pred_region
      _
    $region41: #{tpu_custom_call.1} parent=1 // pred_fallthru
      _
    %v37 = vld [vmem:[%s0] sm:$0xf]
    %v38 = vld [vmem:[%s0 + $0x4] sm:$0xf]
    %v39 = vld [vmem:[%s0 + $0x8] sm:$0xf]
    %v40 = vld [vmem:[%s0 + $0xc] sm:$0xf]
    %v41 = vld [vmem:[%s0 + $0x10] sm:$0xf]
    %v42 = vld [vmem:[%s0 + $0x14] sm:$0xf]
    %v43 = vld [vmem:[%s0 + $0x18] sm:$0xf]
    %v44 = vld [vmem:[%s0 + $0x1c] sm:$0xf]
    %v45 = vld [vmem:[%s0 + $0x20] sm:$0xf]
    %v46 = vld [vmem:[%s0 + $0x24] sm:$0xf]
    %v47 = vld [vmem:[%s0 + $0x28] sm:$0xf]
    %v48 = vld [vmem:[%s0 + $0x2c] sm:$0xf]
    %v49 = vld [vmem:[%s0 + $0x30] sm:$0xf]
    %v50 = vld [vmem:[%s0 + $0x34] sm:$0xf]
    %v51 = vld [vmem:[%s0 + $0x38] sm:$0xf]
    %v52 = vld [vmem:[%s0 + $0x3c] sm:$0xf]
    %v53 = vld [vmem:[%s2] sm:$0xf]
    %v54 = vld [vmem:[%s2 + $0x4] sm:$0xf]
    %v55 = vld [vmem:[%s4] sm:$0x1]
    %v57 = vlaneseq
    %v58 = vshrl.u32 %v57, 7
    %v59 = vsub.s32 0, %v58
    %v60 = vrot.slane %v55, %v59
    %v78 = vunpack.c.l.b16 %v37
    %v79 = vunpack.c.l.b16 %v38
    %v80 = vunpack.c.l.b16 %v39
    %v81 = vunpack.c.l.b16 %v40
    %v82 = vunpack.c.l.b16 %v41
    %v83 = vunpack.c.l.b16 %v42
    %v84 = vunpack.c.l.b16 %v43
    %v85 = vunpack.c.l.b16 %v44
    %v86 = vunpack.c.l.b16 %v45
    %v87 = vunpack.c.l.b16 %v46
    %v88 = vunpack.c.l.b16 %v47
    %v89 = vunpack.c.l.b16 %v48
    %v90 = vunpack.c.l.b16 %v49
    %v91 = vunpack.c.l.b16 %v50
    %v92 = vunpack.c.l.b16 %v51
    %v93 = vunpack.c.l.b16 %v52
    %v94 = vpack.c.b16 %v79, %v78
    %v95 = vpack.c.b16 %v81, %v80
    %v96 = vpack.c.b16 %v83, %v82
    %v97 = vpack.c.b16 %v85, %v84
    %v98 = vpack.c.b16 %v87, %v86
    %v99 = vpack.c.b16 %v89, %v88
    %v100 = vpack.c.b16 %v91, %v90
    %v101 = vpack.c.b16 %v93, %v92
    %v104 = vunpack.c.l.b16 %v53
    %v105 = vunpack.c.l.b16 %v54
    %v106 = vpack.c.b16 %v105, %v104
    %vm108 = vcmask 130048
    %v110 = vsel %vm108, %v94, 0
    %v113 = vsel %vm108, %v95, 0
    %v116 = vsel %vm108, %v96, 0
    %v119 = vsel %vm108, %v97, 0
    %v122 = vsel %vm108, %v98, 0
    %v125 = vsel %vm108, %v99, 0
    %v128 = vsel %vm108, %v100, 0
    %v131 = vsel %vm108, %v101, 0
    %133 = vmatprep.subr.bf16.mxu0 0
    %134 = vmatpush1.bf16.msra.mxu0 %v106
    %135 = vmatprep.subr.bf16.mxu0 0
    %136 = vmatpush1.bf16.msra.mxu0 0
    %137 = vmatprep.subr.bf16.mxu0 0
    %138 = vmatpush1.bf16.msra.mxu0 0
    %139 = vmatprep.subr.bf16.mxu0 0
    %140 = vmatpush1.bf16.msra.mxu0 0
    %141 = vmatprep.subr.bf16.mxu0 0
    %142 = vmatpush1.bf16.msra.mxu0 0
    %143 = vmatprep.subr.bf16.mxu0 0
    %144 = vmatpush1.bf16.msra.mxu0 0
    %145 = vmatprep.subr.bf16.mxu0 0
    %146 = vmatpush1.bf16.msra.mxu0 0
    %147 = vmatprep.subr.bf16.mxu0 0
    %148 = vmatpush1.bf16.msra.mxu0 0
    %149 = vmatprep.subr.bf16.mxu0 0
    %150 = vmatpush1.bf16.msra.mxu0 0
    %151 = vmatprep.subr.bf16.mxu0 0
    %152 = vmatpush1.bf16.msra.mxu0 0
    %153 = vmatprep.subr.bf16.mxu0 0
    %154 = vmatpush1.bf16.msra.mxu0 0
    %155 = vmatprep.subr.bf16.mxu0 0
    %156 = vmatpush1.bf16.msra.mxu0 0
    %157 = vmatprep.subr.bf16.mxu0 0
    %158 = vmatpush1.bf16.msra.mxu0 0
    %159 = vmatprep.subr.bf16.mxu0 0
    %160 = vmatpush1.bf16.msra.mxu0 0
    %161 = vmatprep.subr.bf16.mxu0 0
    %162 = vmatpush1.bf16.msra.mxu0 0
    %163 = vmatprep.subr.bf16.mxu0 0
    %164 = vmatpush1.bf16.msra.mxu0 0
    %165 = vmatprep.mubr.bf16.mxu0 0
    %166 = vmatmul.mubr.bf16.gmra.mrb[0].mxu0 %v110
    %v167 = vpop.f32.mrb[0].mxu0
    %v168 = vadd.f32 %v60, %v167
    %v169 = vpop.f32.mrb[0].mxu0
    %v170 = vpop.f32.mrb[0].mxu0
    %v171 = vadd.f32 %v60, %v170
    %v172 = vpop.f32.mrb[0].mxu0
    %173 = vmatprep.mubr.bf16.mxu0 0
    %174 = vmatmul.mubr.bf16.gmra.mrb[0].mxu0 %v113
    %v175 = vpop.f32.mrb[0].mxu0
    %v176 = vadd.f32 %v60, %v175
    %v177 = vpop.f32.mrb[0].mxu0
    %v178 = vpop.f32.mrb[0].mxu0
    %v179 = vadd.f32 %v60, %v178
    %v180 = vpop.f32.mrb[0].mxu0
    %181 = vmatprep.mubr.bf16.mxu0 0
    %182 = vmatmul.mubr.bf16.gmra.mrb[0].mxu0 %v116
    %v183 = vpop.f32.mrb[0].mxu0
    %v184 = vadd.f32 %v60, %v183
    %v185 = vpop.f32.mrb[0].mxu0
    %v186 = vpop.f32.mrb[0].mxu0
    %v187 = vadd.f32 %v60, %v186
    %v188 = vpop.f32.mrb[0].mxu0
    %189 = vmatprep.mubr.bf16.mxu0 0
    %190 = vmatmul.mubr.bf16.gmra.mrb[0].mxu0 %v119
    %v191 = vpop.f32.mrb[0].mxu0
    %v192 = vadd.f32 %v60, %v191
    %v193 = vpop.f32.mrb[0].mxu0
    %v194 = vpop.f32.mrb[0].mxu0
    %v195 = vadd.f32 %v60, %v194
    %v196 = vpop.f32.mrb[0].mxu0
    %197 = vmatprep.mubr.bf16.mxu0 0
    %198 = vmatmul.mubr.bf16.gmra.mrb[0].mxu0 %v122
    %v199 = vpop.f32.mrb[0].mxu0
    %v200 = vadd.f32 %v60, %v199
    %v201 = vpop.f32.mrb[0].mxu0
    %v202 = vpop.f32.mrb[0].mxu0
    %v203 = vadd.f32 %v60, %v202
    %v204 = vpop.f32.mrb[0].mxu0
    %205 = vmatprep.mubr.bf16.mxu0 0
    %206 = vmatmul.mubr.bf16.gmra.mrb[0].mxu0 %v125
    %v207 = vpop.f32.mrb[0].mxu0
    %v208 = vadd.f32 %v60, %v207
    %v209 = vpop.f32.mrb[0].mxu0
    %v210 = vpop.f32.mrb[0].mxu0
    %v211 = vadd.f32 %v60, %v210
    %v212 = vpop.f32.mrb[0].mxu0
    %213 = vmatprep.mubr.bf16.mxu0 0
    %214 = vmatmul.mubr.bf16.gmra.mrb[0].mxu0 %v128
    %v215 = vpop.f32.mrb[0].mxu0
    %v216 = vadd.f32 %v60, %v215
    %v217 = vpop.f32.mrb[0].mxu0
    %v218 = vpop.f32.mrb[0].mxu0
    %v219 = vadd.f32 %v60, %v218
    %v220 = vpop.f32.mrb[0].mxu0
    %221 = vmatprep.mubr.bf16.mxu0 0
    %222 = vmatmul.mubr.bf16.gmra.mrb[0].mxu0 %v131
    %v223 = vpop.f32.mrb[0].mxu0
    %v224 = vadd.f32 %v60, %v223
    %v225 = vpop.f32.mrb[0].mxu0
    %v226 = vpop.f32.mrb[0].mxu0
    %v227 = vadd.f32 %v60, %v226
    %v228 = vpop.f32.mrb[0].mxu0
    %229 = vdwg.mxu0
    %v230 = vpack.c.bf16 %v171, %v168
    %v231 = vpack.c.bf16 %v179, %v176
    %v232 = vpack.c.bf16 %v187, %v184
    %v233 = vpack.c.bf16 %v195, %v192
    %v234 = vpack.c.bf16 %v203, %v200
    %v235 = vpack.c.bf16 %v211, %v208
    %v236 = vpack.c.bf16 %v219, %v216
    %v237 = vpack.c.bf16 %v227, %v224
    %238 = vst [vmem:[#allocation2] sm:$0xff] %v230
    %239 = vst [vmem:[#allocation2 + $0x8] sm:$0xff] %v231
    %240 = vst [vmem:[#allocation2 + $0x10] sm:$0xff] %v232
    %241 = vst [vmem:[#allocation2 + $0x18] sm:$0xff] %v233
    %242 = vst [vmem:[#allocation2 + $0x20] sm:$0xff] %v234
    %243 = vst [vmem:[#allocation2 + $0x28] sm:$0xff] %v235
    %244 = vst [vmem:[#allocation2 + $0x30] sm:$0xff] %v236
    %245 = vst [vmem:[#allocation2 + $0x38] sm:$0xff] %v237
    %v246 = vld [vmem:[%s1] sm:$0xf]
    %v247 = vld [vmem:[%s1 + $0x4] sm:$0xf]
    %v248 = vld [vmem:[%s1 + $0x8] sm:$0xf]
    %v249 = vld [vmem:[%s1 + $0xc] sm:$0xf]
    %v250 = vld [vmem:[%s1 + $0x10] sm:$0xf]
    %v251 = vld [vmem:[%s1 + $0x14] sm:$0xf]
    %v252 = vld [vmem:[%s1 + $0x18] sm:$0xf]
    %v253 = vld [vmem:[%s1 + $0x1c] sm:$0xf]
    %v254 = vld [vmem:[%s1 + $0x20] sm:$0xf]
    %v255 = vld [vmem:[%s1 + $0x24] sm:$0xf]
    %v256 = vld [vmem:[%s1 + $0x28] sm:$0xf]
    %v257 = vld [vmem:[%s1 + $0x2c] sm:$0xf]
    %v258 = vld [vmem:[%s1 + $0x30] sm:$0xf]
    %v259 = vld [vmem:[%s1 + $0x34] sm:$0xf]
    %v260 = vld [vmem:[%s1 + $0x38] sm:$0xf]
    %v261 = vld [vmem:[%s1 + $0x3c] sm:$0xf]
    %v262 = vld [vmem:[%s5] sm:$0xf]
    %v263 = vld [vmem:[%s5 + $0x4] sm:$0xf]
    %v264 = vld [vmem:[%s7] sm:$0x1]
    %v266 = vlaneseq
    %v267 = vshrl.u32 %v266, 7
    %v268 = vsub.s32 0, %v267
    %v269 = vrot.slane %v264, %v268
    %v287 = vunpack.c.l.b16 %v246
    %v288 = vunpack.c.l.b16 %v247
    %v289 = vunpack.c.l.b16 %v248
    %v290 = vunpack.c.l.b16 %v249
    %v291 = vunpack.c.l.b16 %v250
    %v292 = vunpack.c.l.b16 %v251
    %v293 = vunpack.c.l.b16 %v252
    %v294 = vunpack.c.l.b16 %v253
    %v295 = vunpack.c.l.b16 %v254
    %v296 = vunpack.c.l.b16 %v255
    %v297 = vunpack.c.l.b16 %v256
    %v298 = vunpack.c.l.b16 %v257
    %v299 = vunpack.c.l.b16 %v258
    %v300 = vunpack.c.l.b16 %v259
    %v301 = vunpack.c.l.b16 %v260
    %v302 = vunpack.c.l.b16 %v261
    %v303 = vpack.c.b16 %v288, %v287
    %v304 = vpack.c.b16 %v290, %v289
    %v305 = vpack.c.b16 %v292, %v291
    %v306 = vpack.c.b16 %v294, %v293
    %v307 = vpack.c.b16 %v296, %v295
    %v308 = vpack.c.b16 %v298, %v297
    %v309 = vpack.c.b16 %v300, %v299
    %v310 = vpack.c.b16 %v302, %v301
    %v313 = vunpack.c.l.b16 %v262
    %v314 = vunpack.c.l.b16 %v263
    %v315 = vpack.c.b16 %v314, %v313
    %v318 = vsel %vm108, %v303, 0
    %v321 = vsel %vm108, %v304, 0
    %v324 = vsel %vm108, %v305, 0
    %v327 = vsel %vm108, %v306, 0
    %v330 = vsel %vm108, %v307, 0
    %v333 = vsel %vm108, %v308, 0
    %v336 = vsel %vm108, %v309, 0
    %v339 = vsel %vm108, %v310, 0
    %341 = vmatprep.subr.bf16.mxu0 0
    %342 = vmatpush1.bf16.msra.mxu0 %v315
    %343 = vmatprep.subr.bf16.mxu0 0
    %344 = vmatpush1.bf16.msra.mxu0 0
    %345 = vmatprep.subr.bf16.mxu0 0
    %346 = vmatpush1.bf16.msra.mxu0 0
    %347 = vmatprep.subr.bf16.mxu0 0
    %348 = vmatpush1.bf16.msra.mxu0 0
    %349 = vmatprep.subr.bf16.mxu0 0
    %350 = vmatpush1.bf16.msra.mxu0 0
    %351 = vmatprep.subr.bf16.mxu0 0
    %352 = vmatpush1.bf16.msra.mxu0 0
    %353 = vmatprep.subr.bf16.mxu0 0
    %354 = vmatpush1.bf16.msra.mxu0 0
    %355 = vmatprep.subr.bf16.mxu0 0
    %356 = vmatpush1.bf16.msra.mxu0 0
    %357 = vmatprep.subr.bf16.mxu0 0
    %358 = vmatpush1.bf16.msra.mxu0 0
    %359 = vmatprep.subr.bf16.mxu0 0
    %360 = vmatpush1.bf16.msra.mxu0 0
    %361 = vmatprep.subr.bf16.mxu0 0
    %362 = vmatpush1.bf16.msra.mxu0 0
    %363 = vmatprep.subr.bf16.mxu0 0
    %364 = vmatpush1.bf16.msra.mxu0 0
    %365 = vmatprep.subr.bf16.mxu0 0
    %366 = vmatpush1.bf16.msra.mxu0 0
    %367 = vmatprep.subr.bf16.mxu0 0
    %368 = vmatpush1.bf16.msra.mxu0 0
    %369 = vmatprep.subr.bf16.mxu0 0
    %370 = vmatpush1.bf16.msra.mxu0 0
    %371 = vmatprep.subr.bf16.mxu0 0
    %372 = vmatpush1.bf16.msra.mxu0 0
    %373 = vmatprep.mubr.bf16.mxu0 0
    %374 = vmatmul.mubr.bf16.gmra.mrb[0].mxu0 %v318
    %v375 = vpop.f32.mrb[0].mxu0
    %v376 = vadd.f32 %v269, %v375
    %v377 = vpop.f32.mrb[0].mxu0
    %v378 = vpop.f32.mrb[0].mxu0
    %v379 = vadd.f32 %v269, %v378
    %v380 = vpop.f32.mrb[0].mxu0
    %381 = vmatprep.mubr.bf16.mxu0 0
    %382 = vmatmul.mubr.bf16.gmra.mrb[0].mxu0 %v321
    %v383 = vpop.f32.mrb[0].mxu0
    %v384 = vadd.f32 %v269, %v383
    %v385 = vpop.f32.mrb[0].mxu0
    %v386 = vpop.f32.mrb[0].mxu0
    %v387 = vadd.f32 %v269, %v386
    %v388 = vpop.f32.mrb[0].mxu0
    %389 = vmatprep.mubr.bf16.mxu0 0
    %390 = vmatmul.mubr.bf16.gmra.mrb[0].mxu0 %v324
    %v391 = vpop.f32.mrb[0].mxu0
    %v392 = vadd.f32 %v269, %v391
    %v393 = vpop.f32.mrb[0].mxu0
    %v394 = vpop.f32.mrb[0].mxu0
    %v395 = vadd.f32 %v269, %v394
    %v396 = vpop.f32.mrb[0].mxu0
    %397 = vmatprep.mubr.bf16.mxu0 0
    %398 = vmatmul.mubr.bf16.gmra.mrb[0].mxu0 %v327
    %v399 = vpop.f32.mrb[0].mxu0
    %v400 = vadd.f32 %v269, %v399
    %v401 = vpop.f32.mrb[0].mxu0
    %v402 = vpop.f32.mrb[0].mxu0
    %v403 = vadd.f32 %v269, %v402
    %v404 = vpop.f32.mrb[0].mxu0
    %405 = vmatprep.mubr.bf16.mxu0 0
    %406 = vmatmul.mubr.bf16.gmra.mrb[0].mxu0 %v330
    %v407 = vpop.f32.mrb[0].mxu0
    %v408 = vadd.f32 %v269, %v407
    %v409 = vpop.f32.mrb[0].mxu0
    %v410 = vpop.f32.mrb[0].mxu0
    %v411 = vadd.f32 %v269, %v410
    %v412 = vpop.f32.mrb[0].mxu0
    %413 = vmatprep.mubr.bf16.mxu0 0
    %414 = vmatmul.mubr.bf16.gmra.mrb[0].mxu0 %v333
    %v415 = vpop.f32.mrb[0].mxu0
    %v416 = vadd.f32 %v269, %v415
    %v417 = vpop.f32.mrb[0].mxu0
    %v418 = vpop.f32.mrb[0].mxu0
    %v419 = vadd.f32 %v269, %v418
    %v420 = vpop.f32.mrb[0].mxu0
    %421 = vmatprep.mubr.bf16.mxu0 0
    %422 = vmatmul.mubr.bf16.gmra.mrb[0].mxu0 %v336
    %v423 = vpop.f32.mrb[0].mxu0
    %v424 = vadd.f32 %v269, %v423
    %v425 = vpop.f32.mrb[0].mxu0
    %v426 = vpop.f32.mrb[0].mxu0
    %v427 = vadd.f32 %v269, %v426
    %v428 = vpop.f32.mrb[0].mxu0
    %429 = vmatprep.mubr.bf16.mxu0 0
    %430 = vmatmul.mubr.bf16.gmra.mrb[0].mxu0 %v339
    %v431 = vpop.f32.mrb[0].mxu0
    %v432 = vadd.f32 %v269, %v431
    %v433 = vpop.f32.mrb[0].mxu0
    %v434 = vpop.f32.mrb[0].mxu0
    %v435 = vadd.f32 %v269, %v434
    %v436 = vpop.f32.mrb[0].mxu0
    %437 = vdwg.mxu0
    %v438 = vpack.c.bf16 %v379, %v376
    %v439 = vpack.c.bf16 %v387, %v384
    %v440 = vpack.c.bf16 %v395, %v392
    %v441 = vpack.c.bf16 %v403, %v400
    %v442 = vpack.c.bf16 %v411, %v408
    %v443 = vpack.c.bf16 %v419, %v416
    %v444 = vpack.c.bf16 %v427, %v424
    %v445 = vpack.c.bf16 %v435, %v432
    %446 = vst [vmem:[#allocation3] sm:$0xff] %v438
    %447 = vst [vmem:[#allocation3 + $0x8] sm:$0xff] %v439
    %448 = vst [vmem:[#allocation3 + $0x10] sm:$0xff] %v440
    %449 = vst [vmem:[#allocation3 + $0x18] sm:$0xff] %v441
    %450 = vst [vmem:[#allocation3 + $0x20] sm:$0xff] %v442
    %451 = vst [vmem:[#allocation3 + $0x28] sm:$0xff] %v443
    %452 = vst [vmem:[#allocation3 + $0x30] sm:$0xff] %v444
    %453 = vst [vmem:[#allocation3 + $0x38] sm:$0xff] %v445
    %v454 = vld [vmem:[%s3] sm:$0xf]
    %v455 = vld [vmem:[%s3 + $0x4] sm:$0xf]
    %v456 = vld [vmem:[%s3 + $0x8] sm:$0xf]
    %v457 = vld [vmem:[%s3 + $0xc] sm:$0xf]
    %v458 = vld [vmem:[%s6] sm:$0xf]
    %v459 = vld [vmem:[%s6 + $0x4] sm:$0xf]
    %v460 = vld [vmem:[%s6 + $0x8] sm:$0xf]
    %v461 = vld [vmem:[%s6 + $0xc] sm:$0xf]
    %v462 = vld [vmem:[%s8] sm:$0xf]
    %v463 = vld [vmem:[%s8 + $0x4] sm:$0xf]
    %v464 = vld [vmem:[%s8 + $0x8] sm:$0xf]
    %v465 = vld [vmem:[%s8 + $0xc] sm:$0xf]
    %v466 = vld [vmem:[%s9] sm:$0x1]
    %v467 = vld [vmem:[#allocation2] sm:$0xff]
    %v468 = vunpack.c.l.bf16 %v467
    %v469 = vunpack.c.h.bf16 %v467
    %v474 = vunpack.c.l.b16 %v454
    %v475 = vunpack.c.l.b16 %v455
    %v476 = vunpack.c.l.b16 %v456
    %v477 = vunpack.c.l.b16 %v457
    %v478 = vpack.c.b16 %v475, %v474
    %v479 = vpack.c.b16 %v477, %v476
    %vm482 = vcmask 261120
    %v484 = vsel %vm482, 0, 0
    %486 = vmatprep.subr.bf16.mxu0 0
    %487 = vmatpush1.bf16.msra.mxu0 %v478
    %488 = vmatprep.subr.bf16.mxu0 0
    %489 = vmatpush1.bf16.msra.mxu0 %v479
    %490 = vmatprep.subr.bf16.mxu0 0
    %491 = vmatpush1.bf16.msra.mxu0 0
    %492 = vmatprep.subr.bf16.mxu0 0
    %493 = vmatpush1.bf16.msra.mxu0 0
    %494 = vmatprep.subr.bf16.mxu0 0
    %495 = vmatpush1.bf16.msra.mxu0 0
    %496 = vmatprep.subr.bf16.mxu0 0
    %497 = vmatpush1.bf16.msra.mxu0 0
    %498 = vmatprep.subr.bf16.mxu0 0
    %499 = vmatpush1.bf16.msra.mxu0 0
    %500 = vmatprep.subr.bf16.mxu0 0
    %501 = vmatpush1.bf16.msra.mxu0 0
    %502 = vmatprep.subr.bf16.mxu0 0
    %503 = vmatpush1.bf16.msra.mxu0 0
    %504 = vmatprep.subr.bf16.mxu0 0
    %505 = vmatpush1.bf16.msra.mxu0 0
    %506 = vmatprep.subr.bf16.mxu0 0
    %507 = vmatpush1.bf16.msra.mxu0 0
    %508 = vmatprep.subr.bf16.mxu0 0
    %509 = vmatpush1.bf16.msra.mxu0 0
    %510 = vmatprep.subr.bf16.mxu0 0
    %511 = vmatpush1.bf16.msra.mxu0 0
    %512 = vmatprep.subr.bf16.mxu0 0
    %513 = vmatpush1.bf16.msra.mxu0 0
    %514 = vmatprep.subr.bf16.mxu0 0
    %515 = vmatpush1.bf16.msra.mxu0 0
    %516 = vmatprep.subr.bf16.mxu0 0
    %517 = vmatpush1.bf16.msra.mxu0 0
    %518 = vmatprep.mubr.bf16.mxu0 0
    %519 = vmatmul.mubr.bf16.gmra.mrb[0].mxu0 %v484
    %v520 = vpop.f32.mrb[0].mxu0
    %v521 = vadd.f32 0.0, %v520
    %v522 = vpop.f32.mrb[0].mxu0
    %v523 = vpop.f32.mrb[0].mxu0
    %v524 = vadd.f32 0.0, %v523
    %v525 = vpop.f32.mrb[0].mxu0
    %526 = vdwg.mxu0
    %v527 = vadd.f32 %v468, %v521
    %v528 = vadd.f32 %v469, %v524
    %v529 = vxor.u32 %v527, 2147483648
    %v530 = vxor.u32 %v528, 2147483648
    %v531 = vmul.f32 %v529, 1.442695
    %v532 = vpow.pop %v531
    %v533 = vmul.f32 %v530, 1.442695
    %v534 = vpow.pop %v533
    %v535 = vadd.f32 %v532, 1.0
    %v536 = vadd.f32 %v534, 1.0
    %v537 = vrcp.pop %v535
    %v538 = vmul.f32 1.0, %v537
    %v539 = vrcp.pop %v536
    %v540 = vmul.f32 1.0, %v539
    %v541 = vmul.f32 %v538, 2.0
    %v542 = vmul.f32 %v540, 2.0
    %v543 = vsub.f32 %v541, 1.0
    %v544 = vsub.f32 %v542, 1.0
    %v545 = vmul.f32 %v538, 0.0
    %v546 = vmul.f32 %v540, 0.0
    %549 = vrot.lane.b32.xlu0 %v543, 64
    %v550 = vpop.permute.xlu0 %549
    %551 = vrot.lane.b32.xlu0 %v544, 64
    %v552 = vpop.permute.xlu0 %551
    %v555 = vmul.f32 %v538, %v550
    %v556 = vmul.f32 %v540, %v552
    %559 = vrot.lane.b32.xlu0 %v555, 32
    %v560 = vpop.permute.xlu0 %559
    %561 = vrot.lane.b32.xlu0 %v556, 32
    %v562 = vpop.permute.xlu0 %561
    %v565 = vadd.f32 %v545, %v560
    %v566 = vadd.f32 %v546, %v562
    %v567 = vtanh.pop %v565
    %v568 = vtanh.pop %v566
    %571 = vrot.lane.b32.xlu0 %v567, 64
    %v572 = vpop.permute.xlu0 %571
    %573 = vrot.lane.b32.xlu0 %v568, 64
    %v574 = vpop.permute.xlu0 %573
    %v577 = vmul.f32 %v538, %v572
    %v578 = vmul.f32 %v540, %v574
    %s579 = scalar_lea.vmem [#allocation2], 8
    %v580 = vld [vmem:[%s579] sm:$0xff]
    %v581 = vunpack.c.l.bf16 %v580
    %v582 = vunpack.c.h.bf16 %v580
    %v583 = vpack.c.bf16 %v578, %v577
    %585 = vrot.lane.b32.xlu0 %v583, 32
    %v586 = vpop.permute.xlu0 %585
    %v588 = vsel %vm482, %v586, 0
    %590 = vmatprep.subr.bf16.mxu0 0
    %591 = vmatpush1.bf16.msra.mxu0 %v478
    %592 = vmatprep.subr.bf16.mxu0 0
    %593 = vmatpush1.bf16.msra.mxu0 %v479
    %594 = vmatprep.subr.bf16.mxu0 0
    %595 = vmatpush1.bf16.msra.mxu0 0
    %596 = vmatprep.subr.bf16.mxu0 0
    %597 = vmatpush1.bf16.msra.mxu0 0
    %598 = vmatprep.subr.bf16.mxu0 0
    %599 = vmatpush1.bf16.msra.mxu0 0
    %600 = vmatprep.subr.bf16.mxu0 0
    %601 = vmatpush1.bf16.msra.mxu0 0
    %602 = vmatprep.subr.bf16.mxu0 0
    %603 = vmatpush1.bf16.msra.mxu0 0
    %604 = vmatprep.subr.bf16.mxu0 0
    %605 = vmatpush1.bf16.msra.mxu0 0
    %606 = vmatprep.subr.bf16.mxu0 0
    %607 = vmatpush1.bf16.msra.mxu0 0
    %608 = vmatprep.subr.bf16.mxu0 0
    %609 = vmatpush1.bf16.msra.mxu0 0
    %610 = vmatprep.subr.bf16.mxu0 0
    %611 = vmatpush1.bf16.msra.mxu0 0
    %612 = vmatprep.subr.bf16.mxu0 0
    %613 = vmatpush1.bf16.msra.mxu0 0
    %614 = vmatprep.subr.bf16.mxu0 0
    %615 = vmatpush1.bf16.msra.mxu0 0
    %616 = vmatprep.subr.bf16.mxu0 0
    %617 = vmatpush1.bf16.msra.mxu0 0
    %618 = vmatprep.subr.bf16.mxu0 0
    %619 = vmatpush1.bf16.msra.mxu0 0
    %620 = vmatprep.subr.bf16.mxu0 0
    %621 = vmatpush1.bf16.msra.mxu0 0
    %622 = vmatprep.mubr.bf16.mxu0 0
    %623 = vmatmul.mubr.bf16.gmra.mrb[0].mxu0 %v588
    %v624 = vpop.f32.mrb[0].mxu0
    %v625 = vadd.f32 0.0, %v624
    %v626 = vpop.f32.mrb[0].mxu0
    %v627 = vpop.f32.mrb[0].mxu0
    %v628 = vadd.f32 0.0, %v627
    %v629 = vpop.f32.mrb[0].mxu0
    %630 = vdwg.mxu0
    %v631 = vadd.f32 %v581, %v625
    %v632 = vadd.f32 %v582, %v628
    %v633 = vxor.u32 %v631, 2147483648
    %v634 = vxor.u32 %v632, 2147483648
    %v635 = vmul.f32 %v633, 1.442695
    %v636 = vpow.pop %v635
    %v637 = vmul.f32 %v634, 1.442695
    %v638 = vpow.pop %v637
    %v639 = vadd.f32 %v636, 1.0
    %v640 = vadd.f32 %v638, 1.0
    %v641 = vrcp.pop %v639
    %v642 = vmul.f32 1.0, %v641
    %v643 = vrcp.pop %v640
    %v644 = vmul.f32 1.0, %v643
    %v645 = vmul.f32 %v642, 2.0
    %v646 = vmul.f32 %v644, 2.0
    %v647 = vsub.f32 %v645, 1.0
    %v648 = vsub.f32 %v646, 1.0
    %v649 = vmul.f32 %v642, %v565
    %v650 = vmul.f32 %v644, %v566
    %653 = vrot.lane.b32.xlu0 %v647, 64
    %v654 = vpop.permute.xlu0 %653
    %655 = vrot.lane.b32.xlu0 %v648, 64
    %v656 = vpop.permute.xlu0 %655
    %v659 = vmul.f32 %v642, %v654
    %v660 = vmul.f32 %v644, %v656
    %663 = vrot.lane.b32.xlu0 %v659, 32
    %v664 = vpop.permute.xlu0 %663
    %665 = vrot.lane.b32.xlu0 %v660, 32
    %v666 = vpop.permute.xlu0 %665
    %v669 = vadd.f32 %v649, %v664
    %v670 = vadd.f32 %v650, %v666
    %v671 = vtanh.pop %v669
    %v672 = vtanh.pop %v670
    %675 = vrot.lane.b32.xlu0 %v671, 64
    %v676 = vpop.permute.xlu0 %675
    %677 = vrot.lane.b32.xlu0 %v672, 64
    %v678 = vpop.permute.xlu0 %677
    %v681 = vmul.f32 %v642, %v676
    %v682 = vmul.f32 %v644, %v678
    %s683 = scalar_lea.vmem [#allocation2], 16
    %v684 = vld [vmem:[%s683] sm:$0xff]
    %v685 = vunpack.c.l.bf16 %v684
    %v686 = vunpack.c.h.bf16 %v684
    %v687 = vpack.c.bf16 %v682, %v681
    %689 = vrot.lane.b32.xlu0 %v687, 32
    %v690 = vpop.permute.xlu0 %689
    %v692 = vsel %vm482, %v690, 0
    %694 = vmatprep.subr.bf16.mxu0 0
    %695 = vmatpush1.bf16.msra.mxu0 %v478
    %696 = vmatprep.subr.bf16.mxu0 0
    %697 = vmatpush1.bf16.msra.mxu0 %v479
    %698 = vmatprep.subr.bf16.mxu0 0
    %699 = vmatpush1.bf16.msra.mxu0 0
    %700 = vmatprep.subr.bf16.mxu0 0
    %701 = vmatpush1.bf16.msra.mxu0 0
    %702 = vmatprep.subr.bf16.mxu0 0
    %703 = vmatpush1.bf16.msra.mxu0 0
    %704 = vmatprep.subr.bf16.mxu0 0
    %705 = vmatpush1.bf16.msra.mxu0 0
    %706 = vmatprep.subr.bf16.mxu0 0
    %707 = vmatpush1.bf16.msra.mxu0 0
    %708 = vmatprep.subr.bf16.mxu0 0
    %709 = vmatpush1.bf16.msra.mxu0 0
    %710 = vmatprep.subr.bf16.mxu0 0
    %711 = vmatpush1.bf16.msra.mxu0 0
    %712 = vmatprep.subr.bf16.mxu0 0
    %713 = vmatpush1.bf16.msra.mxu0 0
    %714 = vmatprep.subr.bf16.mxu0 0
    %715 = vmatpush1.bf16.msra.mxu0 0
    %716 = vmatprep.subr.bf16.mxu0 0
    %717 = vmatpush1.bf16.msra.mxu0 0
    %718 = vmatprep.subr.bf16.mxu0 0
    %719 = vmatpush1.bf16.msra.mxu0 0
    %720 = vmatprep.subr.bf16.mxu0 0
    %721 = vmatpush1.bf16.msra.mxu0 0
    %722 = vmatprep.subr.bf16.mxu0 0
    %723 = vmatpush1.bf16.msra.mxu0 0
    %724 = vmatprep.subr.bf16.mxu0 0
    %725 = vmatpush1.bf16.msra.mxu0 0
    %726 = vmatprep.mubr.bf16.mxu0 0
    %727 = vmatmul.mubr.bf16.gmra.mrb[0].mxu0 %v692
    %v728 = vpop.f32.mrb[0].mxu0
    %v729 = vadd.f32 0.0, %v728
    %v730 = vpop.f32.mrb[0].mxu0
    %v731 = vpop.f32.mrb[0].mxu0
    %v732 = vadd.f32 0.0, %v731
    %v733 = vpop.f32.mrb[0].mxu0
    %734 = vdwg.mxu0
    %v735 = vadd.f32 %v685, %v729
    %v736 = vadd.f32 %v686, %v732
    %v737 = vxor.u32 %v735, 2147483648
    %v738 = vxor.u32 %v736, 2147483648
    %v739 = vmul.f32 %v737, 1.442695
    %v740 = vpow.pop %v739
    %v741 = vmul.f32 %v738, 1.442695
    %v742 = vpow.pop %v741
    %v743 = vadd.f32 %v740, 1.0
    %v744 = vadd.f32 %v742, 1.0
    %v745 = vrcp.pop %v743
    %v746 = vmul.f32 1.0, %v745
    %v747 = vrcp.pop %v744
    %v748 = vmul.f32 1.0, %v747
    %v749 = vmul.f32 %v746, 2.0
    %v750 = vmul.f32 %v748, 2.0
    %v751 = vsub.f32 %v749, 1.0
    %v752 = vsub.f32 %v750, 1.0
    %v753 = vmul.f32 %v746, %v669
    %v754 = vmul.f32 %v748, %v670
    %757 = vrot.lane.b32.xlu0 %v751, 64
    %v758 = vpop.permute.xlu0 %757
    %759 = vrot.lane.b32.xlu0 %v752, 64
    %v760 = vpop.permute.xlu0 %759
    %v763 = vmul.f32 %v746, %v758
    %v764 = vmul.f32 %v748, %v760
    %767 = vrot.lane.b32.xlu0 %v763, 32
    %v768 = vpop.permute.xlu0 %767
    %769 = vrot.lane.b32.xlu0 %v764, 32
    %v770 = vpop.permute.xlu0 %769
    %v773 = vadd.f32 %v753, %v768
    %v774 = vadd.f32 %v754, %v770
    %v775 = vtanh.pop %v773
    %v776 = vtanh.pop %v774
    %779 = vrot.lane.b32.xlu0 %v775, 64
    %v780 = vpop.permute.xlu0 %779
    %781 = vrot.lane.b32.xlu0 %v776, 64
    %v782 = vpop.permute.xlu0 %781
    %v785 = vmul.f32 %v746, %v780
    %v786 = vmul.f32 %v748, %v782
    %s787 = scalar_lea.vmem [#allocation2], 24
    %v788 = vld [vmem:[%s787] sm:$0xff]
    %v789 = vunpack.c.l.bf16 %v788
    %v790 = vunpack.c.h.bf16 %v788
    %v791 = vpack.c.bf16 %v786, %v785
    %793 = vrot.lane.b32.xlu0 %v791, 32
    %v794 = vpop.permute.xlu0 %793
    %v796 = vsel %vm482, %v794, 0
    %798 = vmatprep.subr.bf16.mxu0 0
    %799 = vmatpush1.bf16.msra.mxu0 %v478
    %800 = vmatprep.subr.bf16.mxu0 0
    %801 = vmatpush1.bf16.msra.mxu0 %v479
    %802 = vmatprep.subr.bf16.mxu0 0
    %803 = vmatpush1.bf16.msra.mxu0 0
    %804 = vmatprep.subr.bf16.mxu0 0
    %805 = vmatpush1.bf16.msra.mxu0 0
    %806 = vmatprep.subr.bf16.mxu0 0
    %807 = vmatpush1.bf16.msra.mxu0 0
    %808 = vmatprep.subr.bf16.mxu0 0
    %809 = vmatpush1.bf16.msra.mxu0 0
    %810 = vmatprep.subr.bf16.mxu0 0
    %811 = vmatpush1.bf16.msra.mxu0 0
    %812 = vmatprep.subr.bf16.mxu0 0
    %813 = vmatpush1.bf16.msra.mxu0 0
    %814 = vmatprep.subr.bf16.mxu0 0
    %815 = vmatpush1.bf16.msra.mxu0 0
    %816 = vmatprep.subr.bf16.mxu0 0
    %817 = vmatpush1.bf16.msra.mxu0 0
    %818 = vmatprep.subr.bf16.mxu0 0
    %819 = vmatpush1.bf16.msra.mxu0 0
    %820 = vmatprep.subr.bf16.mxu0 0
    %821 = vmatpush1.bf16.msra.mxu0 0
    %822 = vmatprep.subr.bf16.mxu0 0
    %823 = vmatpush1.bf16.msra.mxu0 0
    %824 = vmatprep.subr.bf16.mxu0 0
    %825 = vmatpush1.bf16.msra.mxu0 0
    %826 = vmatprep.subr.bf16.mxu0 0
    %827 = vmatpush1.bf16.msra.mxu0 0
    %828 = vmatprep.subr.bf16.mxu0 0
    %829 = vmatpush1.bf16.msra.mxu0 0
    %830 = vmatprep.mubr.bf16.mxu0 0
    %831 = vmatmul.mubr.bf16.gmra.mrb[0].mxu0 %v796
    %v832 = vpop.f32.mrb[0].mxu0
    %v833 = vadd.f32 0.0, %v832
    %v834 = vpop.f32.mrb[0].mxu0
    %v835 = vpop.f32.mrb[0].mxu0
    %v836 = vadd.f32 0.0, %v835
    %v837 = vpop.f32.mrb[0].mxu0
    %838 = vdwg.mxu0
    %v839 = vadd.f32 %v789, %v833
    %v840 = vadd.f32 %v790, %v836
    %v841 = vxor.u32 %v839, 2147483648
    %v842 = vxor.u32 %v840, 2147483648
    %v843 = vmul.f32 %v841, 1.442695
    %v844 = vpow.pop %v843
    %v845 = vmul.f32 %v842, 1.442695
    %v846 = vpow.pop %v845
    %v847 = vadd.f32 %v844, 1.0
    %v848 = vadd.f32 %v846, 1.0
    %v849 = vrcp.pop %v847
    %v850 = vmul.f32 1.0, %v849
    %v851 = vrcp.pop %v848
    %v852 = vmul.f32 1.0, %v851
    %v853 = vmul.f32 %v850, 2.0
    %v854 = vmul.f32 %v852, 2.0
    %v855 = vsub.f32 %v853, 1.0
    %v856 = vsub.f32 %v854, 1.0
    %v857 = vmul.f32 %v850, %v773
    %v858 = vmul.f32 %v852, %v774
    %861 = vrot.lane.b32.xlu0 %v855, 64
    %v862 = vpop.permute.xlu0 %861
    %863 = vrot.lane.b32.xlu0 %v856, 64
    %v864 = vpop.permute.xlu0 %863
    %v867 = vmul.f32 %v850, %v862
    %v868 = vmul.f32 %v852, %v864
    %871 = vrot.lane.b32.xlu0 %v867, 32
    %v872 = vpop.permute.xlu0 %871
    %873 = vrot.lane.b32.xlu0 %v868, 32
    %v874 = vpop.permute.xlu0 %873
    %v877 = vadd.f32 %v857, %v872
    %v878 = vadd.f32 %v858, %v874
    %v879 = vtanh.pop %v877
    %v880 = vtanh.pop %v878
    %883 = vrot.lane.b32.xlu0 %v879, 64
    %v884 = vpop.permute.xlu0 %883
    %885 = vrot.lane.b32.xlu0 %v880, 64
    %v886 = vpop.permute.xlu0 %885
    %v889 = vmul.f32 %v850, %v884
    %v890 = vmul.f32 %v852, %v886
    %s891 = scalar_lea.vmem [#allocation2], 32
    %v892 = vld [vmem:[%s891] sm:$0xff]
    %v893 = vunpack.c.l.bf16 %v892
    %v894 = vunpack.c.h.bf16 %v892
    %v895 = vpack.c.bf16 %v890, %v889
    %897 = vrot.lane.b32.xlu0 %v895, 32
    %v898 = vpop.permute.xlu0 %897
    %v900 = vsel %vm482, %v898, 0
    %902 = vmatprep.subr.bf16.mxu0 0
    %903 = vmatpush1.bf16.msra.mxu0 %v478
    %904 = vmatprep.subr.bf16.mxu0 0
    %905 = vmatpush1.bf16.msra.mxu0 %v479
    %906 = vmatprep.subr.bf16.mxu0 0
    %907 = vmatpush1.bf16.msra.mxu0 0
    %908 = vmatprep.subr.bf16.mxu0 0
    %909 = vmatpush1.bf16.msra.mxu0 0
    %910 = vmatprep.subr.bf16.mxu0 0
    %911 = vmatpush1.bf16.msra.mxu0 0
    %912 = vmatprep.subr.bf16.mxu0 0
    %913 = vmatpush1.bf16.msra.mxu0 0
    %914 = vmatprep.subr.bf16.mxu0 0
    %915 = vmatpush1.bf16.msra.mxu0 0
    %916 = vmatprep.subr.bf16.mxu0 0
    %917 = vmatpush1.bf16.msra.mxu0 0
    %918 = vmatprep.subr.bf16.mxu0 0
    %919 = vmatpush1.bf16.msra.mxu0 0
    %920 = vmatprep.subr.bf16.mxu0 0
    %921 = vmatpush1.bf16.msra.mxu0 0
    %922 = vmatprep.subr.bf16.mxu0 0
    %923 = vmatpush1.bf16.msra.mxu0 0
    %924 = vmatprep.subr.bf16.mxu0 0
    %925 = vmatpush1.bf16.msra.mxu0 0
    %926 = vmatprep.subr.bf16.mxu0 0
    %927 = vmatpush1.bf16.msra.mxu0 0
    %928 = vmatprep.subr.bf16.mxu0 0
    %929 = vmatpush1.bf16.msra.mxu0 0
    %930 = vmatprep.subr.bf16.mxu0 0
    %931 = vmatpush1.bf16.msra.mxu0 0
    %932 = vmatprep.subr.bf16.mxu0 0
    %933 = vmatpush1.bf16.msra.mxu0 0
    %934 = vmatprep.mubr.bf16.mxu0 0
    %935 = vmatmul.mubr.bf16.gmra.mrb[0].mxu0 %v900
    %v936 = vpop.f32.mrb[0].mxu0
    %v937 = vadd.f32 0.0, %v936
    %v938 = vpop.f32.mrb[0].mxu0
    %v939 = vpop.f32.mrb[0].mxu0
    %v940 = vadd.f32 0.0, %v939
    %v941 = vpop.f32.mrb[0].mxu0
    %942 = vdwg.mxu0
    %v943 = vadd.f32 %v893, %v937
    %v944 = vadd.f32 %v894, %v940
    %v945 = vxor.u32 %v943, 2147483648
    %v946 = vxor.u32 %v944, 2147483648
    %v947 = vmul.f32 %v945, 1.442695
    %v948 = vpow.pop %v947
    %v949 = vmul.f32 %v946, 1.442695
    %v950 = vpow.pop %v949
    %v951 = vadd.f32 %v948, 1.0
    %v952 = vadd.f32 %v950, 1.0
    %v953 = vrcp.pop %v951
    %v954 = vmul.f32 1.0, %v953
    %v955 = vrcp.pop %v952
    %v956 = vmul.f32 1.0, %v955
    %v957 = vmul.f32 %v954, 2.0
    %v958 = vmul.f32 %v956, 2.0
    %v959 = vsub.f32 %v957, 1.0
    %v960 = vsub.f32 %v958, 1.0
    %v961 = vmul.f32 %v954, %v877
    %v962 = vmul.f32 %v956, %v878
    %965 = vrot.lane.b32.xlu0 %v959, 64
    %v966 = vpop.permute.xlu0 %965
    %967 = vrot.lane.b32.xlu0 %v960, 64
    %v968 = vpop.permute.xlu0 %967
    %v971 = vmul.f32 %v954, %v966
    %v972 = vmul.f32 %v956, %v968
    %975 = vrot.lane.b32.xlu0 %v971, 32
    %v976 = vpop.permute.xlu0 %975
    %977 = vrot.lane.b32.xlu0 %v972, 32
    %v978 = vpop.permute.xlu0 %977
    %v981 = vadd.f32 %v961, %v976
    %v982 = vadd.f32 %v962, %v978
    %v983 = vtanh.pop %v981
    %v984 = vtanh.pop %v982
    %987 = vrot.lane.b32.xlu0 %v983, 64
    %v988 = vpop.permute.xlu0 %987
    %989 = vrot.lane.b32.xlu0 %v984, 64
    %v990 = vpop.permute.xlu0 %989
    %v993 = vmul.f32 %v954, %v988
    %v994 = vmul.f32 %v956, %v990
    %s995 = scalar_lea.vmem [#allocation2], 40
    %v996 = vld [vmem:[%s995] sm:$0xff]
    %v997 = vunpack.c.l.bf16 %v996
    %v998 = vunpack.c.h.bf16 %v996
    %v999 = vpack.c.bf16 %v994, %v993
    %1001 = vrot.lane.b32.xlu0 %v999, 32
    %v1002 = vpop.permute.xlu0 %1001
    %v1004 = vsel %vm482, %v1002, 0
    %1006 = vmatprep.subr.bf16.mxu0 0
    %1007 = vmatpush1.bf16.msra.mxu0 %v478
    %1008 = vmatprep.subr.bf16.mxu0 0
    %1009 = vmatpush1.bf16.msra.mxu0 %v479
    %1010 = vmatprep.subr.bf16.mxu0 0
    %1011 = vmatpush1.bf16.msra.mxu0 0
    %1012 = vmatprep.subr.bf16.mxu0 0
    %1013 = vmatpush1.bf16.msra.mxu0 0
    %1014 = vmatprep.subr.bf16.mxu0 0
    %1015 = vmatpush1.bf16.msra.mxu0 0
    %1016 = vmatprep.subr.bf16.mxu0 0
    %1017 = vmatpush1.bf16.msra.mxu0 0
    %1018 = vmatprep.subr.bf16.mxu0 0
    %1019 = vmatpush1.bf16.msra.mxu0 0
    %1020 = vmatprep.subr.bf16.mxu0 0
    %1021 = vmatpush1.bf16.msra.mxu0 0
    %1022 = vmatprep.subr.bf16.mxu0 0
    %1023 = vmatpush1.bf16.msra.mxu0 0
    %1024 = vmatprep.subr.bf16.mxu0 0
    %1025 = vmatpush1.bf16.msra.mxu0 0
    %1026 = vmatprep.subr.bf16.mxu0 0
    %1027 = vmatpush1.bf16.msra.mxu0 0
    %1028 = vmatprep.subr.bf16.mxu0 0
    %1029 = vmatpush1.bf16.msra.mxu0 0
    %1030 = vmatprep.subr.bf16.mxu0 0
    %1031 = vmatpush1.bf16.msra.mxu0 0
    %1032 = vmatprep.subr.bf16.mxu0 0
    %1033 = vmatpush1.bf16.msra.mxu0 0
    %1034 = vmatprep.subr.bf16.mxu0 0
    %1035 = vmatpush1.bf16.msra.mxu0 0
    %1036 = vmatprep.subr.bf16.mxu0 0
    %1037 = vmatpush1.bf16.msra.mxu0 0
    %1038 = vmatprep.mubr.bf16.mxu0 0
    %1039 = vmatmul.mubr.bf16.gmra.mrb[0].mxu0 %v1004
    %v1040 = vpop.f32.mrb[0].mxu0
    %v1041 = vadd.f32 0.0, %v1040
    %v1042 = vpop.f32.mrb[0].mxu0
    %v1043 = vpop.f32.mrb[0].mxu0
    %v1044 = vadd.f32 0.0, %v1043
    %v1045 = vpop.f32.mrb[0].mxu0
    %1046 = vdwg.mxu0
    %v1047 = vadd.f32 %v997, %v1041
    %v1048 = vadd.f32 %v998, %v1044
    %v1049 = vxor.u32 %v1047, 2147483648
    %v1050 = vxor.u32 %v1048, 2147483648
    %v1051 = vmul.f32 %v1049, 1.442695
    %v1052 = vpow.pop %v1051
    %v1053 = vmul.f32 %v1050, 1.442695
    %v1054 = vpow.pop %v1053
    %v1055 = vadd.f32 %v1052, 1.0
    %v1056 = vadd.f32 %v1054, 1.0
    %v1057 = vrcp.pop %v1055
    %v1058 = vmul.f32 1.0, %v1057
    %v1059 = vrcp.pop %v1056
    %v1060 = vmul.f32 1.0, %v1059
    %v1061 = vmul.f32 %v1058, 2.0
    %v1062 = vmul.f32 %v1060, 2.0
    %v1063 = vsub.f32 %v1061, 1.0
    %v1064 = vsub.f32 %v1062, 1.0
    %v1065 = vmul.f32 %v1058, %v981
    %v1066 = vmul.f32 %v1060, %v982
    %1069 = vrot.lane.b32.xlu0 %v1063, 64
    %v1070 = vpop.permute.xlu0 %1069
    %1071 = vrot.lane.b32.xlu0 %v1064, 64
    %v1072 = vpop.permute.xlu0 %1071
    %v1075 = vmul.f32 %v1058, %v1070
    %v1076 = vmul.f32 %v1060, %v1072
    %1079 = vrot.lane.b32.xlu0 %v1075, 32
    %v1080 = vpop.permute.xlu0 %1079
    %1081 = vrot.lane.b32.xlu0 %v1076, 32
    %v1082 = vpop.permute.xlu0 %1081
    %v1085 = vadd.f32 %v1065, %v1080
    %v1086 = vadd.f32 %v1066, %v1082
    %v1087 = vtanh.pop %v1085
    %v1088 = vtanh.pop %v1086
    %1091 = vrot.lane.b32.xlu0 %v1087, 64
    %v1092 = vpop.permute.xlu0 %1091
    %1093 = vrot.lane.b32.xlu0 %v1088, 64
    %v1094 = vpop.permute.xlu0 %1093
    %v1097 = vmul.f32 %v1058, %v1092
    %v1098 = vmul.f32 %v1060, %v1094
    %s1099 = scalar_lea.vmem [#allocation2], 48
    %v1100 = vld [vmem:[%s1099] sm:$0xff]
    %v1101 = vunpack.c.l.bf16 %v1100
    %v1102 = vunpack.c.h.bf16 %v1100
    %v1103 = vpack.c.bf16 %v1098, %v1097
    %1105 = vrot.lane.b32.xlu0 %v1103, 32
    %v1106 = vpop.permute.xlu0 %1105
    %v1108 = vsel %vm482, %v1106, 0
    %1110 = vmatprep.subr.bf16.mxu0 0
    %1111 = vmatpush1.bf16.msra.mxu0 %v478
    %1112 = vmatprep.subr.bf16.mxu0 0
    %1113 = vmatpush1.bf16.msra.mxu0 %v479
    %1114 = vmatprep.subr.bf16.mxu0 0
    %1115 = vmatpush1.bf16.msra.mxu0 0
    %1116 = vmatprep.subr.bf16.mxu0 0
    %1117 = vmatpush1.bf16.msra.mxu0 0
    %1118 = vmatprep.subr.bf16.mxu0 0
    %1119 = vmatpush1.bf16.msra.mxu0 0
    %1120 = vmatprep.subr.bf16.mxu0 0
    %1121 = vmatpush1.bf16.msra.mxu0 0
    %1122 = vmatprep.subr.bf16.mxu0 0
    %1123 = vmatpush1.bf16.msra.mxu0 0
    %1124 = vmatprep.subr.bf16.mxu0 0
    %1125 = vmatpush1.bf16.msra.mxu0 0
    %1126 = vmatprep.subr.bf16.mxu0 0
    %1127 = vmatpush1.bf16.msra.mxu0 0
    %1128 = vmatprep.subr.bf16.mxu0 0
    %1129 = vmatpush1.bf16.msra.mxu0 0
    %1130 = vmatprep.subr.bf16.mxu0 0
    %1131 = vmatpush1.bf16.msra.mxu0 0
    %1132 = vmatprep.subr.bf16.mxu0 0
    %1133 = vmatpush1.bf16.msra.mxu0 0
    %1134 = vmatprep.subr.bf16.mxu0 0
    %1135 = vmatpush1.bf16.msra.mxu0 0
    %1136 = vmatprep.subr.bf16.mxu0 0
    %1137 = vmatpush1.bf16.msra.mxu0 0
    %1138 = vmatprep.subr.bf16.mxu0 0
    %1139 = vmatpush1.bf16.msra.mxu0 0
    %1140 = vmatprep.subr.bf16.mxu0 0
    %1141 = vmatpush1.bf16.msra.mxu0 0
    %1142 = vmatprep.mubr.bf16.mxu0 0
    %1143 = vmatmul.mubr.bf16.gmra.mrb[0].mxu0 %v1108
    %v1144 = vpop.f32.mrb[0].mxu0
    %v1145 = vadd.f32 0.0, %v1144
    %v1146 = vpop.f32.mrb[0].mxu0
    %v1147 = vpop.f32.mrb[0].mxu0
    %v1148 = vadd.f32 0.0, %v1147
    %v1149 = vpop.f32.mrb[0].mxu0
    %1150 = vdwg.mxu0
    %v1151 = vadd.f32 %v1101, %v1145
    %v1152 = vadd.f32 %v1102, %v1148
    %v1153 = vxor.u32 %v1151, 2147483648
    %v1154 = vxor.u32 %v1152, 2147483648
    %v1155 = vmul.f32 %v1153, 1.442695
    %v1156 = vpow.pop %v1155
    %v1157 = vmul.f32 %v1154, 1.442695
    %v1158 = vpow.pop %v1157
    %v1159 = vadd.f32 %v1156, 1.0
    %v1160 = vadd.f32 %v1158, 1.0
    %v1161 = vrcp.pop %v1159
    %v1162 = vmul.f32 1.0, %v1161
    %v1163 = vrcp.pop %v1160
    %v1164 = vmul.f32 1.0, %v1163
    %v1165 = vmul.f32 %v1162, 2.0
    %v1166 = vmul.f32 %v1164, 2.0
    %v1167 = vsub.f32 %v1165, 1.0
    %v1168 = vsub.f32 %v1166, 1.0
    %v1169 = vmul.f32 %v1162, %v1085
    %v1170 = vmul.f32 %v1164, %v1086
    %1173 = vrot.lane.b32.xlu0 %v1167, 64
    %v1174 = vpop.permute.xlu0 %1173
    %1175 = vrot.lane.b32.xlu0 %v1168, 64
    %v1176 = vpop.permute.xlu0 %1175
    %v1179 = vmul.f32 %v1162, %v1174
    %v1180 = vmul.f32 %v1164, %v1176
    %1183 = vrot.lane.b32.xlu0 %v1179, 32
    %v1184 = vpop.permute.xlu0 %1183
    %1185 = vrot.lane.b32.xlu0 %v1180, 32
    %v1186 = vpop.permute.xlu0 %1185
    %v1189 = vadd.f32 %v1169, %v1184
    %v1190 = vadd.f32 %v1170, %v1186
    %v1191 = vtanh.pop %v1189
    %v1192 = vtanh.pop %v1190
    %1195 = vrot.lane.b32.xlu0 %v1191, 64
    %v1196 = vpop.permute.xlu0 %1195
    %1197 = vrot.lane.b32.xlu0 %v1192, 64
    %v1198 = vpop.permute.xlu0 %1197
    %v1201 = vmul.f32 %v1162, %v1196
    %v1202 = vmul.f32 %v1164, %v1198
    %s1203 = scalar_lea.vmem [#allocation2], 56
    %v1204 = vld [vmem:[%s1203] sm:$0xff]
    %v1205 = vunpack.c.l.bf16 %v1204
    %v1206 = vunpack.c.h.bf16 %v1204
    %v1207 = vpack.c.bf16 %v1202, %v1201
    %1209 = vrot.lane.b32.xlu0 %v1207, 32
    %v1210 = vpop.permute.xlu0 %1209
    %v1212 = vsel %vm482, %v1210, 0
    %1214 = vmatprep.subr.bf16.mxu0 0
    %1215 = vmatpush1.bf16.msra.mxu0 %v478
    %1216 = vmatprep.subr.bf16.mxu0 0
    %1217 = vmatpush1.bf16.msra.mxu0 %v479
    %1218 = vmatprep.subr.bf16.mxu0 0
    %1219 = vmatpush1.bf16.msra.mxu0 0
    %1220 = vmatprep.subr.bf16.mxu0 0
    %1221 = vmatpush1.bf16.msra.mxu0 0
    %1222 = vmatprep.subr.bf16.mxu0 0
    %1223 = vmatpush1.bf16.msra.mxu0 0
    %1224 = vmatprep.subr.bf16.mxu0 0
    %1225 = vmatpush1.bf16.msra.mxu0 0
    %1226 = vmatprep.subr.bf16.mxu0 0
    %1227 = vmatpush1.bf16.msra.mxu0 0
    %1228 = vmatprep.subr.bf16.mxu0 0
    %1229 = vmatpush1.bf16.msra.mxu0 0
    %1230 = vmatprep.subr.bf16.mxu0 0
    %1231 = vmatpush1.bf16.msra.mxu0 0
    %1232 = vmatprep.subr.bf16.mxu0 0
    %1233 = vmatpush1.bf16.msra.mxu0 0
    %1234 = vmatprep.subr.bf16.mxu0 0
    %1235 = vmatpush1.bf16.msra.mxu0 0
    %1236 = vmatprep.subr.bf16.mxu0 0
    %1237 = vmatpush1.bf16.msra.mxu0 0
    %1238 = vmatprep.subr.bf16.mxu0 0
    %1239 = vmatpush1.bf16.msra.mxu0 0
    %1240 = vmatprep.subr.bf16.mxu0 0
    %1241 = vmatpush1.bf16.msra.mxu0 0
    %1242 = vmatprep.subr.bf16.mxu0 0
    %1243 = vmatpush1.bf16.msra.mxu0 0
    %1244 = vmatprep.subr.bf16.mxu0 0
    %1245 = vmatpush1.bf16.msra.mxu0 0
    %1246 = vmatprep.mubr.bf16.mxu0 0
    %1247 = vmatmul.mubr.bf16.gmra.mrb[0].mxu0 %v1212
    %v1248 = vpop.f32.mrb[0].mxu0
    %v1249 = vadd.f32 0.0, %v1248
    %v1250 = vpop.f32.mrb[0].mxu0
    %v1251 = vpop.f32.mrb[0].mxu0
    %v1252 = vadd.f32 0.0, %v1251
    %v1253 = vpop.f32.mrb[0].mxu0
    %1254 = vdwg.mxu0
    %v1255 = vadd.f32 %v1205, %v1249
    %v1256 = vadd.f32 %v1206, %v1252
    %v1257 = vxor.u32 %v1255, 2147483648
    %v1258 = vxor.u32 %v1256, 2147483648
    %v1259 = vmul.f32 %v1257, 1.442695
    %v1260 = vpow.pop %v1259
    %v1261 = vmul.f32 %v1258, 1.442695
    %v1262 = vpow.pop %v1261
    %v1263 = vadd.f32 %v1260, 1.0
    %v1264 = vadd.f32 %v1262, 1.0
    %v1265 = vrcp.pop %v1263
    %v1266 = vmul.f32 1.0, %v1265
    %v1267 = vrcp.pop %v1264
    %v1268 = vmul.f32 1.0, %v1267
    %v1269 = vmul.f32 %v1266, 2.0
    %v1270 = vmul.f32 %v1268, 2.0
    %v1271 = vsub.f32 %v1269, 1.0
    %v1272 = vsub.f32 %v1270, 1.0
    %v1273 = vmul.f32 %v1266, %v1189
    %v1274 = vmul.f32 %v1268, %v1190
    %1277 = vrot.lane.b32.xlu0 %v1271, 64
    %v1278 = vpop.permute.xlu0 %1277
    %1279 = vrot.lane.b32.xlu0 %v1272, 64
    %v1280 = vpop.permute.xlu0 %1279
    %v1283 = vmul.f32 %v1266, %v1278
    %v1284 = vmul.f32 %v1268, %v1280
    %1287 = vrot.lane.b32.xlu0 %v1283, 32
    %v1288 = vpop.permute.xlu0 %1287
    %1289 = vrot.lane.b32.xlu0 %v1284, 32
    %v1290 = vpop.permute.xlu0 %1289
    %v1293 = vadd.f32 %v1273, %v1288
    %v1294 = vadd.f32 %v1274, %v1290
    %v1295 = vtanh.pop %v1293
    %v1296 = vtanh.pop %v1294
    %1299 = vrot.lane.b32.xlu0 %v1295, 64
    %v1300 = vpop.permute.xlu0 %1299
    %1301 = vrot.lane.b32.xlu0 %v1296, 64
    %v1302 = vpop.permute.xlu0 %1301
    %v1305 = vmul.f32 %v1266, %v1300
    %v1306 = vmul.f32 %v1268, %v1302
    %v1307 = vld [vmem:[#allocation3] sm:$0xff]
    %v1308 = vunpack.c.l.bf16 %v1307
    %v1309 = vunpack.c.h.bf16 %v1307
    %v1310 = vpack.c.bf16 %v1306, %v1305
    %1312 = vrot.lane.b32.xlu0 %v1310, 32
    %v1313 = vpop.permute.xlu0 %1312
    %v1318 = vunpack.c.l.b16 %v458
    %v1319 = vunpack.c.l.b16 %v459
    %v1320 = vunpack.c.l.b16 %v460
    %v1321 = vunpack.c.l.b16 %v461
    %v1322 = vpack.c.b16 %v1319, %v1318
    %v1323 = vpack.c.b16 %v1321, %v1320
    %v1327 = vsel %vm482, %v1313, 0
    %1329 = vmatprep.subr.bf16.mxu0 0
    %1330 = vmatpush1.bf16.msra.mxu0 %v1322
    %1331 = vmatprep.subr.bf16.mxu0 0
    %1332 = vmatpush1.bf16.msra.mxu0 %v1323
    %1333 = vmatprep.subr.bf16.mxu0 0
    %1334 = vmatpush1.bf16.msra.mxu0 0
    %1335 = vmatprep.subr.bf16.mxu0 0
    %1336 = vmatpush1.bf16.msra.mxu0 0
    %1337 = vmatprep.subr.bf16.mxu0 0
    %1338 = vmatpush1.bf16.msra.mxu0 0
    %1339 = vmatprep.subr.bf16.mxu0 0
    %1340 = vmatpush1.bf16.msra.mxu0 0
    %1341 = vmatprep.subr.bf16.mxu0 0
    %1342 = vmatpush1.bf16.msra.mxu0 0
    %1343 = vmatprep.subr.bf16.mxu0 0
    %1344 = vmatpush1.bf16.msra.mxu0 0
    %1345 = vmatprep.subr.bf16.mxu0 0
    %1346 = vmatpush1.bf16.msra.mxu0 0
    %1347 = vmatprep.subr.bf16.mxu0 0
    %1348 = vmatpush1.bf16.msra.mxu0 0
    %1349 = vmatprep.subr.bf16.mxu0 0
    %1350 = vmatpush1.bf16.msra.mxu0 0
    %1351 = vmatprep.subr.bf16.mxu0 0
    %1352 = vmatpush1.bf16.msra.mxu0 0
    %1353 = vmatprep.subr.bf16.mxu0 0
    %1354 = vmatpush1.bf16.msra.mxu0 0
    %1355 = vmatprep.subr.bf16.mxu0 0
    %1356 = vmatpush1.bf16.msra.mxu0 0
    %1357 = vmatprep.subr.bf16.mxu0 0
    %1358 = vmatpush1.bf16.msra.mxu0 0
    %1359 = vmatprep.subr.bf16.mxu0 0
    %1360 = vmatpush1.bf16.msra.mxu0 0
    %1361 = vmatprep.mubr.bf16.mxu0 0
    %1362 = vmatmul.mubr.bf16.gmra.mrb[0].mxu0 %v1327
    %v1363 = vpop.f32.mrb[0].mxu0
    %v1364 = vadd.f32 0.0, %v1363
    %v1365 = vpop.f32.mrb[0].mxu0
    %v1366 = vpop.f32.mrb[0].mxu0
    %v1367 = vadd.f32 0.0, %v1366
    %v1368 = vpop.f32.mrb[0].mxu0
    %1369 = vdwg.mxu0
    %v1370 = vadd.f32 %v1308, %v1364
    %v1371 = vadd.f32 %v1309, %v1367
    %v1372 = vxor.u32 %v1370, 2147483648
    %v1373 = vxor.u32 %v1371, 2147483648
    %v1374 = vmul.f32 %v1372, 1.442695
    %v1375 = vpow.pop %v1374
    %v1376 = vmul.f32 %v1373, 1.442695
    %v1377 = vpow.pop %v1376
    %v1378 = vadd.f32 %v1375, 1.0
    %v1379 = vadd.f32 %v1377, 1.0
    %v1380 = vrcp.pop %v1378
    %v1381 = vmul.f32 1.0, %v1380
    %v1382 = vrcp.pop %v1379
    %v1383 = vmul.f32 1.0, %v1382
    %v1384 = vmul.f32 %v1381, 2.0
    %v1385 = vmul.f32 %v1383, 2.0
    %v1386 = vsub.f32 %v1384, 1.0
    %v1387 = vsub.f32 %v1385, 1.0
    %v1388 = vmul.f32 %v1381, %v1293
    %v1389 = vmul.f32 %v1383, %v1294
    %1392 = vrot.lane.b32.xlu0 %v1386, 64
    %v1393 = vpop.permute.xlu0 %1392
    %1394 = vrot.lane.b32.xlu0 %v1387, 64
    %v1395 = vpop.permute.xlu0 %1394
    %v1398 = vmul.f32 %v1381, %v1393
    %v1399 = vmul.f32 %v1383, %v1395
    %1402 = vrot.lane.b32.xlu0 %v1398, 32
    %v1403 = vpop.permute.xlu0 %1402
    %1404 = vrot.lane.b32.xlu0 %v1399, 32
    %v1405 = vpop.permute.xlu0 %1404
    %v1408 = vadd.f32 %v1388, %v1403
    %v1409 = vadd.f32 %v1389, %v1405
    %v1410 = vtanh.pop %v1408
    %v1411 = vtanh.pop %v1409
    %1414 = vrot.lane.b32.xlu0 %v1410, 64
    %v1415 = vpop.permute.xlu0 %1414
    %1416 = vrot.lane.b32.xlu0 %v1411, 64
    %v1417 = vpop.permute.xlu0 %1416
    %v1420 = vmul.f32 %v1381, %v1415
    %v1421 = vmul.f32 %v1383, %v1417
    %v1422 = vpack.c.bf16 %v1421, %v1420
    %v1424 = vlaneseq
    %v1425 = vshrl.u32 %v1424, 7
    %v1426 = vsub.s32 0, %v1425
    %v1427 = vrot.slane %v466, %v1426
    %1430 = vrot.lane.b32.xlu0 %v1422, 32
    %v1431 = vpop.permute.xlu0 %1430
    %v1436 = vunpack.c.l.b16 %v462
    %v1437 = vunpack.c.l.b16 %v463
    %v1438 = vunpack.c.l.b16 %v464
    %v1439 = vunpack.c.l.b16 %v465
    %v1440 = vpack.c.b16 %v1437, %v1436
    %v1441 = vpack.c.b16 %v1439, %v1438
    %v1445 = vsel %vm482, %v1431, 0
    %1447 = vmatprep.subr.bf16.mxu0 0
    %1448 = vmatpush1.bf16.msra.mxu0 %v1440
    %1449 = vmatprep.subr.bf16.mxu0 0
    %1450 = vmatpush1.bf16.msra.mxu0 %v1441
    %1451 = vmatprep.subr.bf16.mxu0 0
    %1452 = vmatpush1.bf16.msra.mxu0 0
    %1453 = vmatprep.subr.bf16.mxu0 0
    %1454 = vmatpush1.bf16.msra.mxu0 0
    %1455 = vmatprep.subr.bf16.mxu0 0
    %1456 = vmatpush1.bf16.msra.mxu0 0
    %1457 = vmatprep.subr.bf16.mxu0 0
    %1458 = vmatpush1.bf16.msra.mxu0 0
    %1459 = vmatprep.subr.bf16.mxu0 0
    %1460 = vmatpush1.bf16.msra.mxu0 0
    %1461 = vmatprep.subr.bf16.mxu0 0
    %1462 = vmatpush1.bf16.msra.mxu0 0
    %1463 = vmatprep.subr.bf16.mxu0 0
    %1464 = vmatpush1.bf16.msra.mxu0 0
    %1465 = vmatprep.subr.bf16.mxu0 0
    %1466 = vmatpush1.bf16.msra.mxu0 0
    %1467 = vmatprep.subr.bf16.mxu0 0
    %1468 = vmatpush1.bf16.msra.mxu0 0
    %1469 = vmatprep.subr.bf16.mxu0 0
    %1470 = vmatpush1.bf16.msra.mxu0 0
    %1471 = vmatprep.subr.bf16.mxu0 0
    %1472 = vmatpush1.bf16.msra.mxu0 0
    %1473 = vmatprep.subr.bf16.mxu0 0
    %1474 = vmatpush1.bf16.msra.mxu0 0
    %1475 = vmatprep.subr.bf16.mxu0 0
    %1476 = vmatpush1.bf16.msra.mxu0 0
    %1477 = vmatprep.subr.bf16.mxu0 0
    %1478 = vmatpush1.bf16.msra.mxu0 0
    %1479 = vmatprep.mubr.bf16.mxu0 0
    %1480 = vmatmul.mubr.bf16.gmra.mrb[0].mxu0 %v1445
    %v1481 = vpop.f32.mrb[0].mxu0
    %v1482 = vadd.f32 %v1427, %v1481
    %v1483 = vpop.f32.mrb[0].mxu0
    %v1484 = vpop.f32.mrb[0].mxu0
    %v1485 = vadd.f32 %v1427, %v1484
    %v1486 = vpop.f32.mrb[0].mxu0
    %1487 = vdwg.mxu0
    %v1488 = vtanh.pop %v1482
    %v1489 = vtanh.pop %v1485
    %1490 = vst [vmem:[#allocation4] sm:$0xff] %v1488
    %1491 = vst [vmem:[#allocation4 + $0x8] sm:$0xff] %v1489
    %s1492 = scalar_lea.vmem [#allocation3], 8
    %v1493 = vld [vmem:[%s1492] sm:$0xff]
    %v1494 = vunpack.c.l.bf16 %v1493
    %v1495 = vunpack.c.h.bf16 %v1493
    %1496 = vmatprep.subr.bf16.mxu0 0
    %1497 = vmatpush1.bf16.msra.mxu0 %v1322
    %1498 = vmatprep.subr.bf16.mxu0 0
    %1499 = vmatpush1.bf16.msra.mxu0 %v1323
    %1500 = vmatprep.subr.bf16.mxu0 0
    %1501 = vmatpush1.bf16.msra.mxu0 0
    %1502 = vmatprep.subr.bf16.mxu0 0
    %1503 = vmatpush1.bf16.msra.mxu0 0
    %1504 = vmatprep.subr.bf16.mxu0 0
    %1505 = vmatpush1.bf16.msra.mxu0 0
    %1506 = vmatprep.subr.bf16.mxu0 0
    %1507 = vmatpush1.bf16.msra.mxu0 0
    %1508 = vmatprep.subr.bf16.mxu0 0
    %1509 = vmatpush1.bf16.msra.mxu0 0
    %1510 = vmatprep.subr.bf16.mxu0 0
    %1511 = vmatpush1.bf16.msra.mxu0 0
    %1512 = vmatprep.subr.bf16.mxu0 0
    %1513 = vmatpush1.bf16.msra.mxu0 0
    %1514 = vmatprep.subr.bf16.mxu0 0
    %1515 = vmatpush1.bf16.msra.mxu0 0
    %1516 = vmatprep.subr.bf16.mxu0 0
    %1517 = vmatpush1.bf16.msra.mxu0 0
    %1518 = vmatprep.subr.bf16.mxu0 0
    %1519 = vmatpush1.bf16.msra.mxu0 0
    %1520 = vmatprep.subr.bf16.mxu0 0
    %1521 = vmatpush1.bf16.msra.mxu0 0
    %1522 = vmatprep.subr.bf16.mxu0 0
    %1523 = vmatpush1.bf16.msra.mxu0 0
    %1524 = vmatprep.subr.bf16.mxu0 0
    %1525 = vmatpush1.bf16.msra.mxu0 0
    %1526 = vmatprep.subr.bf16.mxu0 0
    %1527 = vmatpush1.bf16.msra.mxu0 0
    %1528 = vmatprep.mubr.bf16.mxu0 0
    %1529 = vmatmul.mubr.bf16.gmra.mrb[0].mxu0 %v1445
    %v1530 = vpop.f32.mrb[0].mxu0
    %v1531 = vadd.f32 0.0, %v1530
    %v1532 = vpop.f32.mrb[0].mxu0
    %v1533 = vpop.f32.mrb[0].mxu0
    %v1534 = vadd.f32 0.0, %v1533
    %v1535 = vpop.f32.mrb[0].mxu0
    %1536 = vdwg.mxu0
    %v1537 = vadd.f32 %v1494, %v1531
    %v1538 = vadd.f32 %v1495, %v1534
    %v1539 = vxor.u32 %v1537, 2147483648
    %v1540 = vxor.u32 %v1538, 2147483648
    %v1541 = vmul.f32 %v1539, 1.442695
    %v1542 = vpow.pop %v1541
    %v1543 = vmul.f32 %v1540, 1.442695
    %v1544 = vpow.pop %v1543
    %v1545 = vadd.f32 %v1542, 1.0
    %v1546 = vadd.f32 %v1544, 1.0
    %v1547 = vrcp.pop %v1545
    %v1548 = vmul.f32 1.0, %v1547
    %v1549 = vrcp.pop %v1546
    %v1550 = vmul.f32 1.0, %v1549
    %v1551 = vmul.f32 %v1548, 2.0
    %v1552 = vmul.f32 %v1550, 2.0
    %v1553 = vsub.f32 %v1551, 1.0
    %v1554 = vsub.f32 %v1552, 1.0
    %v1555 = vmul.f32 %v1548, %v1408
    %v1556 = vmul.f32 %v1550, %v1409
    %1559 = vrot.lane.b32.xlu0 %v1553, 64
    %v1560 = vpop.permute.xlu0 %1559
    %1561 = vrot.lane.b32.xlu0 %v1554, 64
    %v1562 = vpop.permute.xlu0 %1561
    %v1565 = vmul.f32 %v1548, %v1560
    %v1566 = vmul.f32 %v1550, %v1562
    %1569 = vrot.lane.b32.xlu0 %v1565, 32
    %v1570 = vpop.permute.xlu0 %1569
    %1571 = vrot.lane.b32.xlu0 %v1566, 32
    %v1572 = vpop.permute.xlu0 %1571
    %v1575 = vadd.f32 %v1555, %v1570
    %v1576 = vadd.f32 %v1556, %v1572
    %v1577 = vtanh.pop %v1575
    %v1578 = vtanh.pop %v1576
    %1581 = vrot.lane.b32.xlu0 %v1577, 64
    %v1582 = vpop.permute.xlu0 %1581
    %1583 = vrot.lane.b32.xlu0 %v1578, 64
    %v1584 = vpop.permute.xlu0 %1583
    %v1587 = vmul.f32 %v1548, %v1582
    %v1588 = vmul.f32 %v1550, %v1584
    %v1589 = vpack.c.bf16 %v1588, %v1587
    %1591 = vrot.lane.b32.xlu0 %v1589, 32
    %v1592 = vpop.permute.xlu0 %1591
    %v1594 = vsel %vm482, %v1592, 0
    %1596 = vmatprep.subr.bf16.mxu0 0
    %1597 = vmatpush1.bf16.msra.mxu0 %v1440
    %1598 = vmatprep.subr.bf16.mxu0 0
    %1599 = vmatpush1.bf16.msra.mxu0 %v1441
    %1600 = vmatprep.subr.bf16.mxu0 0
    %1601 = vmatpush1.bf16.msra.mxu0 0
    %1602 = vmatprep.subr.bf16.mxu0 0
    %1603 = vmatpush1.bf16.msra.mxu0 0
    %1604 = vmatprep.subr.bf16.mxu0 0
    %1605 = vmatpush1.bf16.msra.mxu0 0
    %1606 = vmatprep.subr.bf16.mxu0 0
    %1607 = vmatpush1.bf16.msra.mxu0 0
    %1608 = vmatprep.subr.bf16.mxu0 0
    %1609 = vmatpush1.bf16.msra.mxu0 0
    %1610 = vmatprep.subr.bf16.mxu0 0
    %1611 = vmatpush1.bf16.msra.mxu0 0
    %1612 = vmatprep.subr.bf16.mxu0 0
    %1613 = vmatpush1.bf16.msra.mxu0 0
    %1614 = vmatprep.subr.bf16.mxu0 0
    %1615 = vmatpush1.bf16.msra.mxu0 0
    %1616 = vmatprep.subr.bf16.mxu0 0
    %1617 = vmatpush1.bf16.msra.mxu0 0
    %1618 = vmatprep.subr.bf16.mxu0 0
    %1619 = vmatpush1.bf16.msra.mxu0 0
    %1620 = vmatprep.subr.bf16.mxu0 0
    %1621 = vmatpush1.bf16.msra.mxu0 0
    %1622 = vmatprep.subr.bf16.mxu0 0
    %1623 = vmatpush1.bf16.msra.mxu0 0
    %1624 = vmatprep.subr.bf16.mxu0 0
    %1625 = vmatpush1.bf16.msra.mxu0 0
    %1626 = vmatprep.subr.bf16.mxu0 0
    %1627 = vmatpush1.bf16.msra.mxu0 0
    %1628 = vmatprep.mubr.bf16.mxu0 0
    %1629 = vmatmul.mubr.bf16.gmra.mrb[0].mxu0 %v1594
    %v1630 = vpop.f32.mrb[0].mxu0
    %v1631 = vadd.f32 %v1427, %v1630
    %v1632 = vpop.f32.mrb[0].mxu0
    %v1633 = vpop.f32.mrb[0].mxu0
    %v1634 = vadd.f32 %v1427, %v1633
    %v1635 = vpop.f32.mrb[0].mxu0
    %1636 = vdwg.mxu0
    %v1637 = vtanh.pop %v1631
    %v1638 = vtanh.pop %v1634
    %s1639 = scalar_lea.vmem [#allocation4], 16
    %1640 = vst [vmem:[%s1639] sm:$0xff] %v1637
    %1641 = vst [vmem:[%s1639 + $0x8] sm:$0xff] %v1638
    %s1642 = scalar_lea.vmem [#allocation3], 16
    %v1643 = vld [vmem:[%s1642] sm:$0xff]
    %v1644 = vunpack.c.l.bf16 %v1643
    %v1645 = vunpack.c.h.bf16 %v1643
    %1646 = vmatprep.subr.bf16.mxu0 0
    %1647 = vmatpush1.bf16.msra.mxu0 %v1322
    %1648 = vmatprep.subr.bf16.mxu0 0
    %1649 = vmatpush1.bf16.msra.mxu0 %v1323
    %1650 = vmatprep.subr.bf16.mxu0 0
    %1651 = vmatpush1.bf16.msra.mxu0 0
    %1652 = vmatprep.subr.bf16.mxu0 0
    %1653 = vmatpush1.bf16.msra.mxu0 0
    %1654 = vmatprep.subr.bf16.mxu0 0
    %1655 = vmatpush1.bf16.msra.mxu0 0
    %1656 = vmatprep.subr.bf16.mxu0 0
    %1657 = vmatpush1.bf16.msra.mxu0 0
    %1658 = vmatprep.subr.bf16.mxu0 0
    %1659 = vmatpush1.bf16.msra.mxu0 0
    %1660 = vmatprep.subr.bf16.mxu0 0
    %1661 = vmatpush1.bf16.msra.mxu0 0
    %1662 = vmatprep.subr.bf16.mxu0 0
    %1663 = vmatpush1.bf16.msra.mxu0 0
    %1664 = vmatprep.subr.bf16.mxu0 0
    %1665 = vmatpush1.bf16.msra.mxu0 0
    %1666 = vmatprep.subr.bf16.mxu0 0
    %1667 = vmatpush1.bf16.msra.mxu0 0
    %1668 = vmatprep.subr.bf16.mxu0 0
    %1669 = vmatpush1.bf16.msra.mxu0 0
    %1670 = vmatprep.subr.bf16.mxu0 0
    %1671 = vmatpush1.bf16.msra.mxu0 0
    %1672 = vmatprep.subr.bf16.mxu0 0
    %1673 = vmatpush1.bf16.msra.mxu0 0
    %1674 = vmatprep.subr.bf16.mxu0 0
    %1675 = vmatpush1.bf16.msra.mxu0 0
    %1676 = vmatprep.subr.bf16.mxu0 0
    %1677 = vmatpush1.bf16.msra.mxu0 0
    %1678 = vmatprep.mubr.bf16.mxu0 0
    %1679 = vmatmul.mubr.bf16.gmra.mrb[0].mxu0 %v1594
    %v1680 = vpop.f32.mrb[0].mxu0
    %v1681 = vadd.f32 0.0, %v1680
    %v1682 = vpop.f32.mrb[0].mxu0
    %v1683 = vpop.f32.mrb[0].mxu0
    %v1684 = vadd.f32 0.0, %v1683
    %v1685 = vpop.f32.mrb[0].mxu0
    %1686 = vdwg.mxu0
    %v1687 = vadd.f32 %v1644, %v1681
    %v1688 = vadd.f32 %v1645, %v1684
    %v1689 = vxor.u32 %v1687, 2147483648
    %v1690 = vxor.u32 %v1688, 2147483648
    %v1691 = vmul.f32 %v1689, 1.442695
    %v1692 = vpow.pop %v1691
    %v1693 = vmul.f32 %v1690, 1.442695
    %v1694 = vpow.pop %v1693
    %v1695 = vadd.f32 %v1692, 1.0
    %v1696 = vadd.f32 %v1694, 1.0
    %v1697 = vrcp.pop %v1695
    %v1698 = vmul.f32 1.0, %v1697
    %v1699 = vrcp.pop %v1696
    %v1700 = vmul.f32 1.0, %v1699
    %v1701 = vmul.f32 %v1698, 2.0
    %v1702 = vmul.f32 %v1700, 2.0
    %v1703 = vsub.f32 %v1701, 1.0
    %v1704 = vsub.f32 %v1702, 1.0
    %v1705 = vmul.f32 %v1698, %v1575
    %v1706 = vmul.f32 %v1700, %v1576
    %1709 = vrot.lane.b32.xlu0 %v1703, 64
    %v1710 = vpop.permute.xlu0 %1709
    %1711 = vrot.lane.b32.xlu0 %v1704, 64
    %v1712 = vpop.permute.xlu0 %1711
    %v1715 = vmul.f32 %v1698, %v1710
    %v1716 = vmul.f32 %v1700, %v1712
    %1719 = vrot.lane.b32.xlu0 %v1715, 32
    %v1720 = vpop.permute.xlu0 %1719
    %1721 = vrot.lane.b32.xlu0 %v1716, 32
    %v1722 = vpop.permute.xlu0 %1721
    %v1725 = vadd.f32 %v1705, %v1720
    %v1726 = vadd.f32 %v1706, %v1722
    %v1727 = vtanh.pop %v1725
    %v1728 = vtanh.pop %v1726
    %1731 = vrot.lane.b32.xlu0 %v1727, 64
    %v1732 = vpop.permute.xlu0 %1731
    %1733 = vrot.lane.b32.xlu0 %v1728, 64
    %v1734 = vpop.permute.xlu0 %1733
    %v1737 = vmul.f32 %v1698, %v1732
    %v1738 = vmul.f32 %v1700, %v1734
    %v1739 = vpack.c.bf16 %v1738, %v1737
    %1741 = vrot.lane.b32.xlu0 %v1739, 32
    %v1742 = vpop.permute.xlu0 %1741
    %v1744 = vsel %vm482, %v1742, 0
    %1746 = vmatprep.subr.bf16.mxu0 0
    %1747 = vmatpush1.bf16.msra.mxu0 %v1440
    %1748 = vmatprep.subr.bf16.mxu0 0
    %1749 = vmatpush1.bf16.msra.mxu0 %v1441
    %1750 = vmatprep.subr.bf16.mxu0 0
    %1751 = vmatpush1.bf16.msra.mxu0 0
    %1752 = vmatprep.subr.bf16.mxu0 0
    %1753 = vmatpush1.bf16.msra.mxu0 0
    %1754 = vmatprep.subr.bf16.mxu0 0
    %1755 = vmatpush1.bf16.msra.mxu0 0
    %1756 = vmatprep.subr.bf16.mxu0 0
    %1757 = vmatpush1.bf16.msra.mxu0 0
    %1758 = vmatprep.subr.bf16.mxu0 0
    %1759 = vmatpush1.bf16.msra.mxu0 0
    %1760 = vmatprep.subr.bf16.mxu0 0
    %1761 = vmatpush1.bf16.msra.mxu0 0
    %1762 = vmatprep.subr.bf16.mxu0 0
    %1763 = vmatpush1.bf16.msra.mxu0 0
    %1764 = vmatprep.subr.bf16.mxu0 0
    %1765 = vmatpush1.bf16.msra.mxu0 0
    %1766 = vmatprep.subr.bf16.mxu0 0
    %1767 = vmatpush1.bf16.msra.mxu0 0
    %1768 = vmatprep.subr.bf16.mxu0 0
    %1769 = vmatpush1.bf16.msra.mxu0 0
    %1770 = vmatprep.subr.bf16.mxu0 0
    %1771 = vmatpush1.bf16.msra.mxu0 0
    %1772 = vmatprep.subr.bf16.mxu0 0
    %1773 = vmatpush1.bf16.msra.mxu0 0
    %1774 = vmatprep.subr.bf16.mxu0 0
    %1775 = vmatpush1.bf16.msra.mxu0 0
    %1776 = vmatprep.subr.bf16.mxu0 0
    %1777 = vmatpush1.bf16.msra.mxu0 0
    %1778 = vmatprep.mubr.bf16.mxu0 0
    %1779 = vmatmul.mubr.bf16.gmra.mrb[0].mxu0 %v1744
    %v1780 = vpop.f32.mrb[0].mxu0
    %v1781 = vadd.f32 %v1427, %v1780
    %v1782 = vpop.f32.mrb[0].mxu0
    %v1783 = vpop.f32.mrb[0].mxu0
    %v1784 = vadd.f32 %v1427, %v1783
    %v1785 = vpop.f32.mrb[0].mxu0
    %1786 = vdwg.mxu0
    %v1787 = vtanh.pop %v1781
    %v1788 = vtanh.pop %v1784
    %s1789 = scalar_lea.vmem [#allocation4], 32
    %1790 = vst [vmem:[%s1789] sm:$0xff] %v1787
    %1791 = vst [vmem:[%s1789 + $0x8] sm:$0xff] %v1788
    %s1792 = scalar_lea.vmem [#allocation3], 24
    %v1793 = vld [vmem:[%s1792] sm:$0xff]
    %v1794 = vunpack.c.l.bf16 %v1793
    %v1795 = vunpack.c.h.bf16 %v1793
    %1796 = vmatprep.subr.bf16.mxu0 0
    %1797 = vmatpush1.bf16.msra.mxu0 %v1322
    %1798 = vmatprep.subr.bf16.mxu0 0
    %1799 = vmatpush1.bf16.msra.mxu0 %v1323
    %1800 = vmatprep.subr.bf16.mxu0 0
    %1801 = vmatpush1.bf16.msra.mxu0 0
    %1802 = vmatprep.subr.bf16.mxu0 0
    %1803 = vmatpush1.bf16.msra.mxu0 0
    %1804 = vmatprep.subr.bf16.mxu0 0
    %1805 = vmatpush1.bf16.msra.mxu0 0
    %1806 = vmatprep.subr.bf16.mxu0 0
    %1807 = vmatpush1.bf16.msra.mxu0 0
    %1808 = vmatprep.subr.bf16.mxu0 0
    %1809 = vmatpush1.bf16.msra.mxu0 0
    %1810 = vmatprep.subr.bf16.mxu0 0
    %1811 = vmatpush1.bf16.msra.mxu0 0
    %1812 = vmatprep.subr.bf16.mxu0 0
    %1813 = vmatpush1.bf16.msra.mxu0 0
    %1814 = vmatprep.subr.bf16.mxu0 0
    %1815 = vmatpush1.bf16.msra.mxu0 0
    %1816 = vmatprep.subr.bf16.mxu0 0
    %1817 = vmatpush1.bf16.msra.mxu0 0
    %1818 = vmatprep.subr.bf16.mxu0 0
    %1819 = vmatpush1.bf16.msra.mxu0 0
    %1820 = vmatprep.subr.bf16.mxu0 0
    %1821 = vmatpush1.bf16.msra.mxu0 0
    %1822 = vmatprep.subr.bf16.mxu0 0
    %1823 = vmatpush1.bf16.msra.mxu0 0
    %1824 = vmatprep.subr.bf16.mxu0 0
    %1825 = vmatpush1.bf16.msra.mxu0 0
    %1826 = vmatprep.subr.bf16.mxu0 0
    %1827 = vmatpush1.bf16.msra.mxu0 0
    %1828 = vmatprep.mubr.bf16.mxu0 0
    %1829 = vmatmul.mubr.bf16.gmra.mrb[0].mxu0 %v1744
    %v1830 = vpop.f32.mrb[0].mxu0
    %v1831 = vadd.f32 0.0, %v1830
    %v1832 = vpop.f32.mrb[0].mxu0
    %v1833 = vpop.f32.mrb[0].mxu0
    %v1834 = vadd.f32 0.0, %v1833
    %v1835 = vpop.f32.mrb[0].mxu0
    %1836 = vdwg.mxu0
    %v1837 = vadd.f32 %v1794, %v1831
    %v1838 = vadd.f32 %v1795, %v1834
    %v1839 = vxor.u32 %v1837, 2147483648
    %v1840 = vxor.u32 %v1838, 2147483648
    %v1841 = vmul.f32 %v1839, 1.442695
    %v1842 = vpow.pop %v1841
    %v1843 = vmul.f32 %v1840, 1.442695
    %v1844 = vpow.pop %v1843
    %v1845 = vadd.f32 %v1842, 1.0
    %v1846 = vadd.f32 %v1844, 1.0
    %v1847 = vrcp.pop %v1845
    %v1848 = vmul.f32 1.0, %v1847
    %v1849 = vrcp.pop %v1846
    %v1850 = vmul.f32 1.0, %v1849
    %v1851 = vmul.f32 %v1848, 2.0
    %v1852 = vmul.f32 %v1850, 2.0
    %v1853 = vsub.f32 %v1851, 1.0
    %v1854 = vsub.f32 %v1852, 1.0
    %v1855 = vmul.f32 %v1848, %v1725
    %v1856 = vmul.f32 %v1850, %v1726
    %1859 = vrot.lane.b32.xlu0 %v1853, 64
    %v1860 = vpop.permute.xlu0 %1859
    %1861 = vrot.lane.b32.xlu0 %v1854, 64
    %v1862 = vpop.permute.xlu0 %1861
    %v1865 = vmul.f32 %v1848, %v1860
    %v1866 = vmul.f32 %v1850, %v1862
    %1869 = vrot.lane.b32.xlu0 %v1865, 32
    %v1870 = vpop.permute.xlu0 %1869
    %1871 = vrot.lane.b32.xlu0 %v1866, 32
    %v1872 = vpop.permute.xlu0 %1871
    %v1875 = vadd.f32 %v1855, %v1870
    %v1876 = vadd.f32 %v1856, %v1872
    %v1877 = vtanh.pop %v1875
    %v1878 = vtanh.pop %v1876
    %1881 = vrot.lane.b32.xlu0 %v1877, 64
    %v1882 = vpop.permute.xlu0 %1881
    %1883 = vrot.lane.b32.xlu0 %v1878, 64
    %v1884 = vpop.permute.xlu0 %1883
    %v1887 = vmul.f32 %v1848, %v1882
    %v1888 = vmul.f32 %v1850, %v1884
    %v1889 = vpack.c.bf16 %v1888, %v1887
    %1891 = vrot.lane.b32.xlu0 %v1889, 32
    %v1892 = vpop.permute.xlu0 %1891
    %v1894 = vsel %vm482, %v1892, 0
    %1896 = vmatprep.subr.bf16.mxu0 0
    %1897 = vmatpush1.bf16.msra.mxu0 %v1440
    %1898 = vmatprep.subr.bf16.mxu0 0
    %1899 = vmatpush1.bf16.msra.mxu0 %v1441
    %1900 = vmatprep.subr.bf16.mxu0 0
    %1901 = vmatpush1.bf16.msra.mxu0 0
    %1902 = vmatprep.subr.bf16.mxu0 0
    %1903 = vmatpush1.bf16.msra.mxu0 0
    %1904 = vmatprep.subr.bf16.mxu0 0
    %1905 = vmatpush1.bf16.msra.mxu0 0
    %1906 = vmatprep.subr.bf16.mxu0 0
    %1907 = vmatpush1.bf16.msra.mxu0 0
    %1908 = vmatprep.subr.bf16.mxu0 0
    %1909 = vmatpush1.bf16.msra.mxu0 0
    %1910 = vmatprep.subr.bf16.mxu0 0
    %1911 = vmatpush1.bf16.msra.mxu0 0
    %1912 = vmatprep.subr.bf16.mxu0 0
    %1913 = vmatpush1.bf16.msra.mxu0 0
    %1914 = vmatprep.subr.bf16.mxu0 0
    %1915 = vmatpush1.bf16.msra.mxu0 0
    %1916 = vmatprep.subr.bf16.mxu0 0
    %1917 = vmatpush1.bf16.msra.mxu0 0
    %1918 = vmatprep.subr.bf16.mxu0 0
    %1919 = vmatpush1.bf16.msra.mxu0 0
    %1920 = vmatprep.subr.bf16.mxu0 0
    %1921 = vmatpush1.bf16.msra.mxu0 0
    %1922 = vmatprep.subr.bf16.mxu0 0
    %1923 = vmatpush1.bf16.msra.mxu0 0
    %1924 = vmatprep.subr.bf16.mxu0 0
    %1925 = vmatpush1.bf16.msra.mxu0 0
    %1926 = vmatprep.subr.bf16.mxu0 0
    %1927 = vmatpush1.bf16.msra.mxu0 0
    %1928 = vmatprep.mubr.bf16.mxu0 0
    %1929 = vmatmul.mubr.bf16.gmra.mrb[0].mxu0 %v1894
    %v1930 = vpop.f32.mrb[0].mxu0
    %v1931 = vadd.f32 %v1427, %v1930
    %v1932 = vpop.f32.mrb[0].mxu0
    %v1933 = vpop.f32.mrb[0].mxu0
    %v1934 = vadd.f32 %v1427, %v1933
    %v1935 = vpop.f32.mrb[0].mxu0
    %1936 = vdwg.mxu0
    %v1937 = vtanh.pop %v1931
    %v1938 = vtanh.pop %v1934
    %s1939 = scalar_lea.vmem [#allocation4], 48
    %1940 = vst [vmem:[%s1939] sm:$0xff] %v1937
    %1941 = vst [vmem:[%s1939 + $0x8] sm:$0xff] %v1938
    %s1942 = scalar_lea.vmem [#allocation3], 32
    %v1943 = vld [vmem:[%s1942] sm:$0xff]
    %v1944 = vunpack.c.l.bf16 %v1943
    %v1945 = vunpack.c.h.bf16 %v1943
    %1946 = vmatprep.subr.bf16.mxu0 0
    %1947 = vmatpush1.bf16.msra.mxu0 %v1322
    %1948 = vmatprep.subr.bf16.mxu0 0
    %1949 = vmatpush1.bf16.msra.mxu0 %v1323
    %1950 = vmatprep.subr.bf16.mxu0 0
    %1951 = vmatpush1.bf16.msra.mxu0 0
    %1952 = vmatprep.subr.bf16.mxu0 0
    %1953 = vmatpush1.bf16.msra.mxu0 0
    %1954 = vmatprep.subr.bf16.mxu0 0
    %1955 = vmatpush1.bf16.msra.mxu0 0
    %1956 = vmatprep.subr.bf16.mxu0 0
    %1957 = vmatpush1.bf16.msra.mxu0 0
    %1958 = vmatprep.subr.bf16.mxu0 0
    %1959 = vmatpush1.bf16.msra.mxu0 0
    %1960 = vmatprep.subr.bf16.mxu0 0
    %1961 = vmatpush1.bf16.msra.mxu0 0
    %1962 = vmatprep.subr.bf16.mxu0 0
    %1963 = vmatpush1.bf16.msra.mxu0 0
    %1964 = vmatprep.subr.bf16.mxu0 0
    %1965 = vmatpush1.bf16.msra.mxu0 0
    %1966 = vmatprep.subr.bf16.mxu0 0
    %1967 = vmatpush1.bf16.msra.mxu0 0
    %1968 = vmatprep.subr.bf16.mxu0 0
    %1969 = vmatpush1.bf16.msra.mxu0 0
    %1970 = vmatprep.subr.bf16.mxu0 0
    %1971 = vmatpush1.bf16.msra.mxu0 0
    %1972 = vmatprep.subr.bf16.mxu0 0
    %1973 = vmatpush1.bf16.msra.mxu0 0
    %1974 = vmatprep.subr.bf16.mxu0 0
    %1975 = vmatpush1.bf16.msra.mxu0 0
    %1976 = vmatprep.subr.bf16.mxu0 0
    %1977 = vmatpush1.bf16.msra.mxu0 0
    %1978 = vmatprep.mubr.bf16.mxu0 0
    %1979 = vmatmul.mubr.bf16.gmra.mrb[0].mxu0 %v1894
    %v1980 = vpop.f32.mrb[0].mxu0
    %v1981 = vadd.f32 0.0, %v1980
    %v1982 = vpop.f32.mrb[0].mxu0
    %v1983 = vpop.f32.mrb[0].mxu0
    %v1984 = vadd.f32 0.0, %v1983
    %v1985 = vpop.f32.mrb[0].mxu0
    %1986 = vdwg.mxu0
    %v1987 = vadd.f32 %v1944, %v1981
    %v1988 = vadd.f32 %v1945, %v1984
    %v1989 = vxor.u32 %v1987, 2147483648
    %v1990 = vxor.u32 %v1988, 2147483648
    %v1991 = vmul.f32 %v1989, 1.442695
    %v1992 = vpow.pop %v1991
    %v1993 = vmul.f32 %v1990, 1.442695
    %v1994 = vpow.pop %v1993
    %v1995 = vadd.f32 %v1992, 1.0
    %v1996 = vadd.f32 %v1994, 1.0
    %v1997 = vrcp.pop %v1995
    %v1998 = vmul.f32 1.0, %v1997
    %v1999 = vrcp.pop %v1996
    %v2000 = vmul.f32 1.0, %v1999
    %v2001 = vmul.f32 %v1998, 2.0
    %v2002 = vmul.f32 %v2000, 2.0
    %v2003 = vsub.f32 %v2001, 1.0
    %v2004 = vsub.f32 %v2002, 1.0
    %v2005 = vmul.f32 %v1998, %v1875
    %v2006 = vmul.f32 %v2000, %v1876
    %2009 = vrot.lane.b32.xlu0 %v2003, 64
    %v2010 = vpop.permute.xlu0 %2009
    %2011 = vrot.lane.b32.xlu0 %v2004, 64
    %v2012 = vpop.permute.xlu0 %2011
    %v2015 = vmul.f32 %v1998, %v2010
    %v2016 = vmul.f32 %v2000, %v2012
    %2019 = vrot.lane.b32.xlu0 %v2015, 32
    %v2020 = vpop.permute.xlu0 %2019
    %2021 = vrot.lane.b32.xlu0 %v2016, 32
    %v2022 = vpop.permute.xlu0 %2021
    %v2025 = vadd.f32 %v2005, %v2020
    %v2026 = vadd.f32 %v2006, %v2022
    %v2027 = vtanh.pop %v2025
    %v2028 = vtanh.pop %v2026
    %2031 = vrot.lane.b32.xlu0 %v2027, 64
    %v2032 = vpop.permute.xlu0 %2031
    %2033 = vrot.lane.b32.xlu0 %v2028, 64
    %v2034 = vpop.permute.xlu0 %2033
    %v2037 = vmul.f32 %v1998, %v2032
    %v2038 = vmul.f32 %v2000, %v2034
    %v2039 = vpack.c.bf16 %v2038, %v2037
    %2041 = vrot.lane.b32.xlu0 %v2039, 32
    %v2042 = vpop.permute.xlu0 %2041
    %v2044 = vsel %vm482, %v2042, 0
    %2046 = vmatprep.subr.bf16.mxu0 0
    %2047 = vmatpush1.bf16.msra.mxu0 %v1440
    %2048 = vmatprep.subr.bf16.mxu0 0
    %2049 = vmatpush1.bf16.msra.mxu0 %v1441
    %2050 = vmatprep.subr.bf16.mxu0 0
    %2051 = vmatpush1.bf16.msra.mxu0 0
    %2052 = vmatprep.subr.bf16.mxu0 0
    %2053 = vmatpush1.bf16.msra.mxu0 0
    %2054 = vmatprep.subr.bf16.mxu0 0
    %2055 = vmatpush1.bf16.msra.mxu0 0
    %2056 = vmatprep.subr.bf16.mxu0 0
    %2057 = vmatpush1.bf16.msra.mxu0 0
    %2058 = vmatprep.subr.bf16.mxu0 0
    %2059 = vmatpush1.bf16.msra.mxu0 0
    %2060 = vmatprep.subr.bf16.mxu0 0
    %2061 = vmatpush1.bf16.msra.mxu0 0
    %2062 = vmatprep.subr.bf16.mxu0 0
    %2063 = vmatpush1.bf16.msra.mxu0 0
    %2064 = vmatprep.subr.bf16.mxu0 0
    %2065 = vmatpush1.bf16.msra.mxu0 0
    %2066 = vmatprep.subr.bf16.mxu0 0
    %2067 = vmatpush1.bf16.msra.mxu0 0
    %2068 = vmatprep.subr.bf16.mxu0 0
    %2069 = vmatpush1.bf16.msra.mxu0 0
    %2070 = vmatprep.subr.bf16.mxu0 0
    %2071 = vmatpush1.bf16.msra.mxu0 0
    %2072 = vmatprep.subr.bf16.mxu0 0
    %2073 = vmatpush1.bf16.msra.mxu0 0
    %2074 = vmatprep.subr.bf16.mxu0 0
    %2075 = vmatpush1.bf16.msra.mxu0 0
    %2076 = vmatprep.subr.bf16.mxu0 0
    %2077 = vmatpush1.bf16.msra.mxu0 0
    %2078 = vmatprep.mubr.bf16.mxu0 0
    %2079 = vmatmul.mubr.bf16.gmra.mrb[0].mxu0 %v2044
    %v2080 = vpop.f32.mrb[0].mxu0
    %v2081 = vadd.f32 %v1427, %v2080
    %v2082 = vpop.f32.mrb[0].mxu0
    %v2083 = vpop.f32.mrb[0].mxu0
    %v2084 = vadd.f32 %v1427, %v2083
    %v2085 = vpop.f32.mrb[0].mxu0
    %2086 = vdwg.mxu0
    %v2087 = vtanh.pop %v2081
    %v2088 = vtanh.pop %v2084
    %s2089 = scalar_lea.vmem [#allocation4], 64
    %2090 = vst [vmem:[%s2089] sm:$0xff] %v2087
    %2091 = vst [vmem:[%s2089 + $0x8] sm:$0xff] %v2088
    %s2092 = scalar_lea.vmem [#allocation3], 40
    %v2093 = vld [vmem:[%s2092] sm:$0xff]
    %v2094 = vunpack.c.l.bf16 %v2093
    %v2095 = vunpack.c.h.bf16 %v2093
    %2096 = vmatprep.subr.bf16.mxu0 0
    %2097 = vmatpush1.bf16.msra.mxu0 %v1322
    %2098 = vmatprep.subr.bf16.mxu0 0
    %2099 = vmatpush1.bf16.msra.mxu0 %v1323
    %2100 = vmatprep.subr.bf16.mxu0 0
    %2101 = vmatpush1.bf16.msra.mxu0 0
    %2102 = vmatprep.subr.bf16.mxu0 0
    %2103 = vmatpush1.bf16.msra.mxu0 0
    %2104 = vmatprep.subr.bf16.mxu0 0
    %2105 = vmatpush1.bf16.msra.mxu0 0
    %2106 = vmatprep.subr.bf16.mxu0 0
    %2107 = vmatpush1.bf16.msra.mxu0 0
    %2108 = vmatprep.subr.bf16.mxu0 0
    %2109 = vmatpush1.bf16.msra.mxu0 0
    %2110 = vmatprep.subr.bf16.mxu0 0
    %2111 = vmatpush1.bf16.msra.mxu0 0
    %2112 = vmatprep.subr.bf16.mxu0 0
    %2113 = vmatpush1.bf16.msra.mxu0 0
    %2114 = vmatprep.subr.bf16.mxu0 0
    %2115 = vmatpush1.bf16.msra.mxu0 0
    %2116 = vmatprep.subr.bf16.mxu0 0
    %2117 = vmatpush1.bf16.msra.mxu0 0
    %2118 = vmatprep.subr.bf16.mxu0 0
    %2119 = vmatpush1.bf16.msra.mxu0 0
    %2120 = vmatprep.subr.bf16.mxu0 0
    %2121 = vmatpush1.bf16.msra.mxu0 0
    %2122 = vmatprep.subr.bf16.mxu0 0
    %2123 = vmatpush1.bf16.msra.mxu0 0
    %2124 = vmatprep.subr.bf16.mxu0 0
    %2125 = vmatpush1.bf16.msra.mxu0 0
    %2126 = vmatprep.subr.bf16.mxu0 0
    %2127 = vmatpush1.bf16.msra.mxu0 0
    %2128 = vmatprep.mubr.bf16.mxu0 0
    %2129 = vmatmul.mubr.bf16.gmra.mrb[0].mxu0 %v2044
    %v2130 = vpop.f32.mrb[0].mxu0
    %v2131 = vadd.f32 0.0, %v2130
    %v2132 = vpop.f32.mrb[0].mxu0
    %v2133 = vpop.f32.mrb[0].mxu0
    %v2134 = vadd.f32 0.0, %v2133
    %v2135 = vpop.f32.mrb[0].mxu0
    %2136 = vdwg.mxu0
    %v2137 = vadd.f32 %v2094, %v2131
    %v2138 = vadd.f32 %v2095, %v2134
    %v2139 = vxor.u32 %v2137, 2147483648
    %v2140 = vxor.u32 %v2138, 2147483648
    %v2141 = vmul.f32 %v2139, 1.442695
    %v2142 = vpow.pop %v2141
    %v2143 = vmul.f32 %v2140, 1.442695
    %v2144 = vpow.pop %v2143
    %v2145 = vadd.f32 %v2142, 1.0
    %v2146 = vadd.f32 %v2144, 1.0
    %v2147 = vrcp.pop %v2145
    %v2148 = vmul.f32 1.0, %v2147
    %v2149 = vrcp.pop %v2146
    %v2150 = vmul.f32 1.0, %v2149
    %v2151 = vmul.f32 %v2148, 2.0
    %v2152 = vmul.f32 %v2150, 2.0
    %v2153 = vsub.f32 %v2151, 1.0
    %v2154 = vsub.f32 %v2152, 1.0
    %v2155 = vmul.f32 %v2148, %v2025
    %v2156 = vmul.f32 %v2150, %v2026
    %2159 = vrot.lane.b32.xlu0 %v2153, 64
    %v2160 = vpop.permute.xlu0 %2159
    %2161 = vrot.lane.b32.xlu0 %v2154, 64
    %v2162 = vpop.permute.xlu0 %2161
    %v2165 = vmul.f32 %v2148, %v2160
    %v2166 = vmul.f32 %v2150, %v2162
    %2169 = vrot.lane.b32.xlu0 %v2165, 32
    %v2170 = vpop.permute.xlu0 %2169
    %2171 = vrot.lane.b32.xlu0 %v2166, 32
    %v2172 = vpop.permute.xlu0 %2171
    %v2175 = vadd.f32 %v2155, %v2170
    %v2176 = vadd.f32 %v2156, %v2172
    %v2177 = vtanh.pop %v2175
    %v2178 = vtanh.pop %v2176
    %2181 = vrot.lane.b32.xlu0 %v2177, 64
    %v2182 = vpop.permute.xlu0 %2181
    %2183 = vrot.lane.b32.xlu0 %v2178, 64
    %v2184 = vpop.permute.xlu0 %2183
    %v2187 = vmul.f32 %v2148, %v2182
    %v2188 = vmul.f32 %v2150, %v2184
    %v2189 = vpack.c.bf16 %v2188, %v2187
    %2191 = vrot.lane.b32.xlu0 %v2189, 32
    %v2192 = vpop.permute.xlu0 %2191
    %v2194 = vsel %vm482, %v2192, 0
    %2196 = vmatprep.subr.bf16.mxu0 0
    %2197 = vmatpush1.bf16.msra.mxu0 %v1440
    %2198 = vmatprep.subr.bf16.mxu0 0
    %2199 = vmatpush1.bf16.msra.mxu0 %v1441
    %2200 = vmatprep.subr.bf16.mxu0 0
    %2201 = vmatpush1.bf16.msra.mxu0 0
    %2202 = vmatprep.subr.bf16.mxu0 0
    %2203 = vmatpush1.bf16.msra.mxu0 0
    %2204 = vmatprep.subr.bf16.mxu0 0
    %2205 = vmatpush1.bf16.msra.mxu0 0
    %2206 = vmatprep.subr.bf16.mxu0 0
    %2207 = vmatpush1.bf16.msra.mxu0 0
    %2208 = vmatprep.subr.bf16.mxu0 0
    %2209 = vmatpush1.bf16.msra.mxu0 0
    %2210 = vmatprep.subr.bf16.mxu0 0
    %2211 = vmatpush1.bf16.msra.mxu0 0
    %2212 = vmatprep.subr.bf16.mxu0 0
    %2213 = vmatpush1.bf16.msra.mxu0 0
    %2214 = vmatprep.subr.bf16.mxu0 0
    %2215 = vmatpush1.bf16.msra.mxu0 0
    %2216 = vmatprep.subr.bf16.mxu0 0
    %2217 = vmatpush1.bf16.msra.mxu0 0
    %2218 = vmatprep.subr.bf16.mxu0 0
    %2219 = vmatpush1.bf16.msra.mxu0 0
    %2220 = vmatprep.subr.bf16.mxu0 0
    %2221 = vmatpush1.bf16.msra.mxu0 0
    %2222 = vmatprep.subr.bf16.mxu0 0
    %2223 = vmatpush1.bf16.msra.mxu0 0
    %2224 = vmatprep.subr.bf16.mxu0 0
    %2225 = vmatpush1.bf16.msra.mxu0 0
    %2226 = vmatprep.subr.bf16.mxu0 0
    %2227 = vmatpush1.bf16.msra.mxu0 0
    %2228 = vmatprep.mubr.bf16.mxu0 0
    %2229 = vmatmul.mubr.bf16.gmra.mrb[0].mxu0 %v2194
    %v2230 = vpop.f32.mrb[0].mxu0
    %v2231 = vadd.f32 %v1427, %v2230
    %v2232 = vpop.f32.mrb[0].mxu0
    %v2233 = vpop.f32.mrb[0].mxu0
    %v2234 = vadd.f32 %v1427, %v2233
    %v2235 = vpop.f32.mrb[0].mxu0
    %2236 = vdwg.mxu0
    %v2237 = vtanh.pop %v2231
    %v2238 = vtanh.pop %v2234
    %s2239 = scalar_lea.vmem [#allocation4], 80
    %2240 = vst [vmem:[%s2239] sm:$0xff] %v2237
    %2241 = vst [vmem:[%s2239 + $0x8] sm:$0xff] %v2238
    %s2242 = scalar_lea.vmem [#allocation3], 48
    %v2243 = vld [vmem:[%s2242] sm:$0xff]
    %v2244 = vunpack.c.l.bf16 %v2243
    %v2245 = vunpack.c.h.bf16 %v2243
    %2246 = vmatprep.subr.bf16.mxu0 0
    %2247 = vmatpush1.bf16.msra.mxu0 %v1322
    %2248 = vmatprep.subr.bf16.mxu0 0
    %2249 = vmatpush1.bf16.msra.mxu0 %v1323
    %2250 = vmatprep.subr.bf16.mxu0 0
    %2251 = vmatpush1.bf16.msra.mxu0 0
    %2252 = vmatprep.subr.bf16.mxu0 0
    %2253 = vmatpush1.bf16.msra.mxu0 0
    %2254 = vmatprep.subr.bf16.mxu0 0
    %2255 = vmatpush1.bf16.msra.mxu0 0
    %2256 = vmatprep.subr.bf16.mxu0 0
    %2257 = vmatpush1.bf16.msra.mxu0 0
    %2258 = vmatprep.subr.bf16.mxu0 0
    %2259 = vmatpush1.bf16.msra.mxu0 0
    %2260 = vmatprep.subr.bf16.mxu0 0
    %2261 = vmatpush1.bf16.msra.mxu0 0
    %2262 = vmatprep.subr.bf16.mxu0 0
    %2263 = vmatpush1.bf16.msra.mxu0 0
    %2264 = vmatprep.subr.bf16.mxu0 0
    %2265 = vmatpush1.bf16.msra.mxu0 0
    %2266 = vmatprep.subr.bf16.mxu0 0
    %2267 = vmatpush1.bf16.msra.mxu0 0
    %2268 = vmatprep.subr.bf16.mxu0 0
    %2269 = vmatpush1.bf16.msra.mxu0 0
    %2270 = vmatprep.subr.bf16.mxu0 0
    %2271 = vmatpush1.bf16.msra.mxu0 0
    %2272 = vmatprep.subr.bf16.mxu0 0
    %2273 = vmatpush1.bf16.msra.mxu0 0
    %2274 = vmatprep.subr.bf16.mxu0 0
    %2275 = vmatpush1.bf16.msra.mxu0 0
    %2276 = vmatprep.subr.bf16.mxu0 0
    %2277 = vmatpush1.bf16.msra.mxu0 0
    %2278 = vmatprep.mubr.bf16.mxu0 0
    %2279 = vmatmul.mubr.bf16.gmra.mrb[0].mxu0 %v2194
    %v2280 = vpop.f32.mrb[0].mxu0
    %v2281 = vadd.f32 0.0, %v2280
    %v2282 = vpop.f32.mrb[0].mxu0
    %v2283 = vpop.f32.mrb[0].mxu0
    %v2284 = vadd.f32 0.0, %v2283
    %v2285 = vpop.f32.mrb[0].mxu0
    %2286 = vdwg.mxu0
    %v2287 = vadd.f32 %v2244, %v2281
    %v2288 = vadd.f32 %v2245, %v2284
    %v2289 = vxor.u32 %v2287, 2147483648
    %v2290 = vxor.u32 %v2288, 2147483648
    %v2291 = vmul.f32 %v2289, 1.442695
    %v2292 = vpow.pop %v2291
    %v2293 = vmul.f32 %v2290, 1.442695
    %v2294 = vpow.pop %v2293
    %v2295 = vadd.f32 %v2292, 1.0
    %v2296 = vadd.f32 %v2294, 1.0
    %v2297 = vrcp.pop %v2295
    %v2298 = vmul.f32 1.0, %v2297
    %v2299 = vrcp.pop %v2296
    %v2300 = vmul.f32 1.0, %v2299
    %v2301 = vmul.f32 %v2298, 2.0
    %v2302 = vmul.f32 %v2300, 2.0
    %v2303 = vsub.f32 %v2301, 1.0
    %v2304 = vsub.f32 %v2302, 1.0
    %v2305 = vmul.f32 %v2298, %v2175
    %v2306 = vmul.f32 %v2300, %v2176
    %2309 = vrot.lane.b32.xlu0 %v2303, 64
    %v2310 = vpop.permute.xlu0 %2309
    %2311 = vrot.lane.b32.xlu0 %v2304, 64
    %v2312 = vpop.permute.xlu0 %2311
    %v2315 = vmul.f32 %v2298, %v2310
    %v2316 = vmul.f32 %v2300, %v2312
    %2319 = vrot.lane.b32.xlu0 %v2315, 32
    %v2320 = vpop.permute.xlu0 %2319
    %2321 = vrot.lane.b32.xlu0 %v2316, 32
    %v2322 = vpop.permute.xlu0 %2321
    %v2325 = vadd.f32 %v2305, %v2320
    %v2326 = vadd.f32 %v2306, %v2322
    %v2327 = vtanh.pop %v2325
    %v2328 = vtanh.pop %v2326
    %2331 = vrot.lane.b32.xlu0 %v2327, 64
    %v2332 = vpop.permute.xlu0 %2331
    %2333 = vrot.lane.b32.xlu0 %v2328, 64
    %v2334 = vpop.permute.xlu0 %2333
    %v2337 = vmul.f32 %v2298, %v2332
    %v2338 = vmul.f32 %v2300, %v2334
    %v2339 = vpack.c.bf16 %v2338, %v2337
    %2341 = vrot.lane.b32.xlu0 %v2339, 32
    %v2342 = vpop.permute.xlu0 %2341
    %v2344 = vsel %vm482, %v2342, 0
    %2346 = vmatprep.subr.bf16.mxu0 0
    %2347 = vmatpush1.bf16.msra.mxu0 %v1440
    %2348 = vmatprep.subr.bf16.mxu0 0
    %2349 = vmatpush1.bf16.msra.mxu0 %v1441
    %2350 = vmatprep.subr.bf16.mxu0 0
    %2351 = vmatpush1.bf16.msra.mxu0 0
    %2352 = vmatprep.subr.bf16.mxu0 0
    %2353 = vmatpush1.bf16.msra.mxu0 0
    %2354 = vmatprep.subr.bf16.mxu0 0
    %2355 = vmatpush1.bf16.msra.mxu0 0
    %2356 = vmatprep.subr.bf16.mxu0 0
    %2357 = vmatpush1.bf16.msra.mxu0 0
    %2358 = vmatprep.subr.bf16.mxu0 0
    %2359 = vmatpush1.bf16.msra.mxu0 0
    %2360 = vmatprep.subr.bf16.mxu0 0
    %2361 = vmatpush1.bf16.msra.mxu0 0
    %2362 = vmatprep.subr.bf16.mxu0 0
    %2363 = vmatpush1.bf16.msra.mxu0 0
    %2364 = vmatprep.subr.bf16.mxu0 0
    %2365 = vmatpush1.bf16.msra.mxu0 0
    %2366 = vmatprep.subr.bf16.mxu0 0
    %2367 = vmatpush1.bf16.msra.mxu0 0
    %2368 = vmatprep.subr.bf16.mxu0 0
    %2369 = vmatpush1.bf16.msra.mxu0 0
    %2370 = vmatprep.subr.bf16.mxu0 0
    %2371 = vmatpush1.bf16.msra.mxu0 0
    %2372 = vmatprep.subr.bf16.mxu0 0
    %2373 = vmatpush1.bf16.msra.mxu0 0
    %2374 = vmatprep.subr.bf16.mxu0 0
    %2375 = vmatpush1.bf16.msra.mxu0 0
    %2376 = vmatprep.subr.bf16.mxu0 0
    %2377 = vmatpush1.bf16.msra.mxu0 0
    %2378 = vmatprep.mubr.bf16.mxu0 0
    %2379 = vmatmul.mubr.bf16.gmra.mrb[0].mxu0 %v2344
    %v2380 = vpop.f32.mrb[0].mxu0
    %v2381 = vadd.f32 %v1427, %v2380
    %v2382 = vpop.f32.mrb[0].mxu0
    %v2383 = vpop.f32.mrb[0].mxu0
    %v2384 = vadd.f32 %v1427, %v2383
    %v2385 = vpop.f32.mrb[0].mxu0
    %2386 = vdwg.mxu0
    %v2387 = vtanh.pop %v2381
    %v2388 = vtanh.pop %v2384
    %s2389 = scalar_lea.vmem [#allocation4], 96
    %2390 = vst [vmem:[%s2389] sm:$0xff] %v2387
    %2391 = vst [vmem:[%s2389 + $0x8] sm:$0xff] %v2388
    %s2392 = scalar_lea.vmem [#allocation3], 56
    %v2393 = vld [vmem:[%s2392] sm:$0xff]
    %v2394 = vunpack.c.l.bf16 %v2393
    %v2395 = vunpack.c.h.bf16 %v2393
    %2396 = vmatprep.subr.bf16.mxu0 0
    %2397 = vmatpush1.bf16.msra.mxu0 %v1322
    %2398 = vmatprep.subr.bf16.mxu0 0
    %2399 = vmatpush1.bf16.msra.mxu0 %v1323
    %2400 = vmatprep.subr.bf16.mxu0 0
    %2401 = vmatpush1.bf16.msra.mxu0 0
    %2402 = vmatprep.subr.bf16.mxu0 0
    %2403 = vmatpush1.bf16.msra.mxu0 0
    %2404 = vmatprep.subr.bf16.mxu0 0
    %2405 = vmatpush1.bf16.msra.mxu0 0
    %2406 = vmatprep.subr.bf16.mxu0 0
    %2407 = vmatpush1.bf16.msra.mxu0 0
    %2408 = vmatprep.subr.bf16.mxu0 0
    %2409 = vmatpush1.bf16.msra.mxu0 0
    %2410 = vmatprep.subr.bf16.mxu0 0
    %2411 = vmatpush1.bf16.msra.mxu0 0
    %2412 = vmatprep.subr.bf16.mxu0 0
    %2413 = vmatpush1.bf16.msra.mxu0 0
    %2414 = vmatprep.subr.bf16.mxu0 0
    %2415 = vmatpush1.bf16.msra.mxu0 0
    %2416 = vmatprep.subr.bf16.mxu0 0
    %2417 = vmatpush1.bf16.msra.mxu0 0
    %2418 = vmatprep.subr.bf16.mxu0 0
    %2419 = vmatpush1.bf16.msra.mxu0 0
    %2420 = vmatprep.subr.bf16.mxu0 0
    %2421 = vmatpush1.bf16.msra.mxu0 0
    %2422 = vmatprep.subr.bf16.mxu0 0
    %2423 = vmatpush1.bf16.msra.mxu0 0
    %2424 = vmatprep.subr.bf16.mxu0 0
    %2425 = vmatpush1.bf16.msra.mxu0 0
    %2426 = vmatprep.subr.bf16.mxu0 0
    %2427 = vmatpush1.bf16.msra.mxu0 0
    %2428 = vmatprep.mubr.bf16.mxu0 0
    %2429 = vmatmul.mubr.bf16.gmra.mrb[0].mxu0 %v2344
    %v2430 = vpop.f32.mrb[0].mxu0
    %v2431 = vadd.f32 0.0, %v2430
    %v2432 = vpop.f32.mrb[0].mxu0
    %v2433 = vpop.f32.mrb[0].mxu0
    %v2434 = vadd.f32 0.0, %v2433
    %v2435 = vpop.f32.mrb[0].mxu0
    %2436 = vdwg.mxu0
    %v2437 = vadd.f32 %v2394, %v2431
    %v2438 = vadd.f32 %v2395, %v2434
    %v2439 = vxor.u32 %v2437, 2147483648
    %v2440 = vxor.u32 %v2438, 2147483648
    %v2441 = vmul.f32 %v2439, 1.442695
    %v2442 = vpow.pop %v2441
    %v2443 = vmul.f32 %v2440, 1.442695
    %v2444 = vpow.pop %v2443
    %v2445 = vadd.f32 %v2442, 1.0
    %v2446 = vadd.f32 %v2444, 1.0
    %v2447 = vrcp.pop %v2445
    %v2448 = vmul.f32 1.0, %v2447
    %v2449 = vrcp.pop %v2446
    %v2450 = vmul.f32 1.0, %v2449
    %v2451 = vmul.f32 %v2448, 2.0
    %v2452 = vmul.f32 %v2450, 2.0
    %v2453 = vsub.f32 %v2451, 1.0
    %v2454 = vsub.f32 %v2452, 1.0
    %v2455 = vmul.f32 %v2448, %v2325
    %v2456 = vmul.f32 %v2450, %v2326
    %2459 = vrot.lane.b32.xlu0 %v2453, 64
    %v2460 = vpop.permute.xlu0 %2459
    %2461 = vrot.lane.b32.xlu0 %v2454, 64
    %v2462 = vpop.permute.xlu0 %2461
    %v2465 = vmul.f32 %v2448, %v2460
    %v2466 = vmul.f32 %v2450, %v2462
    %2469 = vrot.lane.b32.xlu0 %v2465, 32
    %v2470 = vpop.permute.xlu0 %2469
    %2471 = vrot.lane.b32.xlu0 %v2466, 32
    %v2472 = vpop.permute.xlu0 %2471
    %v2475 = vadd.f32 %v2455, %v2470
    %v2476 = vadd.f32 %v2456, %v2472
    %v2477 = vtanh.pop %v2475
    %v2478 = vtanh.pop %v2476
    %2481 = vrot.lane.b32.xlu0 %v2477, 64
    %v2482 = vpop.permute.xlu0 %2481
    %2483 = vrot.lane.b32.xlu0 %v2478, 64
    %v2484 = vpop.permute.xlu0 %2483
    %v2487 = vmul.f32 %v2448, %v2482
    %v2488 = vmul.f32 %v2450, %v2484
    %v2489 = vpack.c.bf16 %v2488, %v2487
    %2491 = vrot.lane.b32.xlu0 %v2489, 32
    %v2492 = vpop.permute.xlu0 %2491
    %v2494 = vsel %vm482, %v2492, 0
    %2496 = vmatprep.subr.bf16.mxu0 0
    %2497 = vmatpush1.bf16.msra.mxu0 %v1440
    %2498 = vmatprep.subr.bf16.mxu0 0
    %2499 = vmatpush1.bf16.msra.mxu0 %v1441
    %2500 = vmatprep.subr.bf16.mxu0 0
    %2501 = vmatpush1.bf16.msra.mxu0 0
    %2502 = vmatprep.subr.bf16.mxu0 0
    %2503 = vmatpush1.bf16.msra.mxu0 0
    %2504 = vmatprep.subr.bf16.mxu0 0
    %2505 = vmatpush1.bf16.msra.mxu0 0
    %2506 = vmatprep.subr.bf16.mxu0 0
    %2507 = vmatpush1.bf16.msra.mxu0 0
    %2508 = vmatprep.subr.bf16.mxu0 0
    %2509 = vmatpush1.bf16.msra.mxu0 0
    %2510 = vmatprep.subr.bf16.mxu0 0
    %2511 = vmatpush1.bf16.msra.mxu0 0
    %2512 = vmatprep.subr.bf16.mxu0 0
    %2513 = vmatpush1.bf16.msra.mxu0 0
    %2514 = vmatprep.subr.bf16.mxu0 0
    %2515 = vmatpush1.bf16.msra.mxu0 0
    %2516 = vmatprep.subr.bf16.mxu0 0
    %2517 = vmatpush1.bf16.msra.mxu0 0
    %2518 = vmatprep.subr.bf16.mxu0 0
    %2519 = vmatpush1.bf16.msra.mxu0 0
    %2520 = vmatprep.subr.bf16.mxu0 0
    %2521 = vmatpush1.bf16.msra.mxu0 0
    %2522 = vmatprep.subr.bf16.mxu0 0
    %2523 = vmatpush1.bf16.msra.mxu0 0
    %2524 = vmatprep.subr.bf16.mxu0 0
    %2525 = vmatpush1.bf16.msra.mxu0 0
    %2526 = vmatprep.subr.bf16.mxu0 0
    %2527 = vmatpush1.bf16.msra.mxu0 0
    %2528 = vmatprep.mubr.bf16.mxu0 0
    %2529 = vmatmul.mubr.bf16.gmra.mrb[0].mxu0 %v2494
    %v2530 = vpop.f32.mrb[0].mxu0
    %v2531 = vadd.f32 %v1427, %v2530
    %v2532 = vpop.f32.mrb[0].mxu0
    %v2533 = vpop.f32.mrb[0].mxu0
    %v2534 = vadd.f32 %v1427, %v2533
    %v2535 = vpop.f32.mrb[0].mxu0
    %2536 = vdwg.mxu0
    %v2537 = vtanh.pop %v2531
    %v2538 = vtanh.pop %v2534
    %s2539 = scalar_lea.vmem [#allocation4], 112
    %2540 = vst [vmem:[%s2539] sm:$0xff] %v2537
    %2541 = vst [vmem:[%s2539 + $0x8] sm:$0xff] %v2538
    // Predicated region
    $region42: #{tpu_custom_call.1} parent=1 // pred_check
      _
    $region43: #{tpu_custom_call.1} parent=1 // pred_check_branch
      %2543 = sbr.rel (0) target = $region45
    $region44: #{tpu_custom_call.1} parent=1 // pred_region
      %s2545 = ssub.s32 2048, 2048
      %2546 = vsyncadd [#allocation5], %s2545
      %s2547 = sshll.u32 [#allocation4], 4
      %s2548 = int_to_ptr.vmem [resolvable:$true] %s2547
      %2553 = dma.vmem_to_hbm [thread:$0]  %s2548, 2048, %s10, [#allocation5], 128, 128, 8
    $region45: #{tpu_custom_call.1} parent=1 // pred_fallthru
      _
    // Predicated region
    $region46: #{tpu_custom_call.1} parent=1 // pred_check
      _
    $region47: #{tpu_custom_call.1} parent=1 // pred_check_branch
      %2555 = sbr.rel (0) target = $region49
    $region48: #{tpu_custom_call.1} parent=1 // pred_region
      %2556 = dma.done [#allocation5], 2048
    $region49: #{tpu_custom_call.1} parent=1 // pred_fallthru
      _
    %2557 = vsyncpa [#allocation5], 1

</llo_original>
